<compile_context>
chip_gen: v7x
topology: tpu7x:2x2x1
jax: 0.10.0
libtpu: 0.0.40
codegen_flags: <defaults>
</compile_context>

<pallas_src>
import jax
import jax.numpy as jnp
from jax.experimental import pallas as pl
from jax.experimental.pallas import tpu as pltpu

NUM_LAYERS = 2          # hidden conv blocks (they share ONE nn.Conv2d instance -> shared weights)
NUM_FILTER = 8
KSIZE = 3
STRIDE = 1
PADDING = 1
BATCH = 2
SPATIAL = 16            # 16 -> 8 -> 4 -> 2 after the three 2x2 max-pools  => flatten = 8 * 4
CIN_PAD = 8             # stage-0 input channels zero-padded 3 -> 8 (uniform 8-sublane tap slabs)

H = W = SPATIAL
NHW = BATCH * H * W                                   # 512: flattened (n, h, w) lane dimension
OFF = 128                                             # aligned interior offset in the halo buffer
HALO = (KSIZE // 2) * (1 << NUM_LAYERS) * (W + 1)     # 68 = max |lane shift| used anywhere
PADW = OFF + NHW + OFF                                # 768 lanes
assert OFF >= HALO


# --------------------------------------------------------------------------------------
# Single fused kernel: 3x [conv+bias+ReLU+maxpool]  ->  fc1+ReLU  ->  fc2
# --------------------------------------------------------------------------------------
def _network_kernel(x_ref, w0_ref, b0_ref, wh_ref, bh_ref,
                    w1_ref, b1_ref, w2_ref, b2_ref,
                    o_ref, pad_ref, taps_ref, head_ref):
    # x_ref   : (8, 512)  channel-major, lane-dense input (channels 3..7 are zero)
    # w0/wh   : (8, 72)   prepacked conv weights, column = (kh*3+kw)*8 + cin
    # b0/bh   : (8, 1)    conv biases
    # w1_ref  : (8, 32)   fc1 weights, column = (y*2+x)*8 + c   (PyTorch CHW flatten order)
    # b1_ref  : (8, 1);  w2_ref: (10, 8);  b2_ref: (10, 1)
    # o_ref   : (10, BATCH) transposed logits (wrapper transposes back)
    # pad_ref : (8, PADW)  halo-padded flat activation buffer
    # taps_ref: (72, 512)  im2col slab (9 shifted/masked taps stacked on sublanes)
    # head_ref: (32, BATCH) flattened head input

    # Lane-index helpers for the flattened (n, h, w) lane dimension (power-of-2 dims -> bit ops).
    col = jax.lax.broadcasted_iota(jnp.int32, (CIN_PAD, NHW), 1)
    w_idx = col & (W - 1)
    h_idx = (col >> 4) & (H - 1)

    pad_ref[...] = jnp.zeros_like(pad_ref)            # zero once; halo regions stay zero forever
    pad_ref[:, OFF:OFF + NHW] = x_ref[...]            # stage-0 activation

    for stage in range(NUM_LAYERS + 1):
        s = 1 << stage                                # grid dilation: valid samples at stride s
        w_ref = w0_ref if stage == 0 else wh_ref      # hidden conv weights are SHARED
        b_ref = b0_ref if stage == 0 else bh_ref

        # ---- build 9 shifted + border-masked taps: one (72, 512) im2col slab ----
        t = 0
        for dh in (-1, 0, 1):
            for dw in (-1, 0, 1):
                d = s * (dh * W + dw)
                val = pad_ref[:, OFF + d:OFF + d + NHW]           # static lane-offset slice
                if dh or dw:                                      # zero out-of-bounds neighbours
                    hs = h_idx + s * dh
                    ws = w_idx + s * dw
                    valid = (hs >= 0) & (hs < H) & (ws >= 0) & (ws < W)
                    val = jnp.where(valid, val, 0.0)
                taps_ref[8 * t:8 * t + 8, :] = val
                t += 1

        # ---- one MXU matmul per conv stage, bias + ReLU fused into the same pass ----
        y = jnp.dot(w_ref[...], taps_ref[...], preferred_element_type=jnp.float32)  # (8, 512)
        y = jnp.maximum(y + b_ref[...], 0.0)

        # ---- fused 2x2 max-pool on the dilated grid (result lands on stride 2*s) ----
        pad_ref[:, OFF:OFF + NHW] = y
        p00 = pad_ref[:, OFF:OFF + NHW]
        p01 = pad_ref[:, OFF + s:OFF + s + NHW]
        p10 = pad_ref[:, OFF + s * W:OFF + s * W + NHW]
        p11 = pad_ref[:, OFF + s * W + s:OFF + s * W + s + NHW]
        pooled = jnp.maximum(jnp.maximum(p00, p01), jnp.maximum(p10, p11))
        pad_ref[:, OFF:OFF + NHW] = pooled            # becomes next stage's activation

    # ---- head: gather the 8 valid pixels (final 2x2 grid lives at physical stride 8) ----
    for n in range(BATCH):
        for q in range(4):                            # q = y*2 + x  (PyTorch CHW flatten order)
            yy, xx = q >> 1, q & 1
            p = n * (H * W) + yy * 8 * W + xx * 8
            head_ref[8 * q:8 * q + 8, n:n + 1] = pad_ref[:, OFF + p:OFF + p + 1]

    h = jnp.dot(w1_ref[...], head_ref[...], preferred_element_type=jnp.float32)     # (8, N)
    h = jnp.maximum(h + b1_ref[...], 0.0)
    o_ref[...] = jnp.dot(w2_ref[...], h, preferred_element_type=jnp.float32) + b2_ref[...]


# --------------------------------------------------------------------------------------
# One-time parameter repacking (hoisted out of the per-call path).
# --------------------------------------------------------------------------------------
def prepare_params(params):
    F = NUM_FILTER

    def conv_w(w):                                    # (K, K, Cin, F) HWIO -> (F, K*K*8)
        K, _, cin, _ = w.shape
        w8 = jnp.zeros((K, K, CIN_PAD, F), jnp.float32).at[:, :, :cin, :].set(w)
        return jnp.transpose(w8, (3, 0, 1, 2)).reshape(F, K * K * CIN_PAD)

    # fc1 rows are PyTorch CHW-flatten order (c*4 + y*2 + x); repack to column = (y*2+x)*8 + c.
    w1 = jnp.transpose(params["w_fc1"].reshape(F, 2, 2, F), (3, 1, 2, 0)).reshape(F, 4 * F)

    return dict(
        w0=conv_w(params["w_in"]),  b0=params["b_in"].reshape(F, 1).astype(jnp.float32),
        wh=conv_w(params["w_hid"]), bh=params["b_hid"].reshape(F, 1).astype(jnp.float32),
        w1=w1.astype(jnp.float32),  b1=params["b_fc1"].reshape(F, 1).astype(jnp.float32),
        w2=params["w_fc2"].T.astype(jnp.float32),
        b2=params["b_fc2"].reshape(10, 1).astype(jnp.float32),
    )


def network_forward(x_nchw, prep):
    N = x_nchw.shape[0]
    assert N == BATCH and x_nchw.shape[2] == SPATIAL and x_nchw.shape[3] == SPATIAL

    # NCHW -> channel-major lane-dense (8, N*H*W); input channels padded 3 -> 8 with zeros.
    xp = jnp.zeros((N, CIN_PAD, H, W), jnp.float32).at[:, :3].set(x_nchw.astype(jnp.float32))
    x_cm = jnp.transpose(xp, (1, 0, 2, 3)).reshape(CIN_PAD, N * H * W)

    out_t = pl.pallas_call(
        _network_kernel,
        out_shape=jax.ShapeDtypeStruct((10, N), jnp.float32),
        scratch_shapes=[
            pltpu.VMEM((CIN_PAD, PADW), jnp.float32),                     # halo-padded activation
            pltpu.VMEM((KSIZE * KSIZE * CIN_PAD, NHW), jnp.float32),      # im2col tap slab
            pltpu.VMEM((4 * NUM_FILTER, N), jnp.float32),                 # flattened head input
        ],
    )(x_cm, prep["w0"], prep["b0"], prep["wh"], prep["bh"],
      prep["w1"], prep["b1"], prep["w2"], prep["b2"])
    return out_t.T                                    # (N, 10), matching PyTorch orientation


# --------------------------------------------------------------------------------------
# Pure-JAX reference (same parameter convention) for verification.
# --------------------------------------------------------------------------------------
def reference_forward(x_nchw, params):
    x = jnp.transpose(x_nchw, (0, 2, 3, 1))

    def conv_relu(x, w, b):
        y = jax.lax.conv_general_dilated(
            x, w, window_strides=(STRIDE, STRIDE),
            padding=[(PADDING, PADDING), (PADDING, PADDING)],
            dimension_numbers=("NHWC", "HWIO", "NHWC"))
        return jnp.maximum(y + b, 0.0)

    def pool(x):
        return jax.lax.reduce_window(x, -jnp.inf, jax.lax.max,
                                     (1, 2, 2, 1), (1, 2, 2, 1), "VALID")

    x = pool(conv_relu(x, params["w_in"], params["b_in"]))
    for _ in range(NUM_LAYERS):
        x = pool(conv_relu(x, params["w_hid"], params["b_hid"]))
    x = jnp.transpose(x, (0, 3, 1, 2)).reshape(x.shape[0], -1)    # PyTorch flatten (NCHW order)
    h = jnp.maximum(x @ params["w_fc1"] + params["b_fc1"], 0.0)
    return h @ params["w_fc2"] + params["b_fc2"]


if __name__ == "__main__":
    key = jax.random.PRNGKey(0)
    ks = jax.random.split(key, 9)
    F = NUM_FILTER
    params = {
        "w_in":  0.2 * jax.random.normal(ks[0], (KSIZE, KSIZE, 3, F), jnp.float32),
        "b_in":  0.1 * jax.random.normal(ks[1], (F,), jnp.float32),
        "w_hid": 0.2 * jax.random.normal(ks[2], (KSIZE, KSIZE, F, F), jnp.float32),
        "b_hid": 0.1 * jax.random.normal(ks[3], (F,), jnp.float32),
        "w_fc1": 0.2 * jax.random.normal(ks[4], (F * 4, F), jnp.float32),
        "b_fc1": 0.1 * jax.random.normal(ks[5], (F,), jnp.float32),
        "w_fc2": 0.2 * jax.random.normal(ks[6], (F, 10), jnp.float32),
        "b_fc2": 0.1 * jax.random.normal(ks[7], (10,), jnp.float32),
    }
    x = jax.random.normal(ks[8], (BATCH, 3, SPATIAL, SPATIAL), jnp.float32)  # NCHW like PyTorch

    prep = prepare_params(params)                     # one-time parameter repack (hoisted)
    out = jax.block_until_ready(network_forward(x, prep))
    assert out.shape == (BATCH, 10), out.shape

    ref = jax.block_until_ready(reference_forward(x, params))
    if not jnp.allclose(out, ref, rtol=1e-4, atol=1e-4):
        raise AssertionError(f"Pallas output mismatch: max abs err = {jnp.max(jnp.abs(out - ref))}")

    print("KERNEL_OK")
</pallas_src>

<mosaic_0001>
module attributes {stable_mosaic.version = 11 : i64} {
  func.func @_network_kernel(%arg0: memref<8x512xf32, #tpu.memory_space<vmem>>, %arg1: memref<8x72xf32, #tpu.memory_space<vmem>>, %arg2: memref<8x1xf32, #tpu.memory_space<vmem>>, %arg3: memref<8x72xf32, #tpu.memory_space<vmem>>, %arg4: memref<8x1xf32, #tpu.memory_space<vmem>>, %arg5: memref<8x32xf32, #tpu.memory_space<vmem>>, %arg6: memref<8x1xf32, #tpu.memory_space<vmem>>, %arg7: memref<10x8xf32, #tpu.memory_space<vmem>>, %arg8: memref<10x1xf32, #tpu.memory_space<vmem>>, %arg9: memref<10x2xf32, #tpu.memory_space<vmem>>, %arg10: memref<8x768xf32, #tpu.memory_space<vmem>>, %arg11: memref<72x512xf32, #tpu.memory_space<vmem>>, %arg12: memref<32x2xf32, #tpu.memory_space<vmem>>) attributes {dimension_semantics = [], scalar_prefetch = 0 : i64, scratch_operands = 3 : i64, tpu.core_type = #tpu.core_type<tc>} {
    %0 = tpu.iota {dimensions = array<i32: 1>} : vector<8x512xi32>
    %c15_i32 = arith.constant 15 : i32
    %1 = vector.broadcast %c15_i32 : i32 to vector<8x512xi32>
    %2 = arith.andi %0, %1 : vector<8x512xi32>
    %c4_i32 = arith.constant 4 : i32
    %3 = vector.broadcast %c4_i32 : i32 to vector<8x512xi32>
    %4 = arith.shrsi %0, %3 : vector<8x512xi32>
    %c15_i32_0 = arith.constant 15 : i32
    %5 = vector.broadcast %c15_i32_0 : i32 to vector<8x512xi32>
    %6 = arith.andi %4, %5 : vector<8x512xi32>
    %cst = arith.constant 0.000000e+00 : f32
    %7 = vector.broadcast %cst : f32 to vector<8x768xf32>
    %c0 = arith.constant 0 : index
    %c0_1 = arith.constant 0 : index
    %8 = vector.load %arg10[%c0, %c0_1] : memref<8x768xf32, #tpu.memory_space<vmem>>, vector<8x768xf32>
    tpu.vector_store %arg10[%c0, %c0_1], %7 {strides = array<i32>} : memref<8x768xf32, #tpu.memory_space<vmem>>, vector<8x768xf32>,
    %c0_2 = arith.constant 0 : index
    %c0_3 = arith.constant 0 : index
    %9 = vector.load %arg0[%c0_2, %c0_3] : memref<8x512xf32, #tpu.memory_space<vmem>>, vector<8x512xf32>
    %c0_4 = arith.constant 0 : index
    %c128 = arith.constant 128 : index
    %10 = vector.load %arg10[%c0_4, %c128] : memref<8x768xf32, #tpu.memory_space<vmem>>, vector<8x512xf32>
    tpu.vector_store %arg10[%c0_4, %c128], %9 {strides = array<i32>} : memref<8x768xf32, #tpu.memory_space<vmem>>, vector<8x512xf32>,
    %c0_5 = arith.constant 0 : index
    %c111 = arith.constant 111 : index
    %11 = vector.load %arg10[%c0_5, %c111] : memref<8x768xf32, #tpu.memory_space<vmem>>, vector<8x512xf32>
    %c-1_i32 = arith.constant -1 : i32
    %12 = vector.broadcast %c-1_i32 : i32 to vector<8x512xi32>
    %13 = arith.addi %6, %12 : vector<8x512xi32>
    %c-1_i32_6 = arith.constant -1 : i32
    %14 = vector.broadcast %c-1_i32_6 : i32 to vector<8x512xi32>
    %15 = arith.addi %2, %14 : vector<8x512xi32>
    %c0_i32 = arith.constant 0 : i32
    %16 = vector.broadcast %c0_i32 : i32 to vector<8x512xi32>
    %17 = arith.cmpi sge, %13, %16 : vector<8x512xi32>
    %c16_i32 = arith.constant 16 : i32
    %18 = vector.broadcast %c16_i32 : i32 to vector<8x512xi32>
    %19 = arith.cmpi slt, %13, %18 : vector<8x512xi32>
    %20 = arith.andi %17, %19 : vector<8x512xi1>
    %c0_i32_7 = arith.constant 0 : i32
    %21 = vector.broadcast %c0_i32_7 : i32 to vector<8x512xi32>
    %22 = arith.cmpi sge, %15, %21 : vector<8x512xi32>
    %23 = arith.andi %20, %22 : vector<8x512xi1>
    %c16_i32_8 = arith.constant 16 : i32
    %24 = vector.broadcast %c16_i32_8 : i32 to vector<8x512xi32>
    %25 = arith.cmpi slt, %15, %24 : vector<8x512xi32>
    %26 = arith.andi %23, %25 : vector<8x512xi1>
    %cst_9 = arith.constant 0.000000e+00 : f32
    %27 = vector.broadcast %cst_9 : f32 to vector<8x512xf32>
    %28 = arith.select %26, %11, %27 : vector<8x512xi1>, vector<8x512xf32>
    %c0_10 = arith.constant 0 : index
    %c0_11 = arith.constant 0 : index
    %29 = vector.load %arg11[%c0_10, %c0_11] : memref<72x512xf32, #tpu.memory_space<vmem>>, vector<8x512xf32>
    tpu.vector_store %arg11[%c0_10, %c0_11], %28 {strides = array<i32>} : memref<72x512xf32, #tpu.memory_space<vmem>>, vector<8x512xf32>,
    %c0_12 = arith.constant 0 : index
    %c112 = arith.constant 112 : index
    %30 = vector.load %arg10[%c0_12, %c112] : memref<8x768xf32, #tpu.memory_space<vmem>>, vector<8x512xf32>
    %c-1_i32_13 = arith.constant -1 : i32
    %31 = vector.broadcast %c-1_i32_13 : i32 to vector<8x512xi32>
    %32 = arith.addi %6, %31 : vector<8x512xi32>
    %c0_i32_14 = arith.constant 0 : i32
    %33 = vector.broadcast %c0_i32_14 : i32 to vector<8x512xi32>
    %34 = arith.addi %2, %33 : vector<8x512xi32>
    %c0_i32_15 = arith.constant 0 : i32
    %35 = vector.broadcast %c0_i32_15 : i32 to vector<8x512xi32>
    %36 = arith.cmpi sge, %32, %35 : vector<8x512xi32>
    %c16_i32_16 = arith.constant 16 : i32
    %37 = vector.broadcast %c16_i32_16 : i32 to vector<8x512xi32>
    %38 = arith.cmpi slt, %32, %37 : vector<8x512xi32>
    %39 = arith.andi %36, %38 : vector<8x512xi1>
    %c0_i32_17 = arith.constant 0 : i32
    %40 = vector.broadcast %c0_i32_17 : i32 to vector<8x512xi32>
    %41 = arith.cmpi sge, %34, %40 : vector<8x512xi32>
    %42 = arith.andi %39, %41 : vector<8x512xi1>
    %c16_i32_18 = arith.constant 16 : i32
    %43 = vector.broadcast %c16_i32_18 : i32 to vector<8x512xi32>
    %44 = arith.cmpi slt, %34, %43 : vector<8x512xi32>
    %45 = arith.andi %42, %44 : vector<8x512xi1>
    %cst_19 = arith.constant 0.000000e+00 : f32
    %46 = vector.broadcast %cst_19 : f32 to vector<8x512xf32>
    %47 = arith.select %45, %30, %46 : vector<8x512xi1>, vector<8x512xf32>
    %c8 = arith.constant 8 : index
    %c0_20 = arith.constant 0 : index
    %48 = vector.load %arg11[%c8, %c0_20] : memref<72x512xf32, #tpu.memory_space<vmem>>, vector<8x512xf32>
    tpu.vector_store %arg11[%c8, %c0_20], %47 {strides = array<i32>} : memref<72x512xf32, #tpu.memory_space<vmem>>, vector<8x512xf32>,
    %c0_21 = arith.constant 0 : index
    %c113 = arith.constant 113 : index
    %49 = vector.load %arg10[%c0_21, %c113] : memref<8x768xf32, #tpu.memory_space<vmem>>, vector<8x512xf32>
    %c-1_i32_22 = arith.constant -1 : i32
    %50 = vector.broadcast %c-1_i32_22 : i32 to vector<8x512xi32>
    %51 = arith.addi %6, %50 : vector<8x512xi32>
    %c1_i32 = arith.constant 1 : i32
    %52 = vector.broadcast %c1_i32 : i32 to vector<8x512xi32>
    %53 = arith.addi %2, %52 : vector<8x512xi32>
    %c0_i32_23 = arith.constant 0 : i32
    %54 = vector.broadcast %c0_i32_23 : i32 to vector<8x512xi32>
    %55 = arith.cmpi sge, %51, %54 : vector<8x512xi32>
    %c16_i32_24 = arith.constant 16 : i32
    %56 = vector.broadcast %c16_i32_24 : i32 to vector<8x512xi32>
    %57 = arith.cmpi slt, %51, %56 : vector<8x512xi32>
    %58 = arith.andi %55, %57 : vector<8x512xi1>
    %c0_i32_25 = arith.constant 0 : i32
    %59 = vector.broadcast %c0_i32_25 : i32 to vector<8x512xi32>
    %60 = arith.cmpi sge, %53, %59 : vector<8x512xi32>
    %61 = arith.andi %58, %60 : vector<8x512xi1>
    %c16_i32_26 = arith.constant 16 : i32
    %62 = vector.broadcast %c16_i32_26 : i32 to vector<8x512xi32>
    %63 = arith.cmpi slt, %53, %62 : vector<8x512xi32>
    %64 = arith.andi %61, %63 : vector<8x512xi1>
    %cst_27 = arith.constant 0.000000e+00 : f32
    %65 = vector.broadcast %cst_27 : f32 to vector<8x512xf32>
    %66 = arith.select %64, %49, %65 : vector<8x512xi1>, vector<8x512xf32>
    %c16 = arith.constant 16 : index
    %c0_28 = arith.constant 0 : index
    %67 = vector.load %arg11[%c16, %c0_28] : memref<72x512xf32, #tpu.memory_space<vmem>>, vector<8x512xf32>
    tpu.vector_store %arg11[%c16, %c0_28], %66 {strides = array<i32>} : memref<72x512xf32, #tpu.memory_space<vmem>>, vector<8x512xf32>,
    %c0_29 = arith.constant 0 : index
    %c127 = arith.constant 127 : index
    %68 = vector.load %arg10[%c0_29, %c127] : memref<8x768xf32, #tpu.memory_space<vmem>>, vector<8x512xf32>
    %c0_i32_30 = arith.constant 0 : i32
    %69 = vector.broadcast %c0_i32_30 : i32 to vector<8x512xi32>
    %70 = arith.addi %6, %69 : vector<8x512xi32>
    %c-1_i32_31 = arith.constant -1 : i32
    %71 = vector.broadcast %c-1_i32_31 : i32 to vector<8x512xi32>
    %72 = arith.addi %2, %71 : vector<8x512xi32>
    %c0_i32_32 = arith.constant 0 : i32
    %73 = vector.broadcast %c0_i32_32 : i32 to vector<8x512xi32>
    %74 = arith.cmpi sge, %70, %73 : vector<8x512xi32>
    %c16_i32_33 = arith.constant 16 : i32
    %75 = vector.broadcast %c16_i32_33 : i32 to vector<8x512xi32>
    %76 = arith.cmpi slt, %70, %75 : vector<8x512xi32>
    %77 = arith.andi %74, %76 : vector<8x512xi1>
    %c0_i32_34 = arith.constant 0 : i32
    %78 = vector.broadcast %c0_i32_34 : i32 to vector<8x512xi32>
    %79 = arith.cmpi sge, %72, %78 : vector<8x512xi32>
    %80 = arith.andi %77, %79 : vector<8x512xi1>
    %c16_i32_35 = arith.constant 16 : i32
    %81 = vector.broadcast %c16_i32_35 : i32 to vector<8x512xi32>
    %82 = arith.cmpi slt, %72, %81 : vector<8x512xi32>
    %83 = arith.andi %80, %82 : vector<8x512xi1>
    %cst_36 = arith.constant 0.000000e+00 : f32
    %84 = vector.broadcast %cst_36 : f32 to vector<8x512xf32>
    %85 = arith.select %83, %68, %84 : vector<8x512xi1>, vector<8x512xf32>
    %c24 = arith.constant 24 : index
    %c0_37 = arith.constant 0 : index
    %86 = vector.load %arg11[%c24, %c0_37] : memref<72x512xf32, #tpu.memory_space<vmem>>, vector<8x512xf32>
    tpu.vector_store %arg11[%c24, %c0_37], %85 {strides = array<i32>} : memref<72x512xf32, #tpu.memory_space<vmem>>, vector<8x512xf32>,
    %c0_38 = arith.constant 0 : index
    %c128_39 = arith.constant 128 : index
    %87 = vector.load %arg10[%c0_38, %c128_39] : memref<8x768xf32, #tpu.memory_space<vmem>>, vector<8x512xf32>
    %c32 = arith.constant 32 : index
    %c0_40 = arith.constant 0 : index
    %88 = vector.load %arg11[%c32, %c0_40] : memref<72x512xf32, #tpu.memory_space<vmem>>, vector<8x512xf32>
    tpu.vector_store %arg11[%c32, %c0_40], %87 {strides = array<i32>} : memref<72x512xf32, #tpu.memory_space<vmem>>, vector<8x512xf32>,
    %c0_41 = arith.constant 0 : index
    %c129 = arith.constant 129 : index
    %89 = vector.load %arg10[%c0_41, %c129] : memref<8x768xf32, #tpu.memory_space<vmem>>, vector<8x512xf32>
    %c0_i32_42 = arith.constant 0 : i32
    %90 = vector.broadcast %c0_i32_42 : i32 to vector<8x512xi32>
    %91 = arith.addi %6, %90 : vector<8x512xi32>
    %c1_i32_43 = arith.constant 1 : i32
    %92 = vector.broadcast %c1_i32_43 : i32 to vector<8x512xi32>
    %93 = arith.addi %2, %92 : vector<8x512xi32>
    %c0_i32_44 = arith.constant 0 : i32
    %94 = vector.broadcast %c0_i32_44 : i32 to vector<8x512xi32>
    %95 = arith.cmpi sge, %91, %94 : vector<8x512xi32>
    %c16_i32_45 = arith.constant 16 : i32
    %96 = vector.broadcast %c16_i32_45 : i32 to vector<8x512xi32>
    %97 = arith.cmpi slt, %91, %96 : vector<8x512xi32>
    %98 = arith.andi %95, %97 : vector<8x512xi1>
    %c0_i32_46 = arith.constant 0 : i32
    %99 = vector.broadcast %c0_i32_46 : i32 to vector<8x512xi32>
    %100 = arith.cmpi sge, %93, %99 : vector<8x512xi32>
    %101 = arith.andi %98, %100 : vector<8x512xi1>
    %c16_i32_47 = arith.constant 16 : i32
    %102 = vector.broadcast %c16_i32_47 : i32 to vector<8x512xi32>
    %103 = arith.cmpi slt, %93, %102 : vector<8x512xi32>
    %104 = arith.andi %101, %103 : vector<8x512xi1>
    %cst_48 = arith.constant 0.000000e+00 : f32
    %105 = vector.broadcast %cst_48 : f32 to vector<8x512xf32>
    %106 = arith.select %104, %89, %105 : vector<8x512xi1>, vector<8x512xf32>
    %c40 = arith.constant 40 : index
    %c0_49 = arith.constant 0 : index
    %107 = vector.load %arg11[%c40, %c0_49] : memref<72x512xf32, #tpu.memory_space<vmem>>, vector<8x512xf32>
    tpu.vector_store %arg11[%c40, %c0_49], %106 {strides = array<i32>} : memref<72x512xf32, #tpu.memory_space<vmem>>, vector<8x512xf32>,
    %c0_50 = arith.constant 0 : index
    %c143 = arith.constant 143 : index
    %108 = vector.load %arg10[%c0_50, %c143] : memref<8x768xf32, #tpu.memory_space<vmem>>, vector<8x512xf32>
    %c1_i32_51 = arith.constant 1 : i32
    %109 = vector.broadcast %c1_i32_51 : i32 to vector<8x512xi32>
    %110 = arith.addi %6, %109 : vector<8x512xi32>
    %c-1_i32_52 = arith.constant -1 : i32
    %111 = vector.broadcast %c-1_i32_52 : i32 to vector<8x512xi32>
    %112 = arith.addi %2, %111 : vector<8x512xi32>
    %c0_i32_53 = arith.constant 0 : i32
    %113 = vector.broadcast %c0_i32_53 : i32 to vector<8x512xi32>
    %114 = arith.cmpi sge, %110, %113 : vector<8x512xi32>
    %c16_i32_54 = arith.constant 16 : i32
    %115 = vector.broadcast %c16_i32_54 : i32 to vector<8x512xi32>
    %116 = arith.cmpi slt, %110, %115 : vector<8x512xi32>
    %117 = arith.andi %114, %116 : vector<8x512xi1>
    %c0_i32_55 = arith.constant 0 : i32
    %118 = vector.broadcast %c0_i32_55 : i32 to vector<8x512xi32>
    %119 = arith.cmpi sge, %112, %118 : vector<8x512xi32>
    %120 = arith.andi %117, %119 : vector<8x512xi1>
    %c16_i32_56 = arith.constant 16 : i32
    %121 = vector.broadcast %c16_i32_56 : i32 to vector<8x512xi32>
    %122 = arith.cmpi slt, %112, %121 : vector<8x512xi32>
    %123 = arith.andi %120, %122 : vector<8x512xi1>
    %cst_57 = arith.constant 0.000000e+00 : f32
    %124 = vector.broadcast %cst_57 : f32 to vector<8x512xf32>
    %125 = arith.select %123, %108, %124 : vector<8x512xi1>, vector<8x512xf32>
    %c48 = arith.constant 48 : index
    %c0_58 = arith.constant 0 : index
    %126 = vector.load %arg11[%c48, %c0_58] : memref<72x512xf32, #tpu.memory_space<vmem>>, vector<8x512xf32>
    tpu.vector_store %arg11[%c48, %c0_58], %125 {strides = array<i32>} : memref<72x512xf32, #tpu.memory_space<vmem>>, vector<8x512xf32>,
    %c0_59 = arith.constant 0 : index
    %c144 = arith.constant 144 : index
    %127 = vector.load %arg10[%c0_59, %c144] : memref<8x768xf32, #tpu.memory_space<vmem>>, vector<8x512xf32>
    %c1_i32_60 = arith.constant 1 : i32
    %128 = vector.broadcast %c1_i32_60 : i32 to vector<8x512xi32>
    %129 = arith.addi %6, %128 : vector<8x512xi32>
    %c0_i32_61 = arith.constant 0 : i32
    %130 = vector.broadcast %c0_i32_61 : i32 to vector<8x512xi32>
    %131 = arith.addi %2, %130 : vector<8x512xi32>
    %c0_i32_62 = arith.constant 0 : i32
    %132 = vector.broadcast %c0_i32_62 : i32 to vector<8x512xi32>
    %133 = arith.cmpi sge, %129, %132 : vector<8x512xi32>
    %c16_i32_63 = arith.constant 16 : i32
    %134 = vector.broadcast %c16_i32_63 : i32 to vector<8x512xi32>
    %135 = arith.cmpi slt, %129, %134 : vector<8x512xi32>
    %136 = arith.andi %133, %135 : vector<8x512xi1>
    %c0_i32_64 = arith.constant 0 : i32
    %137 = vector.broadcast %c0_i32_64 : i32 to vector<8x512xi32>
    %138 = arith.cmpi sge, %131, %137 : vector<8x512xi32>
    %139 = arith.andi %136, %138 : vector<8x512xi1>
    %c16_i32_65 = arith.constant 16 : i32
    %140 = vector.broadcast %c16_i32_65 : i32 to vector<8x512xi32>
    %141 = arith.cmpi slt, %131, %140 : vector<8x512xi32>
    %142 = arith.andi %139, %141 : vector<8x512xi1>
    %cst_66 = arith.constant 0.000000e+00 : f32
    %143 = vector.broadcast %cst_66 : f32 to vector<8x512xf32>
    %144 = arith.select %142, %127, %143 : vector<8x512xi1>, vector<8x512xf32>
    %c56 = arith.constant 56 : index
    %c0_67 = arith.constant 0 : index
    %145 = vector.load %arg11[%c56, %c0_67] : memref<72x512xf32, #tpu.memory_space<vmem>>, vector<8x512xf32>
    tpu.vector_store %arg11[%c56, %c0_67], %144 {strides = array<i32>} : memref<72x512xf32, #tpu.memory_space<vmem>>, vector<8x512xf32>,
    %c0_68 = arith.constant 0 : index
    %c145 = arith.constant 145 : index
    %146 = vector.load %arg10[%c0_68, %c145] : memref<8x768xf32, #tpu.memory_space<vmem>>, vector<8x512xf32>
    %c1_i32_69 = arith.constant 1 : i32
    %147 = vector.broadcast %c1_i32_69 : i32 to vector<8x512xi32>
    %148 = arith.addi %6, %147 : vector<8x512xi32>
    %c1_i32_70 = arith.constant 1 : i32
    %149 = vector.broadcast %c1_i32_70 : i32 to vector<8x512xi32>
    %150 = arith.addi %2, %149 : vector<8x512xi32>
    %c0_i32_71 = arith.constant 0 : i32
    %151 = vector.broadcast %c0_i32_71 : i32 to vector<8x512xi32>
    %152 = arith.cmpi sge, %148, %151 : vector<8x512xi32>
    %c16_i32_72 = arith.constant 16 : i32
    %153 = vector.broadcast %c16_i32_72 : i32 to vector<8x512xi32>
    %154 = arith.cmpi slt, %148, %153 : vector<8x512xi32>
    %155 = arith.andi %152, %154 : vector<8x512xi1>
    %c0_i32_73 = arith.constant 0 : i32
    %156 = vector.broadcast %c0_i32_73 : i32 to vector<8x512xi32>
    %157 = arith.cmpi sge, %150, %156 : vector<8x512xi32>
    %158 = arith.andi %155, %157 : vector<8x512xi1>
    %c16_i32_74 = arith.constant 16 : i32
    %159 = vector.broadcast %c16_i32_74 : i32 to vector<8x512xi32>
    %160 = arith.cmpi slt, %150, %159 : vector<8x512xi32>
    %161 = arith.andi %158, %160 : vector<8x512xi1>
    %cst_75 = arith.constant 0.000000e+00 : f32
    %162 = vector.broadcast %cst_75 : f32 to vector<8x512xf32>
    %163 = arith.select %161, %146, %162 : vector<8x512xi1>, vector<8x512xf32>
    %c64 = arith.constant 64 : index
    %c0_76 = arith.constant 0 : index
    %164 = vector.load %arg11[%c64, %c0_76] : memref<72x512xf32, #tpu.memory_space<vmem>>, vector<8x512xf32>
    tpu.vector_store %arg11[%c64, %c0_76], %163 {strides = array<i32>} : memref<72x512xf32, #tpu.memory_space<vmem>>, vector<8x512xf32>,
    %c0_77 = arith.constant 0 : index
    %c0_78 = arith.constant 0 : index
    %165 = vector.load %arg1[%c0_77, %c0_78] : memref<8x72xf32, #tpu.memory_space<vmem>>, vector<8x72xf32>
    %c0_79 = arith.constant 0 : index
    %c0_80 = arith.constant 0 : index
    %166 = vector.load %arg11[%c0_79, %c0_80] : memref<72x512xf32, #tpu.memory_space<vmem>>, vector<72x512xf32>
    %cst_81 = arith.constant dense<0.000000e+00> : vector<8x512xf32>
    %167 = tpu.matmul %165, %166, %cst_81 {dimension_numbers = #tpu.dot_dimension_numbers<[1], [0], [0], [1], [0, 0, 1, 1], [], []>} : vector<8x72xf32>, vector<72x512xf32>, vector<8x512xf32> -> vector<8x512xf32>
    %c0_82 = arith.constant 0 : index
    %c0_83 = arith.constant 0 : index
    %168 = vector.load %arg2[%c0_82, %c0_83] : memref<8x1xf32, #tpu.memory_space<vmem>>, vector<8x1xf32>
    %169 = vector.broadcast %168 : vector<8x1xf32> to vector<8x512xf32>
    %170 = arith.addf %167, %169 : vector<8x512xf32>
    %cst_84 = arith.constant 0.000000e+00 : f32
    %171 = vector.broadcast %cst_84 : f32 to vector<8x512xf32>
    %172 = arith.maximumf %170, %171 : vector<8x512xf32>
    %c0_85 = arith.constant 0 : index
    %c128_86 = arith.constant 128 : index
    %173 = vector.load %arg10[%c0_85, %c128_86] : memref<8x768xf32, #tpu.memory_space<vmem>>, vector<8x512xf32>
    tpu.vector_store %arg10[%c0_85, %c128_86], %172 {strides = array<i32>} : memref<8x768xf32, #tpu.memory_space<vmem>>, vector<8x512xf32>,
    %c0_87 = arith.constant 0 : index
    %c128_88 = arith.constant 128 : index
    %174 = vector.load %arg10[%c0_87, %c128_88] : memref<8x768xf32, #tpu.memory_space<vmem>>, vector<8x512xf32>
    %c0_89 = arith.constant 0 : index
    %c129_90 = arith.constant 129 : index
    %175 = vector.load %arg10[%c0_89, %c129_90] : memref<8x768xf32, #tpu.memory_space<vmem>>, vector<8x512xf32>
    %c0_91 = arith.constant 0 : index
    %c144_92 = arith.constant 144 : index
    %176 = vector.load %arg10[%c0_91, %c144_92] : memref<8x768xf32, #tpu.memory_space<vmem>>, vector<8x512xf32>
    %c0_93 = arith.constant 0 : index
    %c145_94 = arith.constant 145 : index
    %177 = vector.load %arg10[%c0_93, %c145_94] : memref<8x768xf32, #tpu.memory_space<vmem>>, vector<8x512xf32>
    %178 = arith.maximumf %174, %175 : vector<8x512xf32>
    %179 = arith.maximumf %176, %177 : vector<8x512xf32>
    %180 = arith.maximumf %178, %179 : vector<8x512xf32>
    %c0_95 = arith.constant 0 : index
    %c128_96 = arith.constant 128 : index
    %181 = vector.load %arg10[%c0_95, %c128_96] : memref<8x768xf32, #tpu.memory_space<vmem>>, vector<8x512xf32>
    tpu.vector_store %arg10[%c0_95, %c128_96], %180 {strides = array<i32>} : memref<8x768xf32, #tpu.memory_space<vmem>>, vector<8x512xf32>,
    %c0_97 = arith.constant 0 : index
    %c94 = arith.constant 94 : index
    %182 = vector.load %arg10[%c0_97, %c94] : memref<8x768xf32, #tpu.memory_space<vmem>>, vector<8x512xf32>
    %c-2_i32 = arith.constant -2 : i32
    %183 = vector.broadcast %c-2_i32 : i32 to vector<8x512xi32>
    %184 = arith.addi %6, %183 : vector<8x512xi32>
    %c-2_i32_98 = arith.constant -2 : i32
    %185 = vector.broadcast %c-2_i32_98 : i32 to vector<8x512xi32>
    %186 = arith.addi %2, %185 : vector<8x512xi32>
    %c0_i32_99 = arith.constant 0 : i32
    %187 = vector.broadcast %c0_i32_99 : i32 to vector<8x512xi32>
    %188 = arith.cmpi sge, %184, %187 : vector<8x512xi32>
    %c16_i32_100 = arith.constant 16 : i32
    %189 = vector.broadcast %c16_i32_100 : i32 to vector<8x512xi32>
    %190 = arith.cmpi slt, %184, %189 : vector<8x512xi32>
    %191 = arith.andi %188, %190 : vector<8x512xi1>
    %c0_i32_101 = arith.constant 0 : i32
    %192 = vector.broadcast %c0_i32_101 : i32 to vector<8x512xi32>
    %193 = arith.cmpi sge, %186, %192 : vector<8x512xi32>
    %194 = arith.andi %191, %193 : vector<8x512xi1>
    %c16_i32_102 = arith.constant 16 : i32
    %195 = vector.broadcast %c16_i32_102 : i32 to vector<8x512xi32>
    %196 = arith.cmpi slt, %186, %195 : vector<8x512xi32>
    %197 = arith.andi %194, %196 : vector<8x512xi1>
    %cst_103 = arith.constant 0.000000e+00 : f32
    %198 = vector.broadcast %cst_103 : f32 to vector<8x512xf32>
    %199 = arith.select %197, %182, %198 : vector<8x512xi1>, vector<8x512xf32>
    %c0_104 = arith.constant 0 : index
    %c0_105 = arith.constant 0 : index
    %200 = vector.load %arg11[%c0_104, %c0_105] : memref<72x512xf32, #tpu.memory_space<vmem>>, vector<8x512xf32>
    tpu.vector_store %arg11[%c0_104, %c0_105], %199 {strides = array<i32>} : memref<72x512xf32, #tpu.memory_space<vmem>>, vector<8x512xf32>,
    %c0_106 = arith.constant 0 : index
    %c96 = arith.constant 96 : index
    %201 = vector.load %arg10[%c0_106, %c96] : memref<8x768xf32, #tpu.memory_space<vmem>>, vector<8x512xf32>
    %c-2_i32_107 = arith.constant -2 : i32
    %202 = vector.broadcast %c-2_i32_107 : i32 to vector<8x512xi32>
    %203 = arith.addi %6, %202 : vector<8x512xi32>
    %c0_i32_108 = arith.constant 0 : i32
    %204 = vector.broadcast %c0_i32_108 : i32 to vector<8x512xi32>
    %205 = arith.addi %2, %204 : vector<8x512xi32>
    %c0_i32_109 = arith.constant 0 : i32
    %206 = vector.broadcast %c0_i32_109 : i32 to vector<8x512xi32>
    %207 = arith.cmpi sge, %203, %206 : vector<8x512xi32>
    %c16_i32_110 = arith.constant 16 : i32
    %208 = vector.broadcast %c16_i32_110 : i32 to vector<8x512xi32>
    %209 = arith.cmpi slt, %203, %208 : vector<8x512xi32>
    %210 = arith.andi %207, %209 : vector<8x512xi1>
    %c0_i32_111 = arith.constant 0 : i32
    %211 = vector.broadcast %c0_i32_111 : i32 to vector<8x512xi32>
    %212 = arith.cmpi sge, %205, %211 : vector<8x512xi32>
    %213 = arith.andi %210, %212 : vector<8x512xi1>
    %c16_i32_112 = arith.constant 16 : i32
    %214 = vector.broadcast %c16_i32_112 : i32 to vector<8x512xi32>
    %215 = arith.cmpi slt, %205, %214 : vector<8x512xi32>
    %216 = arith.andi %213, %215 : vector<8x512xi1>
    %cst_113 = arith.constant 0.000000e+00 : f32
    %217 = vector.broadcast %cst_113 : f32 to vector<8x512xf32>
    %218 = arith.select %216, %201, %217 : vector<8x512xi1>, vector<8x512xf32>
    %c8_114 = arith.constant 8 : index
    %c0_115 = arith.constant 0 : index
    %219 = vector.load %arg11[%c8_114, %c0_115] : memref<72x512xf32, #tpu.memory_space<vmem>>, vector<8x512xf32>
    tpu.vector_store %arg11[%c8_114, %c0_115], %218 {strides = array<i32>} : memref<72x512xf32, #tpu.memory_space<vmem>>, vector<8x512xf32>,
    %c0_116 = arith.constant 0 : index
    %c98 = arith.constant 98 : index
    %220 = vector.load %arg10[%c0_116, %c98] : memref<8x768xf32, #tpu.memory_space<vmem>>, vector<8x512xf32>
    %c-2_i32_117 = arith.constant -2 : i32
    %221 = vector.broadcast %c-2_i32_117 : i32 to vector<8x512xi32>
    %222 = arith.addi %6, %221 : vector<8x512xi32>
    %c2_i32 = arith.constant 2 : i32
    %223 = vector.broadcast %c2_i32 : i32 to vector<8x512xi32>
    %224 = arith.addi %2, %223 : vector<8x512xi32>
    %c0_i32_118 = arith.constant 0 : i32
    %225 = vector.broadcast %c0_i32_118 : i32 to vector<8x512xi32>
    %226 = arith.cmpi sge, %222, %225 : vector<8x512xi32>
    %c16_i32_119 = arith.constant 16 : i32
    %227 = vector.broadcast %c16_i32_119 : i32 to vector<8x512xi32>
    %228 = arith.cmpi slt, %222, %227 : vector<8x512xi32>
    %229 = arith.andi %226, %228 : vector<8x512xi1>
    %c0_i32_120 = arith.constant 0 : i32
    %230 = vector.broadcast %c0_i32_120 : i32 to vector<8x512xi32>
    %231 = arith.cmpi sge, %224, %230 : vector<8x512xi32>
    %232 = arith.andi %229, %231 : vector<8x512xi1>
    %c16_i32_121 = arith.constant 16 : i32
    %233 = vector.broadcast %c16_i32_121 : i32 to vector<8x512xi32>
    %234 = arith.cmpi slt, %224, %233 : vector<8x512xi32>
    %235 = arith.andi %232, %234 : vector<8x512xi1>
    %cst_122 = arith.constant 0.000000e+00 : f32
    %236 = vector.broadcast %cst_122 : f32 to vector<8x512xf32>
    %237 = arith.select %235, %220, %236 : vector<8x512xi1>, vector<8x512xf32>
    %c16_123 = arith.constant 16 : index
    %c0_124 = arith.constant 0 : index
    %238 = vector.load %arg11[%c16_123, %c0_124] : memref<72x512xf32, #tpu.memory_space<vmem>>, vector<8x512xf32>
    tpu.vector_store %arg11[%c16_123, %c0_124], %237 {strides = array<i32>} : memref<72x512xf32, #tpu.memory_space<vmem>>, vector<8x512xf32>,
    %c0_125 = arith.constant 0 : index
    %c126 = arith.constant 126 : index
    %239 = vector.load %arg10[%c0_125, %c126] : memref<8x768xf32, #tpu.memory_space<vmem>>, vector<8x512xf32>
    %c0_i32_126 = arith.constant 0 : i32
    %240 = vector.broadcast %c0_i32_126 : i32 to vector<8x512xi32>
    %241 = arith.addi %6, %240 : vector<8x512xi32>
    %c-2_i32_127 = arith.constant -2 : i32
    %242 = vector.broadcast %c-2_i32_127 : i32 to vector<8x512xi32>
    %243 = arith.addi %2, %242 : vector<8x512xi32>
    %c0_i32_128 = arith.constant 0 : i32
    %244 = vector.broadcast %c0_i32_128 : i32 to vector<8x512xi32>
    %245 = arith.cmpi sge, %241, %244 : vector<8x512xi32>
    %c16_i32_129 = arith.constant 16 : i32
    %246 = vector.broadcast %c16_i32_129 : i32 to vector<8x512xi32>
    %247 = arith.cmpi slt, %241, %246 : vector<8x512xi32>
    %248 = arith.andi %245, %247 : vector<8x512xi1>
    %c0_i32_130 = arith.constant 0 : i32
    %249 = vector.broadcast %c0_i32_130 : i32 to vector<8x512xi32>
    %250 = arith.cmpi sge, %243, %249 : vector<8x512xi32>
    %251 = arith.andi %248, %250 : vector<8x512xi1>
    %c16_i32_131 = arith.constant 16 : i32
    %252 = vector.broadcast %c16_i32_131 : i32 to vector<8x512xi32>
    %253 = arith.cmpi slt, %243, %252 : vector<8x512xi32>
    %254 = arith.andi %251, %253 : vector<8x512xi1>
    %cst_132 = arith.constant 0.000000e+00 : f32
    %255 = vector.broadcast %cst_132 : f32 to vector<8x512xf32>
    %256 = arith.select %254, %239, %255 : vector<8x512xi1>, vector<8x512xf32>
    %c24_133 = arith.constant 24 : index
    %c0_134 = arith.constant 0 : index
    %257 = vector.load %arg11[%c24_133, %c0_134] : memref<72x512xf32, #tpu.memory_space<vmem>>, vector<8x512xf32>
    tpu.vector_store %arg11[%c24_133, %c0_134], %256 {strides = array<i32>} : memref<72x512xf32, #tpu.memory_space<vmem>>, vector<8x512xf32>,
    %c0_135 = arith.constant 0 : index
    %c128_136 = arith.constant 128 : index
    %258 = vector.load %arg10[%c0_135, %c128_136] : memref<8x768xf32, #tpu.memory_space<vmem>>, vector<8x512xf32>
    %c32_137 = arith.constant 32 : index
    %c0_138 = arith.constant 0 : index
    %259 = vector.load %arg11[%c32_137, %c0_138] : memref<72x512xf32, #tpu.memory_space<vmem>>, vector<8x512xf32>
    tpu.vector_store %arg11[%c32_137, %c0_138], %258 {strides = array<i32>} : memref<72x512xf32, #tpu.memory_space<vmem>>, vector<8x512xf32>,
    %c0_139 = arith.constant 0 : index
    %c130 = arith.constant 130 : index
    %260 = vector.load %arg10[%c0_139, %c130] : memref<8x768xf32, #tpu.memory_space<vmem>>, vector<8x512xf32>
    %c0_i32_140 = arith.constant 0 : i32
    %261 = vector.broadcast %c0_i32_140 : i32 to vector<8x512xi32>
    %262 = arith.addi %6, %261 : vector<8x512xi32>
    %c2_i32_141 = arith.constant 2 : i32
    %263 = vector.broadcast %c2_i32_141 : i32 to vector<8x512xi32>
    %264 = arith.addi %2, %263 : vector<8x512xi32>
    %c0_i32_142 = arith.constant 0 : i32
    %265 = vector.broadcast %c0_i32_142 : i32 to vector<8x512xi32>
    %266 = arith.cmpi sge, %262, %265 : vector<8x512xi32>
    %c16_i32_143 = arith.constant 16 : i32
    %267 = vector.broadcast %c16_i32_143 : i32 to vector<8x512xi32>
    %268 = arith.cmpi slt, %262, %267 : vector<8x512xi32>
    %269 = arith.andi %266, %268 : vector<8x512xi1>
    %c0_i32_144 = arith.constant 0 : i32
    %270 = vector.broadcast %c0_i32_144 : i32 to vector<8x512xi32>
    %271 = arith.cmpi sge, %264, %270 : vector<8x512xi32>
    %272 = arith.andi %269, %271 : vector<8x512xi1>
    %c16_i32_145 = arith.constant 16 : i32
    %273 = vector.broadcast %c16_i32_145 : i32 to vector<8x512xi32>
    %274 = arith.cmpi slt, %264, %273 : vector<8x512xi32>
    %275 = arith.andi %272, %274 : vector<8x512xi1>
    %cst_146 = arith.constant 0.000000e+00 : f32
    %276 = vector.broadcast %cst_146 : f32 to vector<8x512xf32>
    %277 = arith.select %275, %260, %276 : vector<8x512xi1>, vector<8x512xf32>
    %c40_147 = arith.constant 40 : index
    %c0_148 = arith.constant 0 : index
    %278 = vector.load %arg11[%c40_147, %c0_148] : memref<72x512xf32, #tpu.memory_space<vmem>>, vector<8x512xf32>
    tpu.vector_store %arg11[%c40_147, %c0_148], %277 {strides = array<i32>} : memref<72x512xf32, #tpu.memory_space<vmem>>, vector<8x512xf32>,
    %c0_149 = arith.constant 0 : index
    %c158 = arith.constant 158 : index
    %279 = vector.load %arg10[%c0_149, %c158] : memref<8x768xf32, #tpu.memory_space<vmem>>, vector<8x512xf32>
    %c2_i32_150 = arith.constant 2 : i32
    %280 = vector.broadcast %c2_i32_150 : i32 to vector<8x512xi32>
    %281 = arith.addi %6, %280 : vector<8x512xi32>
    %c-2_i32_151 = arith.constant -2 : i32
    %282 = vector.broadcast %c-2_i32_151 : i32 to vector<8x512xi32>
    %283 = arith.addi %2, %282 : vector<8x512xi32>
    %c0_i32_152 = arith.constant 0 : i32
    %284 = vector.broadcast %c0_i32_152 : i32 to vector<8x512xi32>
    %285 = arith.cmpi sge, %281, %284 : vector<8x512xi32>
    %c16_i32_153 = arith.constant 16 : i32
    %286 = vector.broadcast %c16_i32_153 : i32 to vector<8x512xi32>
    %287 = arith.cmpi slt, %281, %286 : vector<8x512xi32>
    %288 = arith.andi %285, %287 : vector<8x512xi1>
    %c0_i32_154 = arith.constant 0 : i32
    %289 = vector.broadcast %c0_i32_154 : i32 to vector<8x512xi32>
    %290 = arith.cmpi sge, %283, %289 : vector<8x512xi32>
    %291 = arith.andi %288, %290 : vector<8x512xi1>
    %c16_i32_155 = arith.constant 16 : i32
    %292 = vector.broadcast %c16_i32_155 : i32 to vector<8x512xi32>
    %293 = arith.cmpi slt, %283, %292 : vector<8x512xi32>
    %294 = arith.andi %291, %293 : vector<8x512xi1>
    %cst_156 = arith.constant 0.000000e+00 : f32
    %295 = vector.broadcast %cst_156 : f32 to vector<8x512xf32>
    %296 = arith.select %294, %279, %295 : vector<8x512xi1>, vector<8x512xf32>
    %c48_157 = arith.constant 48 : index
    %c0_158 = arith.constant 0 : index
    %297 = vector.load %arg11[%c48_157, %c0_158] : memref<72x512xf32, #tpu.memory_space<vmem>>, vector<8x512xf32>
    tpu.vector_store %arg11[%c48_157, %c0_158], %296 {strides = array<i32>} : memref<72x512xf32, #tpu.memory_space<vmem>>, vector<8x512xf32>,
    %c0_159 = arith.constant 0 : index
    %c160 = arith.constant 160 : index
    %298 = vector.load %arg10[%c0_159, %c160] : memref<8x768xf32, #tpu.memory_space<vmem>>, vector<8x512xf32>
    %c2_i32_160 = arith.constant 2 : i32
    %299 = vector.broadcast %c2_i32_160 : i32 to vector<8x512xi32>
    %300 = arith.addi %6, %299 : vector<8x512xi32>
    %c0_i32_161 = arith.constant 0 : i32
    %301 = vector.broadcast %c0_i32_161 : i32 to vector<8x512xi32>
    %302 = arith.addi %2, %301 : vector<8x512xi32>
    %c0_i32_162 = arith.constant 0 : i32
    %303 = vector.broadcast %c0_i32_162 : i32 to vector<8x512xi32>
    %304 = arith.cmpi sge, %300, %303 : vector<8x512xi32>
    %c16_i32_163 = arith.constant 16 : i32
    %305 = vector.broadcast %c16_i32_163 : i32 to vector<8x512xi32>
    %306 = arith.cmpi slt, %300, %305 : vector<8x512xi32>
    %307 = arith.andi %304, %306 : vector<8x512xi1>
    %c0_i32_164 = arith.constant 0 : i32
    %308 = vector.broadcast %c0_i32_164 : i32 to vector<8x512xi32>
    %309 = arith.cmpi sge, %302, %308 : vector<8x512xi32>
    %310 = arith.andi %307, %309 : vector<8x512xi1>
    %c16_i32_165 = arith.constant 16 : i32
    %311 = vector.broadcast %c16_i32_165 : i32 to vector<8x512xi32>
    %312 = arith.cmpi slt, %302, %311 : vector<8x512xi32>
    %313 = arith.andi %310, %312 : vector<8x512xi1>
    %cst_166 = arith.constant 0.000000e+00 : f32
    %314 = vector.broadcast %cst_166 : f32 to vector<8x512xf32>
    %315 = arith.select %313, %298, %314 : vector<8x512xi1>, vector<8x512xf32>
    %c56_167 = arith.constant 56 : index
    %c0_168 = arith.constant 0 : index
    %316 = vector.load %arg11[%c56_167, %c0_168] : memref<72x512xf32, #tpu.memory_space<vmem>>, vector<8x512xf32>
    tpu.vector_store %arg11[%c56_167, %c0_168], %315 {strides = array<i32>} : memref<72x512xf32, #tpu.memory_space<vmem>>, vector<8x512xf32>,
    %c0_169 = arith.constant 0 : index
    %c162 = arith.constant 162 : index
    %317 = vector.load %arg10[%c0_169, %c162] : memref<8x768xf32, #tpu.memory_space<vmem>>, vector<8x512xf32>
    %c2_i32_170 = arith.constant 2 : i32
    %318 = vector.broadcast %c2_i32_170 : i32 to vector<8x512xi32>
    %319 = arith.addi %6, %318 : vector<8x512xi32>
    %c2_i32_171 = arith.constant 2 : i32
    %320 = vector.broadcast %c2_i32_171 : i32 to vector<8x512xi32>
    %321 = arith.addi %2, %320 : vector<8x512xi32>
    %c0_i32_172 = arith.constant 0 : i32
    %322 = vector.broadcast %c0_i32_172 : i32 to vector<8x512xi32>
    %323 = arith.cmpi sge, %319, %322 : vector<8x512xi32>
    %c16_i32_173 = arith.constant 16 : i32
    %324 = vector.broadcast %c16_i32_173 : i32 to vector<8x512xi32>
    %325 = arith.cmpi slt, %319, %324 : vector<8x512xi32>
    %326 = arith.andi %323, %325 : vector<8x512xi1>
    %c0_i32_174 = arith.constant 0 : i32
    %327 = vector.broadcast %c0_i32_174 : i32 to vector<8x512xi32>
    %328 = arith.cmpi sge, %321, %327 : vector<8x512xi32>
    %329 = arith.andi %326, %328 : vector<8x512xi1>
    %c16_i32_175 = arith.constant 16 : i32
    %330 = vector.broadcast %c16_i32_175 : i32 to vector<8x512xi32>
    %331 = arith.cmpi slt, %321, %330 : vector<8x512xi32>
    %332 = arith.andi %329, %331 : vector<8x512xi1>
    %cst_176 = arith.constant 0.000000e+00 : f32
    %333 = vector.broadcast %cst_176 : f32 to vector<8x512xf32>
    %334 = arith.select %332, %317, %333 : vector<8x512xi1>, vector<8x512xf32>
    %c64_177 = arith.constant 64 : index
    %c0_178 = arith.constant 0 : index
    %335 = vector.load %arg11[%c64_177, %c0_178] : memref<72x512xf32, #tpu.memory_space<vmem>>, vector<8x512xf32>
    tpu.vector_store %arg11[%c64_177, %c0_178], %334 {strides = array<i32>} : memref<72x512xf32, #tpu.memory_space<vmem>>, vector<8x512xf32>,
    %c0_179 = arith.constant 0 : index
    %c0_180 = arith.constant 0 : index
    %336 = vector.load %arg3[%c0_179, %c0_180] : memref<8x72xf32, #tpu.memory_space<vmem>>, vector<8x72xf32>
    %c0_181 = arith.constant 0 : index
    %c0_182 = arith.constant 0 : index
    %337 = vector.load %arg11[%c0_181, %c0_182] : memref<72x512xf32, #tpu.memory_space<vmem>>, vector<72x512xf32>
    %cst_183 = arith.constant dense<0.000000e+00> : vector<8x512xf32>
    %338 = tpu.matmul %336, %337, %cst_183 {dimension_numbers = #tpu.dot_dimension_numbers<[1], [0], [0], [1], [0, 0, 1, 1], [], []>} : vector<8x72xf32>, vector<72x512xf32>, vector<8x512xf32> -> vector<8x512xf32>
    %c0_184 = arith.constant 0 : index
    %c0_185 = arith.constant 0 : index
    %339 = vector.load %arg4[%c0_184, %c0_185] : memref<8x1xf32, #tpu.memory_space<vmem>>, vector<8x1xf32>
    %340 = vector.broadcast %339 : vector<8x1xf32> to vector<8x512xf32>
    %341 = arith.addf %338, %340 : vector<8x512xf32>
    %cst_186 = arith.constant 0.000000e+00 : f32
    %342 = vector.broadcast %cst_186 : f32 to vector<8x512xf32>
    %343 = arith.maximumf %341, %342 : vector<8x512xf32>
    %c0_187 = arith.constant 0 : index
    %c128_188 = arith.constant 128 : index
    %344 = vector.load %arg10[%c0_187, %c128_188] : memref<8x768xf32, #tpu.memory_space<vmem>>, vector<8x512xf32>
    tpu.vector_store %arg10[%c0_187, %c128_188], %343 {strides = array<i32>} : memref<8x768xf32, #tpu.memory_space<vmem>>, vector<8x512xf32>,
    %c0_189 = arith.constant 0 : index
    %c128_190 = arith.constant 128 : index
    %345 = vector.load %arg10[%c0_189, %c128_190] : memref<8x768xf32, #tpu.memory_space<vmem>>, vector<8x512xf32>
    %c0_191 = arith.constant 0 : index
    %c130_192 = arith.constant 130 : index
    %346 = vector.load %arg10[%c0_191, %c130_192] : memref<8x768xf32, #tpu.memory_space<vmem>>, vector<8x512xf32>
    %c0_193 = arith.constant 0 : index
    %c160_194 = arith.constant 160 : index
    %347 = vector.load %arg10[%c0_193, %c160_194] : memref<8x768xf32, #tpu.memory_space<vmem>>, vector<8x512xf32>
    %c0_195 = arith.constant 0 : index
    %c162_196 = arith.constant 162 : index
    %348 = vector.load %arg10[%c0_195, %c162_196] : memref<8x768xf32, #tpu.memory_space<vmem>>, vector<8x512xf32>
    %349 = arith.maximumf %345, %346 : vector<8x512xf32>
    %350 = arith.maximumf %347, %348 : vector<8x512xf32>
    %351 = arith.maximumf %349, %350 : vector<8x512xf32>
    %c0_197 = arith.constant 0 : index
    %c128_198 = arith.constant 128 : index
    %352 = vector.load %arg10[%c0_197, %c128_198] : memref<8x768xf32, #tpu.memory_space<vmem>>, vector<8x512xf32>
    tpu.vector_store %arg10[%c0_197, %c128_198], %351 {strides = array<i32>} : memref<8x768xf32, #tpu.memory_space<vmem>>, vector<8x512xf32>,
    %c0_199 = arith.constant 0 : index
    %c60 = arith.constant 60 : index
    %353 = vector.load %arg10[%c0_199, %c60] : memref<8x768xf32, #tpu.memory_space<vmem>>, vector<8x512xf32>
    %c-4_i32 = arith.constant -4 : i32
    %354 = vector.broadcast %c-4_i32 : i32 to vector<8x512xi32>
    %355 = arith.addi %6, %354 : vector<8x512xi32>
    %c-4_i32_200 = arith.constant -4 : i32
    %356 = vector.broadcast %c-4_i32_200 : i32 to vector<8x512xi32>
    %357 = arith.addi %2, %356 : vector<8x512xi32>
    %c0_i32_201 = arith.constant 0 : i32
    %358 = vector.broadcast %c0_i32_201 : i32 to vector<8x512xi32>
    %359 = arith.cmpi sge, %355, %358 : vector<8x512xi32>
    %c16_i32_202 = arith.constant 16 : i32
    %360 = vector.broadcast %c16_i32_202 : i32 to vector<8x512xi32>
    %361 = arith.cmpi slt, %355, %360 : vector<8x512xi32>
    %362 = arith.andi %359, %361 : vector<8x512xi1>
    %c0_i32_203 = arith.constant 0 : i32
    %363 = vector.broadcast %c0_i32_203 : i32 to vector<8x512xi32>
    %364 = arith.cmpi sge, %357, %363 : vector<8x512xi32>
    %365 = arith.andi %362, %364 : vector<8x512xi1>
    %c16_i32_204 = arith.constant 16 : i32
    %366 = vector.broadcast %c16_i32_204 : i32 to vector<8x512xi32>
    %367 = arith.cmpi slt, %357, %366 : vector<8x512xi32>
    %368 = arith.andi %365, %367 : vector<8x512xi1>
    %cst_205 = arith.constant 0.000000e+00 : f32
    %369 = vector.broadcast %cst_205 : f32 to vector<8x512xf32>
    %370 = arith.select %368, %353, %369 : vector<8x512xi1>, vector<8x512xf32>
    %c0_206 = arith.constant 0 : index
    %c0_207 = arith.constant 0 : index
    %371 = vector.load %arg11[%c0_206, %c0_207] : memref<72x512xf32, #tpu.memory_space<vmem>>, vector<8x512xf32>
    tpu.vector_store %arg11[%c0_206, %c0_207], %370 {strides = array<i32>} : memref<72x512xf32, #tpu.memory_space<vmem>>, vector<8x512xf32>,
    %c0_208 = arith.constant 0 : index
    %c64_209 = arith.constant 64 : index
    %372 = vector.load %arg10[%c0_208, %c64_209] : memref<8x768xf32, #tpu.memory_space<vmem>>, vector<8x512xf32>
    %c-4_i32_210 = arith.constant -4 : i32
    %373 = vector.broadcast %c-4_i32_210 : i32 to vector<8x512xi32>
    %374 = arith.addi %6, %373 : vector<8x512xi32>
    %c0_i32_211 = arith.constant 0 : i32
    %375 = vector.broadcast %c0_i32_211 : i32 to vector<8x512xi32>
    %376 = arith.addi %2, %375 : vector<8x512xi32>
    %c0_i32_212 = arith.constant 0 : i32
    %377 = vector.broadcast %c0_i32_212 : i32 to vector<8x512xi32>
    %378 = arith.cmpi sge, %374, %377 : vector<8x512xi32>
    %c16_i32_213 = arith.constant 16 : i32
    %379 = vector.broadcast %c16_i32_213 : i32 to vector<8x512xi32>
    %380 = arith.cmpi slt, %374, %379 : vector<8x512xi32>
    %381 = arith.andi %378, %380 : vector<8x512xi1>
    %c0_i32_214 = arith.constant 0 : i32
    %382 = vector.broadcast %c0_i32_214 : i32 to vector<8x512xi32>
    %383 = arith.cmpi sge, %376, %382 : vector<8x512xi32>
    %384 = arith.andi %381, %383 : vector<8x512xi1>
    %c16_i32_215 = arith.constant 16 : i32
    %385 = vector.broadcast %c16_i32_215 : i32 to vector<8x512xi32>
    %386 = arith.cmpi slt, %376, %385 : vector<8x512xi32>
    %387 = arith.andi %384, %386 : vector<8x512xi1>
    %cst_216 = arith.constant 0.000000e+00 : f32
    %388 = vector.broadcast %cst_216 : f32 to vector<8x512xf32>
    %389 = arith.select %387, %372, %388 : vector<8x512xi1>, vector<8x512xf32>
    %c8_217 = arith.constant 8 : index
    %c0_218 = arith.constant 0 : index
    %390 = vector.load %arg11[%c8_217, %c0_218] : memref<72x512xf32, #tpu.memory_space<vmem>>, vector<8x512xf32>
    tpu.vector_store %arg11[%c8_217, %c0_218], %389 {strides = array<i32>} : memref<72x512xf32, #tpu.memory_space<vmem>>, vector<8x512xf32>,
    %c0_219 = arith.constant 0 : index
    %c68 = arith.constant 68 : index
    %391 = vector.load %arg10[%c0_219, %c68] : memref<8x768xf32, #tpu.memory_space<vmem>>, vector<8x512xf32>
    %c-4_i32_220 = arith.constant -4 : i32
    %392 = vector.broadcast %c-4_i32_220 : i32 to vector<8x512xi32>
    %393 = arith.addi %6, %392 : vector<8x512xi32>
    %c4_i32_221 = arith.constant 4 : i32
    %394 = vector.broadcast %c4_i32_221 : i32 to vector<8x512xi32>
    %395 = arith.addi %2, %394 : vector<8x512xi32>
    %c0_i32_222 = arith.constant 0 : i32
    %396 = vector.broadcast %c0_i32_222 : i32 to vector<8x512xi32>
    %397 = arith.cmpi sge, %393, %396 : vector<8x512xi32>
    %c16_i32_223 = arith.constant 16 : i32
    %398 = vector.broadcast %c16_i32_223 : i32 to vector<8x512xi32>
    %399 = arith.cmpi slt, %393, %398 : vector<8x512xi32>
    %400 = arith.andi %397, %399 : vector<8x512xi1>
    %c0_i32_224 = arith.constant 0 : i32
    %401 = vector.broadcast %c0_i32_224 : i32 to vector<8x512xi32>
    %402 = arith.cmpi sge, %395, %401 : vector<8x512xi32>
    %403 = arith.andi %400, %402 : vector<8x512xi1>
    %c16_i32_225 = arith.constant 16 : i32
    %404 = vector.broadcast %c16_i32_225 : i32 to vector<8x512xi32>
    %405 = arith.cmpi slt, %395, %404 : vector<8x512xi32>
    %406 = arith.andi %403, %405 : vector<8x512xi1>
    %cst_226 = arith.constant 0.000000e+00 : f32
    %407 = vector.broadcast %cst_226 : f32 to vector<8x512xf32>
    %408 = arith.select %406, %391, %407 : vector<8x512xi1>, vector<8x512xf32>
    %c16_227 = arith.constant 16 : index
    %c0_228 = arith.constant 0 : index
    %409 = vector.load %arg11[%c16_227, %c0_228] : memref<72x512xf32, #tpu.memory_space<vmem>>, vector<8x512xf32>
    tpu.vector_store %arg11[%c16_227, %c0_228], %408 {strides = array<i32>} : memref<72x512xf32, #tpu.memory_space<vmem>>, vector<8x512xf32>,
    %c0_229 = arith.constant 0 : index
    %c124 = arith.constant 124 : index
    %410 = vector.load %arg10[%c0_229, %c124] : memref<8x768xf32, #tpu.memory_space<vmem>>, vector<8x512xf32>
    %c0_i32_230 = arith.constant 0 : i32
    %411 = vector.broadcast %c0_i32_230 : i32 to vector<8x512xi32>
    %412 = arith.addi %6, %411 : vector<8x512xi32>
    %c-4_i32_231 = arith.constant -4 : i32
    %413 = vector.broadcast %c-4_i32_231 : i32 to vector<8x512xi32>
    %414 = arith.addi %2, %413 : vector<8x512xi32>
    %c0_i32_232 = arith.constant 0 : i32
    %415 = vector.broadcast %c0_i32_232 : i32 to vector<8x512xi32>
    %416 = arith.cmpi sge, %412, %415 : vector<8x512xi32>
    %c16_i32_233 = arith.constant 16 : i32
    %417 = vector.broadcast %c16_i32_233 : i32 to vector<8x512xi32>
    %418 = arith.cmpi slt, %412, %417 : vector<8x512xi32>
    %419 = arith.andi %416, %418 : vector<8x512xi1>
    %c0_i32_234 = arith.constant 0 : i32
    %420 = vector.broadcast %c0_i32_234 : i32 to vector<8x512xi32>
    %421 = arith.cmpi sge, %414, %420 : vector<8x512xi32>
    %422 = arith.andi %419, %421 : vector<8x512xi1>
    %c16_i32_235 = arith.constant 16 : i32
    %423 = vector.broadcast %c16_i32_235 : i32 to vector<8x512xi32>
    %424 = arith.cmpi slt, %414, %423 : vector<8x512xi32>
    %425 = arith.andi %422, %424 : vector<8x512xi1>
    %cst_236 = arith.constant 0.000000e+00 : f32
    %426 = vector.broadcast %cst_236 : f32 to vector<8x512xf32>
    %427 = arith.select %425, %410, %426 : vector<8x512xi1>, vector<8x512xf32>
    %c24_237 = arith.constant 24 : index
    %c0_238 = arith.constant 0 : index
    %428 = vector.load %arg11[%c24_237, %c0_238] : memref<72x512xf32, #tpu.memory_space<vmem>>, vector<8x512xf32>
    tpu.vector_store %arg11[%c24_237, %c0_238], %427 {strides = array<i32>} : memref<72x512xf32, #tpu.memory_space<vmem>>, vector<8x512xf32>,
    %c0_239 = arith.constant 0 : index
    %c128_240 = arith.constant 128 : index
    %429 = vector.load %arg10[%c0_239, %c128_240] : memref<8x768xf32, #tpu.memory_space<vmem>>, vector<8x512xf32>
    %c32_241 = arith.constant 32 : index
    %c0_242 = arith.constant 0 : index
    %430 = vector.load %arg11[%c32_241, %c0_242] : memref<72x512xf32, #tpu.memory_space<vmem>>, vector<8x512xf32>
    tpu.vector_store %arg11[%c32_241, %c0_242], %429 {strides = array<i32>} : memref<72x512xf32, #tpu.memory_space<vmem>>, vector<8x512xf32>,
    %c0_243 = arith.constant 0 : index
    %c132 = arith.constant 132 : index
    %431 = vector.load %arg10[%c0_243, %c132] : memref<8x768xf32, #tpu.memory_space<vmem>>, vector<8x512xf32>
    %c0_i32_244 = arith.constant 0 : i32
    %432 = vector.broadcast %c0_i32_244 : i32 to vector<8x512xi32>
    %433 = arith.addi %6, %432 : vector<8x512xi32>
    %c4_i32_245 = arith.constant 4 : i32
    %434 = vector.broadcast %c4_i32_245 : i32 to vector<8x512xi32>
    %435 = arith.addi %2, %434 : vector<8x512xi32>
    %c0_i32_246 = arith.constant 0 : i32
    %436 = vector.broadcast %c0_i32_246 : i32 to vector<8x512xi32>
    %437 = arith.cmpi sge, %433, %436 : vector<8x512xi32>
    %c16_i32_247 = arith.constant 16 : i32
    %438 = vector.broadcast %c16_i32_247 : i32 to vector<8x512xi32>
    %439 = arith.cmpi slt, %433, %438 : vector<8x512xi32>
    %440 = arith.andi %437, %439 : vector<8x512xi1>
    %c0_i32_248 = arith.constant 0 : i32
    %441 = vector.broadcast %c0_i32_248 : i32 to vector<8x512xi32>
    %442 = arith.cmpi sge, %435, %441 : vector<8x512xi32>
    %443 = arith.andi %440, %442 : vector<8x512xi1>
    %c16_i32_249 = arith.constant 16 : i32
    %444 = vector.broadcast %c16_i32_249 : i32 to vector<8x512xi32>
    %445 = arith.cmpi slt, %435, %444 : vector<8x512xi32>
    %446 = arith.andi %443, %445 : vector<8x512xi1>
    %cst_250 = arith.constant 0.000000e+00 : f32
    %447 = vector.broadcast %cst_250 : f32 to vector<8x512xf32>
    %448 = arith.select %446, %431, %447 : vector<8x512xi1>, vector<8x512xf32>
    %c40_251 = arith.constant 40 : index
    %c0_252 = arith.constant 0 : index
    %449 = vector.load %arg11[%c40_251, %c0_252] : memref<72x512xf32, #tpu.memory_space<vmem>>, vector<8x512xf32>
    tpu.vector_store %arg11[%c40_251, %c0_252], %448 {strides = array<i32>} : memref<72x512xf32, #tpu.memory_space<vmem>>, vector<8x512xf32>,
    %c0_253 = arith.constant 0 : index
    %c188 = arith.constant 188 : index
    %450 = vector.load %arg10[%c0_253, %c188] : memref<8x768xf32, #tpu.memory_space<vmem>>, vector<8x512xf32>
    %c4_i32_254 = arith.constant 4 : i32
    %451 = vector.broadcast %c4_i32_254 : i32 to vector<8x512xi32>
    %452 = arith.addi %6, %451 : vector<8x512xi32>
    %c-4_i32_255 = arith.constant -4 : i32
    %453 = vector.broadcast %c-4_i32_255 : i32 to vector<8x512xi32>
    %454 = arith.addi %2, %453 : vector<8x512xi32>
    %c0_i32_256 = arith.constant 0 : i32
    %455 = vector.broadcast %c0_i32_256 : i32 to vector<8x512xi32>
    %456 = arith.cmpi sge, %452, %455 : vector<8x512xi32>
    %c16_i32_257 = arith.constant 16 : i32
    %457 = vector.broadcast %c16_i32_257 : i32 to vector<8x512xi32>
    %458 = arith.cmpi slt, %452, %457 : vector<8x512xi32>
    %459 = arith.andi %456, %458 : vector<8x512xi1>
    %c0_i32_258 = arith.constant 0 : i32
    %460 = vector.broadcast %c0_i32_258 : i32 to vector<8x512xi32>
    %461 = arith.cmpi sge, %454, %460 : vector<8x512xi32>
    %462 = arith.andi %459, %461 : vector<8x512xi1>
    %c16_i32_259 = arith.constant 16 : i32
    %463 = vector.broadcast %c16_i32_259 : i32 to vector<8x512xi32>
    %464 = arith.cmpi slt, %454, %463 : vector<8x512xi32>
    %465 = arith.andi %462, %464 : vector<8x512xi1>
    %cst_260 = arith.constant 0.000000e+00 : f32
    %466 = vector.broadcast %cst_260 : f32 to vector<8x512xf32>
    %467 = arith.select %465, %450, %466 : vector<8x512xi1>, vector<8x512xf32>
    %c48_261 = arith.constant 48 : index
    %c0_262 = arith.constant 0 : index
    %468 = vector.load %arg11[%c48_261, %c0_262] : memref<72x512xf32, #tpu.memory_space<vmem>>, vector<8x512xf32>
    tpu.vector_store %arg11[%c48_261, %c0_262], %467 {strides = array<i32>} : memref<72x512xf32, #tpu.memory_space<vmem>>, vector<8x512xf32>,
    %c0_263 = arith.constant 0 : index
    %c192 = arith.constant 192 : index
    %469 = vector.load %arg10[%c0_263, %c192] : memref<8x768xf32, #tpu.memory_space<vmem>>, vector<8x512xf32>
    %c4_i32_264 = arith.constant 4 : i32
    %470 = vector.broadcast %c4_i32_264 : i32 to vector<8x512xi32>
    %471 = arith.addi %6, %470 : vector<8x512xi32>
    %c0_i32_265 = arith.constant 0 : i32
    %472 = vector.broadcast %c0_i32_265 : i32 to vector<8x512xi32>
    %473 = arith.addi %2, %472 : vector<8x512xi32>
    %c0_i32_266 = arith.constant 0 : i32
    %474 = vector.broadcast %c0_i32_266 : i32 to vector<8x512xi32>
    %475 = arith.cmpi sge, %471, %474 : vector<8x512xi32>
    %c16_i32_267 = arith.constant 16 : i32
    %476 = vector.broadcast %c16_i32_267 : i32 to vector<8x512xi32>
    %477 = arith.cmpi slt, %471, %476 : vector<8x512xi32>
    %478 = arith.andi %475, %477 : vector<8x512xi1>
    %c0_i32_268 = arith.constant 0 : i32
    %479 = vector.broadcast %c0_i32_268 : i32 to vector<8x512xi32>
    %480 = arith.cmpi sge, %473, %479 : vector<8x512xi32>
    %481 = arith.andi %478, %480 : vector<8x512xi1>
    %c16_i32_269 = arith.constant 16 : i32
    %482 = vector.broadcast %c16_i32_269 : i32 to vector<8x512xi32>
    %483 = arith.cmpi slt, %473, %482 : vector<8x512xi32>
    %484 = arith.andi %481, %483 : vector<8x512xi1>
    %cst_270 = arith.constant 0.000000e+00 : f32
    %485 = vector.broadcast %cst_270 : f32 to vector<8x512xf32>
    %486 = arith.select %484, %469, %485 : vector<8x512xi1>, vector<8x512xf32>
    %c56_271 = arith.constant 56 : index
    %c0_272 = arith.constant 0 : index
    %487 = vector.load %arg11[%c56_271, %c0_272] : memref<72x512xf32, #tpu.memory_space<vmem>>, vector<8x512xf32>
    tpu.vector_store %arg11[%c56_271, %c0_272], %486 {strides = array<i32>} : memref<72x512xf32, #tpu.memory_space<vmem>>, vector<8x512xf32>,
    %c0_273 = arith.constant 0 : index
    %c196 = arith.constant 196 : index
    %488 = vector.load %arg10[%c0_273, %c196] : memref<8x768xf32, #tpu.memory_space<vmem>>, vector<8x512xf32>
    %c4_i32_274 = arith.constant 4 : i32
    %489 = vector.broadcast %c4_i32_274 : i32 to vector<8x512xi32>
    %490 = arith.addi %6, %489 : vector<8x512xi32>
    %c4_i32_275 = arith.constant 4 : i32
    %491 = vector.broadcast %c4_i32_275 : i32 to vector<8x512xi32>
    %492 = arith.addi %2, %491 : vector<8x512xi32>
    %c0_i32_276 = arith.constant 0 : i32
    %493 = vector.broadcast %c0_i32_276 : i32 to vector<8x512xi32>
    %494 = arith.cmpi sge, %490, %493 : vector<8x512xi32>
    %c16_i32_277 = arith.constant 16 : i32
    %495 = vector.broadcast %c16_i32_277 : i32 to vector<8x512xi32>
    %496 = arith.cmpi slt, %490, %495 : vector<8x512xi32>
    %497 = arith.andi %494, %496 : vector<8x512xi1>
    %c0_i32_278 = arith.constant 0 : i32
    %498 = vector.broadcast %c0_i32_278 : i32 to vector<8x512xi32>
    %499 = arith.cmpi sge, %492, %498 : vector<8x512xi32>
    %500 = arith.andi %497, %499 : vector<8x512xi1>
    %c16_i32_279 = arith.constant 16 : i32
    %501 = vector.broadcast %c16_i32_279 : i32 to vector<8x512xi32>
    %502 = arith.cmpi slt, %492, %501 : vector<8x512xi32>
    %503 = arith.andi %500, %502 : vector<8x512xi1>
    %cst_280 = arith.constant 0.000000e+00 : f32
    %504 = vector.broadcast %cst_280 : f32 to vector<8x512xf32>
    %505 = arith.select %503, %488, %504 : vector<8x512xi1>, vector<8x512xf32>
    %c64_281 = arith.constant 64 : index
    %c0_282 = arith.constant 0 : index
    %506 = vector.load %arg11[%c64_281, %c0_282] : memref<72x512xf32, #tpu.memory_space<vmem>>, vector<8x512xf32>
    tpu.vector_store %arg11[%c64_281, %c0_282], %505 {strides = array<i32>} : memref<72x512xf32, #tpu.memory_space<vmem>>, vector<8x512xf32>,
    %c0_283 = arith.constant 0 : index
    %c0_284 = arith.constant 0 : index
    %507 = vector.load %arg3[%c0_283, %c0_284] : memref<8x72xf32, #tpu.memory_space<vmem>>, vector<8x72xf32>
    %c0_285 = arith.constant 0 : index
    %c0_286 = arith.constant 0 : index
    %508 = vector.load %arg11[%c0_285, %c0_286] : memref<72x512xf32, #tpu.memory_space<vmem>>, vector<72x512xf32>
    %cst_287 = arith.constant dense<0.000000e+00> : vector<8x512xf32>
    %509 = tpu.matmul %507, %508, %cst_287 {dimension_numbers = #tpu.dot_dimension_numbers<[1], [0], [0], [1], [0, 0, 1, 1], [], []>} : vector<8x72xf32>, vector<72x512xf32>, vector<8x512xf32> -> vector<8x512xf32>
    %c0_288 = arith.constant 0 : index
    %c0_289 = arith.constant 0 : index
    %510 = vector.load %arg4[%c0_288, %c0_289] : memref<8x1xf32, #tpu.memory_space<vmem>>, vector<8x1xf32>
    %511 = vector.broadcast %510 : vector<8x1xf32> to vector<8x512xf32>
    %512 = arith.addf %509, %511 : vector<8x512xf32>
    %cst_290 = arith.constant 0.000000e+00 : f32
    %513 = vector.broadcast %cst_290 : f32 to vector<8x512xf32>
    %514 = arith.maximumf %512, %513 : vector<8x512xf32>
    %c0_291 = arith.constant 0 : index
    %c128_292 = arith.constant 128 : index
    %515 = vector.load %arg10[%c0_291, %c128_292] : memref<8x768xf32, #tpu.memory_space<vmem>>, vector<8x512xf32>
    tpu.vector_store %arg10[%c0_291, %c128_292], %514 {strides = array<i32>} : memref<8x768xf32, #tpu.memory_space<vmem>>, vector<8x512xf32>,
    %c0_293 = arith.constant 0 : index
    %c128_294 = arith.constant 128 : index
    %516 = vector.load %arg10[%c0_293, %c128_294] : memref<8x768xf32, #tpu.memory_space<vmem>>, vector<8x512xf32>
    %c0_295 = arith.constant 0 : index
    %c132_296 = arith.constant 132 : index
    %517 = vector.load %arg10[%c0_295, %c132_296] : memref<8x768xf32, #tpu.memory_space<vmem>>, vector<8x512xf32>
    %c0_297 = arith.constant 0 : index
    %c192_298 = arith.constant 192 : index
    %518 = vector.load %arg10[%c0_297, %c192_298] : memref<8x768xf32, #tpu.memory_space<vmem>>, vector<8x512xf32>
    %c0_299 = arith.constant 0 : index
    %c196_300 = arith.constant 196 : index
    %519 = vector.load %arg10[%c0_299, %c196_300] : memref<8x768xf32, #tpu.memory_space<vmem>>, vector<8x512xf32>
    %520 = arith.maximumf %516, %517 : vector<8x512xf32>
    %521 = arith.maximumf %518, %519 : vector<8x512xf32>
    %522 = arith.maximumf %520, %521 : vector<8x512xf32>
    %c0_301 = arith.constant 0 : index
    %c128_302 = arith.constant 128 : index
    %523 = vector.load %arg10[%c0_301, %c128_302] : memref<8x768xf32, #tpu.memory_space<vmem>>, vector<8x512xf32>
    tpu.vector_store %arg10[%c0_301, %c128_302], %522 {strides = array<i32>} : memref<8x768xf32, #tpu.memory_space<vmem>>, vector<8x512xf32>,
    %c0_303 = arith.constant 0 : index
    %c128_304 = arith.constant 128 : index
    %524 = vector.load %arg10[%c0_303, %c128_304] : memref<8x768xf32, #tpu.memory_space<vmem>>, vector<8x1xf32>
    %c0_305 = arith.constant 0 : index
    %c0_306 = arith.constant 0 : index
    %525 = vector.load %arg12[%c0_305, %c0_306] : memref<32x2xf32, #tpu.memory_space<vmem>>, vector<8x1xf32>
    tpu.vector_store %arg12[%c0_305, %c0_306], %524 {strides = array<i32>} : memref<32x2xf32, #tpu.memory_space<vmem>>, vector<8x1xf32>,
    %c0_307 = arith.constant 0 : index
    %c136 = arith.constant 136 : index
    %526 = vector.load %arg10[%c0_307, %c136] : memref<8x768xf32, #tpu.memory_space<vmem>>, vector<8x1xf32>
    %c8_308 = arith.constant 8 : index
    %c0_309 = arith.constant 0 : index
    %527 = vector.load %arg12[%c8_308, %c0_309] : memref<32x2xf32, #tpu.memory_space<vmem>>, vector<8x1xf32>
    tpu.vector_store %arg12[%c8_308, %c0_309], %526 {strides = array<i32>} : memref<32x2xf32, #tpu.memory_space<vmem>>, vector<8x1xf32>,
    %c0_310 = arith.constant 0 : index
    %c256 = arith.constant 256 : index
    %528 = vector.load %arg10[%c0_310, %c256] : memref<8x768xf32, #tpu.memory_space<vmem>>, vector<8x1xf32>
    %c16_311 = arith.constant 16 : index
    %c0_312 = arith.constant 0 : index
    %529 = vector.load %arg12[%c16_311, %c0_312] : memref<32x2xf32, #tpu.memory_space<vmem>>, vector<8x1xf32>
    tpu.vector_store %arg12[%c16_311, %c0_312], %528 {strides = array<i32>} : memref<32x2xf32, #tpu.memory_space<vmem>>, vector<8x1xf32>,
    %c0_313 = arith.constant 0 : index
    %c264 = arith.constant 264 : index
    %530 = vector.load %arg10[%c0_313, %c264] : memref<8x768xf32, #tpu.memory_space<vmem>>, vector<8x1xf32>
    %c24_314 = arith.constant 24 : index
    %c0_315 = arith.constant 0 : index
    %531 = vector.load %arg12[%c24_314, %c0_315] : memref<32x2xf32, #tpu.memory_space<vmem>>, vector<8x1xf32>
    tpu.vector_store %arg12[%c24_314, %c0_315], %530 {strides = array<i32>} : memref<32x2xf32, #tpu.memory_space<vmem>>, vector<8x1xf32>,
    %c0_316 = arith.constant 0 : index
    %c384 = arith.constant 384 : index
    %532 = vector.load %arg10[%c0_316, %c384] : memref<8x768xf32, #tpu.memory_space<vmem>>, vector<8x1xf32>
    %c0_317 = arith.constant 0 : index
    %c1 = arith.constant 1 : index
    %533 = vector.load %arg12[%c0_317, %c1] : memref<32x2xf32, #tpu.memory_space<vmem>>, vector<8x1xf32>
    tpu.vector_store %arg12[%c0_317, %c1], %532 {strides = array<i32>} : memref<32x2xf32, #tpu.memory_space<vmem>>, vector<8x1xf32>,
    %c0_318 = arith.constant 0 : index
    %c392 = arith.constant 392 : index
    %534 = vector.load %arg10[%c0_318, %c392] : memref<8x768xf32, #tpu.memory_space<vmem>>, vector<8x1xf32>
    %c8_319 = arith.constant 8 : index
    %c1_320 = arith.constant 1 : index
    %535 = vector.load %arg12[%c8_319, %c1_320] : memref<32x2xf32, #tpu.memory_space<vmem>>, vector<8x1xf32>
    tpu.vector_store %arg12[%c8_319, %c1_320], %534 {strides = array<i32>} : memref<32x2xf32, #tpu.memory_space<vmem>>, vector<8x1xf32>,
    %c0_321 = arith.constant 0 : index
    %c512 = arith.constant 512 : index
    %536 = vector.load %arg10[%c0_321, %c512] : memref<8x768xf32, #tpu.memory_space<vmem>>, vector<8x1xf32>
    %c16_322 = arith.constant 16 : index
    %c1_323 = arith.constant 1 : index
    %537 = vector.load %arg12[%c16_322, %c1_323] : memref<32x2xf32, #tpu.memory_space<vmem>>, vector<8x1xf32>
    tpu.vector_store %arg12[%c16_322, %c1_323], %536 {strides = array<i32>} : memref<32x2xf32, #tpu.memory_space<vmem>>, vector<8x1xf32>,
    %c0_324 = arith.constant 0 : index
    %c520 = arith.constant 520 : index
    %538 = vector.load %arg10[%c0_324, %c520] : memref<8x768xf32, #tpu.memory_space<vmem>>, vector<8x1xf32>
    %c24_325 = arith.constant 24 : index
    %c1_326 = arith.constant 1 : index
    %539 = vector.load %arg12[%c24_325, %c1_326] : memref<32x2xf32, #tpu.memory_space<vmem>>, vector<8x1xf32>
    tpu.vector_store %arg12[%c24_325, %c1_326], %538 {strides = array<i32>} : memref<32x2xf32, #tpu.memory_space<vmem>>, vector<8x1xf32>,
    %c0_327 = arith.constant 0 : index
    %c0_328 = arith.constant 0 : index
    %540 = vector.load %arg5[%c0_327, %c0_328] : memref<8x32xf32, #tpu.memory_space<vmem>>, vector<8x32xf32>
    %c0_329 = arith.constant 0 : index
    %c0_330 = arith.constant 0 : index
    %541 = vector.load %arg12[%c0_329, %c0_330] : memref<32x2xf32, #tpu.memory_space<vmem>>, vector<32x2xf32>
    %cst_331 = arith.constant dense<0.000000e+00> : vector<8x2xf32>
    %542 = tpu.matmul %540, %541, %cst_331 {dimension_numbers = #tpu.dot_dimension_numbers<[1], [0], [0], [1], [0, 0, 1, 1], [], []>} : vector<8x32xf32>, vector<32x2xf32>, vector<8x2xf32> -> vector<8x2xf32>
    %c0_332 = arith.constant 0 : index
    %c0_333 = arith.constant 0 : index
    %543 = vector.load %arg6[%c0_332, %c0_333] : memref<8x1xf32, #tpu.memory_space<vmem>>, vector<8x1xf32>
    %544 = vector.broadcast %543 : vector<8x1xf32> to vector<8x2xf32>
    %545 = arith.addf %542, %544 : vector<8x2xf32>
    %cst_334 = arith.constant 0.000000e+00 : f32
    %546 = vector.broadcast %cst_334 : f32 to vector<8x2xf32>
    %547 = arith.maximumf %545, %546 : vector<8x2xf32>
    %c0_335 = arith.constant 0 : index
    %c0_336 = arith.constant 0 : index
    %548 = vector.load %arg7[%c0_335, %c0_336] : memref<10x8xf32, #tpu.memory_space<vmem>>, vector<10x8xf32>
    %cst_337 = arith.constant dense<0.000000e+00> : vector<10x2xf32>
    %549 = tpu.matmul %548, %547, %cst_337 {dimension_numbers = #tpu.dot_dimension_numbers<[1], [0], [0], [1], [0, 0, 1, 1], [], []>} : vector<10x8xf32>, vector<8x2xf32>, vector<10x2xf32> -> vector<10x2xf32>
    %c0_338 = arith.constant 0 : index
    %c0_339 = arith.constant 0 : index
    %550 = vector.load %arg8[%c0_338, %c0_339] : memref<10x1xf32, #tpu.memory_space<vmem>>, vector<10x1xf32>
    %551 = vector.broadcast %550 : vector<10x1xf32> to vector<10x2xf32>
    %552 = arith.addf %549, %551 : vector<10x2xf32>
    %c0_340 = arith.constant 0 : index
    %c0_341 = arith.constant 0 : index
    %553 = vector.load %arg9[%c0_340, %c0_341] : memref<10x2xf32, #tpu.memory_space<vmem>>, vector<10x2xf32>
    tpu.vector_store %arg9[%c0_340, %c0_341], %552 {strides = array<i32>} : memref<10x2xf32, #tpu.memory_space<vmem>>, vector<10x2xf32>,
    return
  }
}

</mosaic_0001>

<llo_original>
// kernel: tpu_custom_call.1
$region0: #{tpu_custom_call.1}
  #allocation0 [shape = 'u32[]', space=smem, size = 0x4, offset = 0x4, fixed_abs, tag = 'smem constant byte address 0x4 - core index']
  #allocation1 [shape = 'u32[144,128]{1,0:T(1,128)}', space=vmem, size = 0x12000, scoped, tag = 'internal scratch']
  #allocation2 [shape = 'f32[8,768]{1,0:T(8,128)}', space=vmem, size = 0x6000, scoped, tag = 'scratch operand']
  #allocation3 [shape = 'f32[72,512]{1,0:T(8,128)}', space=vmem, size = 0x24000, scoped, tag = 'scratch operand']
  #allocation4 [shape = 'f32[32,2]{1,0:T(8,128)}', space=vmem, size = 0x4000, scoped, tag = 'scratch operand']
  %s0 = inlined_call_operand.vmem [shape: f32[8,512], index: 0, kind: input, shape index: {}]
  %s1 = inlined_call_operand.vmem [shape: f32[8,72], index: 1, kind: input, shape index: {}]
  %s2 = inlined_call_operand.vmem [shape: f32[8,1], index: 2, kind: input, shape index: {}]
  %s3 = inlined_call_operand.vmem [shape: f32[8,72], index: 3, kind: input, shape index: {}]
  %s4 = inlined_call_operand.vmem [shape: f32[8,1], index: 4, kind: input, shape index: {}]
  %s5 = inlined_call_operand.vmem [shape: f32[8,32], index: 5, kind: input, shape index: {}]
  %s6 = inlined_call_operand.vmem [shape: f32[8,1], index: 6, kind: input, shape index: {}]
  %s7 = inlined_call_operand.vmem [shape: f32[10,8], index: 7, kind: input, shape index: {}]
  %s8 = inlined_call_operand.vmem [shape: f32[10,1], index: 8, kind: input, shape index: {}]
  %s9 = inlined_call_operand.vmem [shape: f32[10,2], index: 9, kind: output, shape index: {}]
  %s10 = sld [smem:[#allocation0]]
  $region46: #{tpu_custom_call.1} parent=0
    _
  %s12 = ssub.s32 1, %s10
  %s13 = scalar_select 0, %s12, %s10
  // Predicated region
  $region2: #{tpu_custom_call.1} parent=0 // pred_check
    _
  $region3: #{tpu_custom_call.1} parent=0 // pred_check_branch
    %15 = sbr.rel (0) target = $region5
  $region4: #{tpu_custom_call.1} parent=0 // pred_region
    _
  $region5: #{tpu_custom_call.1} parent=0 // pred_fallthru
    _
  // Predicated region
  $region6: #{tpu_custom_call.1} parent=0 // pred_check
    _
  $region7: #{tpu_custom_call.1} parent=0 // pred_check_branch
    %17 = sbr.rel (0) target = $region9
  $region8: #{tpu_custom_call.1} parent=0 // pred_region
    _
  $region9: #{tpu_custom_call.1} parent=0 // pred_fallthru
    _
  // Predicated region
  $region10: #{tpu_custom_call.1} parent=0 // pred_check
    _
  $region11: #{tpu_custom_call.1} parent=0 // pred_check_branch
    %19 = sbr.rel (0) target = $region13
  $region12: #{tpu_custom_call.1} parent=0 // pred_region
    _
  $region13: #{tpu_custom_call.1} parent=0 // pred_fallthru
    _
  // Predicated region
  $region14: #{tpu_custom_call.1} parent=0 // pred_check
    _
  $region15: #{tpu_custom_call.1} parent=0 // pred_check_branch
    %21 = sbr.rel (0) target = $region17
  $region16: #{tpu_custom_call.1} parent=0 // pred_region
    _
  $region17: #{tpu_custom_call.1} parent=0 // pred_fallthru
    _
  // Predicated region
  $region18: #{tpu_custom_call.1} parent=0 // pred_check
    _
  $region19: #{tpu_custom_call.1} parent=0 // pred_check_branch
    %23 = sbr.rel (0) target = $region21
  $region20: #{tpu_custom_call.1} parent=0 // pred_region
    _
  $region21: #{tpu_custom_call.1} parent=0 // pred_fallthru
    _
  // Predicated region
  $region22: #{tpu_custom_call.1} parent=0 // pred_check
    _
  $region23: #{tpu_custom_call.1} parent=0 // pred_check_branch
    %25 = sbr.rel (0) target = $region25
  $region24: #{tpu_custom_call.1} parent=0 // pred_region
    _
  $region25: #{tpu_custom_call.1} parent=0 // pred_fallthru
    _
  // Predicated region
  $region26: #{tpu_custom_call.1} parent=0 // pred_check
    _
  $region27: #{tpu_custom_call.1} parent=0 // pred_check_branch
    %27 = sbr.rel (0) target = $region29
  $region28: #{tpu_custom_call.1} parent=0 // pred_region
    _
  $region29: #{tpu_custom_call.1} parent=0 // pred_fallthru
    _
  // Predicated region
  $region30: #{tpu_custom_call.1} parent=0 // pred_check
    _
  $region31: #{tpu_custom_call.1} parent=0 // pred_check_branch
    %29 = sbr.rel (0) target = $region33
  $region32: #{tpu_custom_call.1} parent=0 // pred_region
    _
  $region33: #{tpu_custom_call.1} parent=0 // pred_fallthru
    _
  // Predicated region
  $region34: #{tpu_custom_call.1} parent=0 // pred_check
    _
  $region35: #{tpu_custom_call.1} parent=0 // pred_check_branch
    %31 = sbr.rel (0) target = $region37
  $region36: #{tpu_custom_call.1} parent=0 // pred_region
    _
  $region37: #{tpu_custom_call.1} parent=0 // pred_fallthru
    _
  %v32 = vlaneseq
  %v33 = vand.u32 %v32, 127
  %v34 = vadd.s32 %v33, 128
  %v35 = vadd.s32 %v33, 256
  %v36 = vadd.s32 %v33, 384
  %v37 = vand.u32 %v33, 15
  %v38 = vand.u32 %v34, 15
  %v39 = vand.u32 %v35, 15
  %v40 = vand.u32 %v36, 15
  %v41 = vshra.s32 %v33, 4
  %v42 = vshra.s32 %v34, 4
  %v43 = vshra.s32 %v35, 4
  %v44 = vshra.s32 %v36, 4
  %v45 = vand.u32 %v41, 15
  %v46 = vand.u32 %v42, 15
  %v47 = vand.u32 %v43, 15
  %v48 = vand.u32 %v44, 15
  %49 = vst [vmem:[#allocation2] sm:$0xff] 0.0
  %50 = vst [vmem:[#allocation2 + $0x8] sm:$0xff] 0.0
  %51 = vst [vmem:[#allocation2 + $0x10] sm:$0xff] 0.0
  %52 = vst [vmem:[#allocation2 + $0x18] sm:$0xff] 0.0
  %53 = vst [vmem:[#allocation2 + $0x20] sm:$0xff] 0.0
  %54 = vst [vmem:[#allocation2 + $0x28] sm:$0xff] 0.0
  %v55 = vld [vmem:[%s0] sm:$0xff]
  %v56 = vld [vmem:[%s0 + $0x8] sm:$0xff]
  %v57 = vld [vmem:[%s0 + $0x10] sm:$0xff]
  %v58 = vld [vmem:[%s0 + $0x18] sm:$0xff]
  %59 = vst [vmem:[#allocation2 + $0x8] sm:$0xff] %v55
  %60 = vst [vmem:[#allocation2 + $0x10] sm:$0xff] %v56
  %61 = vst [vmem:[#allocation2 + $0x18] sm:$0xff] %v57
  %62 = vst [vmem:[#allocation2 + $0x20] sm:$0xff] %v58
  %v63 = vld [vmem:[#allocation2] sm:$0xff]
  %v64 = vld [vmem:[#allocation2 + $0x8] sm:$0xff]
  %v65 = vld [vmem:[#allocation2 + $0x10] sm:$0xff]
  %v66 = vld [vmem:[#allocation2 + $0x18] sm:$0xff]
  %v67 = vld [vmem:[#allocation2 + $0x20] sm:$0xff]
  %v68 = vadd.s32 %v45, 4294967295
  %v69 = vadd.s32 %v46, 4294967295
  %v70 = vadd.s32 %v47, 4294967295
  %v71 = vadd.s32 %v48, 4294967295
  %v72 = vadd.s32 %v37, 4294967295
  %v73 = vadd.s32 %v38, 4294967295
  %v74 = vadd.s32 %v39, 4294967295
  %v75 = vadd.s32 %v40, 4294967295
  %vm76 = vcmp.ge.s32.totalorder %v68, 0
  %vm77 = vcmp.ge.s32.totalorder %v69, 0
  %vm78 = vcmp.ge.s32.totalorder %v70, 0
  %vm79 = vcmp.ge.s32.totalorder %v71, 0
  %vm80 = vcmp.lt.s32.totalorder %v68, 16
  %vm81 = vcmp.lt.s32.totalorder %v69, 16
  %vm82 = vcmp.lt.s32.totalorder %v70, 16
  %vm83 = vcmp.lt.s32.totalorder %v71, 16
  %vm84 = vmand %vm76, %vm80
  %vm85 = vmand %vm77, %vm81
  %vm86 = vmand %vm78, %vm82
  %vm87 = vmand %vm79, %vm83
  %vm88 = vcmp.ge.s32.totalorder %v72, 0
  %vm89 = vcmp.ge.s32.totalorder %v73, 0
  %vm90 = vcmp.ge.s32.totalorder %v74, 0
  %vm91 = vcmp.ge.s32.totalorder %v75, 0
  %vm92 = vmand %vm84, %vm88
  %vm93 = vmand %vm85, %vm89
  %vm94 = vmand %vm86, %vm90
  %vm95 = vmand %vm87, %vm91
  %vm96 = vcmp.lt.s32.totalorder %v72, 16
  %vm97 = vcmp.lt.s32.totalorder %v73, 16
  %vm98 = vcmp.lt.s32.totalorder %v74, 16
  %vm99 = vcmp.lt.s32.totalorder %v75, 16
  %vm100 = vmand %vm92, %vm96
  %vm101 = vmand %vm93, %vm97
  %vm102 = vmand %vm94, %vm98
  %vm103 = vmand %vm95, %vm99
  %109 = vrot.lane.b32.xlu0 %v63, 17
  %v110 = vpop.permute.xlu0 %109
  %111 = vrot.lane.b32.xlu0 %v64, 17
  %v112 = vpop.permute.xlu0 %111
  %113 = vrot.lane.b32.xlu0 %v65, 17
  %v114 = vpop.permute.xlu0 %113
  %115 = vrot.lane.b32.xlu0 %v66, 17
  %v116 = vpop.permute.xlu0 %115
  %117 = vrot.lane.b32.xlu0 %v67, 17
  %v118 = vpop.permute.xlu0 %117
  %vm119 = vcmask 138240
  %v120 = vsel %vm119, %v110, %v112
  %v121 = vsel %vm119, %v112, %v114
  %v122 = vsel %vm119, %v114, %v116
  %v123 = vsel %vm119, %v116, %v118
  %v128 = vsel %vm100, %v120, 0.0
  %v129 = vsel %vm101, %v121, 0.0
  %v130 = vsel %vm102, %v122, 0.0
  %v131 = vsel %vm103, %v123, 0.0
  %132 = vst [vmem:[#allocation3] sm:$0xff] %v128
  %133 = vst [vmem:[#allocation3 + $0x8] sm:$0xff] %v129
  %134 = vst [vmem:[#allocation3 + $0x10] sm:$0xff] %v130
  %135 = vst [vmem:[#allocation3 + $0x18] sm:$0xff] %v131
  %v136 = vld [vmem:[#allocation2] sm:$0xff]
  %v137 = vld [vmem:[#allocation2 + $0x8] sm:$0xff]
  %v138 = vld [vmem:[#allocation2 + $0x10] sm:$0xff]
  %v139 = vld [vmem:[#allocation2 + $0x18] sm:$0xff]
  %v140 = vld [vmem:[#allocation2 + $0x20] sm:$0xff]
  %vm141 = vcmp.ge.s32.totalorder %v37, 0
  %vm142 = vcmp.ge.s32.totalorder %v38, 0
  %vm143 = vcmp.ge.s32.totalorder %v39, 0
  %vm144 = vcmp.ge.s32.totalorder %v40, 0
  %vm145 = vmand %vm84, %vm141
  %vm146 = vmand %vm85, %vm142
  %vm147 = vmand %vm86, %vm143
  %vm148 = vmand %vm87, %vm144
  %vm149 = vcmp.lt.s32.totalorder %v37, 16
  %vm150 = vcmp.lt.s32.totalorder %v38, 16
  %vm151 = vcmp.lt.s32.totalorder %v39, 16
  %vm152 = vcmp.lt.s32.totalorder %v40, 16
  %vm153 = vmand %vm145, %vm149
  %vm154 = vmand %vm146, %vm150
  %vm155 = vmand %vm147, %vm151
  %vm156 = vmand %vm148, %vm152
  %162 = vrot.lane.b32.xlu0 %v136, 16
  %v163 = vpop.permute.xlu0 %162
  %164 = vrot.lane.b32.xlu0 %v137, 16
  %v165 = vpop.permute.xlu0 %164
  %166 = vrot.lane.b32.xlu0 %v138, 16
  %v167 = vpop.permute.xlu0 %166
  %168 = vrot.lane.b32.xlu0 %v139, 16
  %v169 = vpop.permute.xlu0 %168
  %170 = vrot.lane.b32.xlu0 %v140, 16
  %v171 = vpop.permute.xlu0 %170
  %vm172 = vcmask 130048
  %v173 = vsel %vm172, %v163, %v165
  %v174 = vsel %vm172, %v165, %v167
  %v175 = vsel %vm172, %v167, %v169
  %v176 = vsel %vm172, %v169, %v171
  %v181 = vsel %vm153, %v173, 0.0
  %v182 = vsel %vm154, %v174, 0.0
  %v183 = vsel %vm155, %v175, 0.0
  %v184 = vsel %vm156, %v176, 0.0
  %185 = vst [vmem:[#allocation3 + $0x20] sm:$0xff] %v181
  %186 = vst [vmem:[#allocation3 + $0x28] sm:$0xff] %v182
  %187 = vst [vmem:[#allocation3 + $0x30] sm:$0xff] %v183
  %188 = vst [vmem:[#allocation3 + $0x38] sm:$0xff] %v184
  %v189 = vld [vmem:[#allocation2] sm:$0xff]
  %v190 = vld [vmem:[#allocation2 + $0x8] sm:$0xff]
  %v191 = vld [vmem:[#allocation2 + $0x10] sm:$0xff]
  %v192 = vld [vmem:[#allocation2 + $0x18] sm:$0xff]
  %v193 = vld [vmem:[#allocation2 + $0x20] sm:$0xff]
  %v194 = vadd.s32 %v37, 1
  %v195 = vadd.s32 %v38, 1
  %v196 = vadd.s32 %v39, 1
  %v197 = vadd.s32 %v40, 1
  %vm198 = vcmp.ge.s32.totalorder %v194, 0
  %vm199 = vcmp.ge.s32.totalorder %v195, 0
  %vm200 = vcmp.ge.s32.totalorder %v196, 0
  %vm201 = vcmp.ge.s32.totalorder %v197, 0
  %vm202 = vmand %vm84, %vm198
  %vm203 = vmand %vm85, %vm199
  %vm204 = vmand %vm86, %vm200
  %vm205 = vmand %vm87, %vm201
  %vm206 = vcmp.lt.s32.totalorder %v194, 16
  %vm207 = vcmp.lt.s32.totalorder %v195, 16
  %vm208 = vcmp.lt.s32.totalorder %v196, 16
  %vm209 = vcmp.lt.s32.totalorder %v197, 16
  %vm210 = vmand %vm202, %vm206
  %vm211 = vmand %vm203, %vm207
  %vm212 = vmand %vm204, %vm208
  %vm213 = vmand %vm205, %vm209
  %219 = vrot.lane.b32.xlu0 %v189, 15
  %v220 = vpop.permute.xlu0 %219
  %221 = vrot.lane.b32.xlu0 %v190, 15
  %v222 = vpop.permute.xlu0 %221
  %223 = vrot.lane.b32.xlu0 %v191, 15
  %v224 = vpop.permute.xlu0 %223
  %225 = vrot.lane.b32.xlu0 %v192, 15
  %v226 = vpop.permute.xlu0 %225
  %227 = vrot.lane.b32.xlu0 %v193, 15
  %v228 = vpop.permute.xlu0 %227
  %vm229 = vcmask 121856
  %v230 = vsel %vm229, %v220, %v222
  %v231 = vsel %vm229, %v222, %v224
  %v232 = vsel %vm229, %v224, %v226
  %v233 = vsel %vm229, %v226, %v228
  %v238 = vsel %vm210, %v230, 0.0
  %v239 = vsel %vm211, %v231, 0.0
  %v240 = vsel %vm212, %v232, 0.0
  %v241 = vsel %vm213, %v233, 0.0
  %242 = vst [vmem:[#allocation3 + $0x40] sm:$0xff] %v238
  %243 = vst [vmem:[#allocation3 + $0x48] sm:$0xff] %v239
  %244 = vst [vmem:[#allocation3 + $0x50] sm:$0xff] %v240
  %245 = vst [vmem:[#allocation3 + $0x58] sm:$0xff] %v241
  %v246 = vld [vmem:[#allocation2] sm:$0xff]
  %v247 = vld [vmem:[#allocation2 + $0x8] sm:$0xff]
  %v248 = vld [vmem:[#allocation2 + $0x10] sm:$0xff]
  %v249 = vld [vmem:[#allocation2 + $0x18] sm:$0xff]
  %v250 = vld [vmem:[#allocation2 + $0x20] sm:$0xff]
  %vm251 = vcmp.ge.s32.totalorder %v45, 0
  %vm252 = vcmp.ge.s32.totalorder %v46, 0
  %vm253 = vcmp.ge.s32.totalorder %v47, 0
  %vm254 = vcmp.ge.s32.totalorder %v48, 0
  %vm255 = vcmp.lt.s32.totalorder %v45, 16
  %vm256 = vcmp.lt.s32.totalorder %v46, 16
  %vm257 = vcmp.lt.s32.totalorder %v47, 16
  %vm258 = vcmp.lt.s32.totalorder %v48, 16
  %vm259 = vmand %vm251, %vm255
  %vm260 = vmand %vm252, %vm256
  %vm261 = vmand %vm253, %vm257
  %vm262 = vmand %vm254, %vm258
  %vm263 = vmand %vm259, %vm88
  %vm264 = vmand %vm260, %vm89
  %vm265 = vmand %vm261, %vm90
  %vm266 = vmand %vm262, %vm91
  %vm267 = vmand %vm263, %vm96
  %vm268 = vmand %vm264, %vm97
  %vm269 = vmand %vm265, %vm98
  %vm270 = vmand %vm266, %vm99
  %276 = vrot.lane.b32.xlu0 %v246, 1
  %v277 = vpop.permute.xlu0 %276
  %278 = vrot.lane.b32.xlu0 %v247, 1
  %v279 = vpop.permute.xlu0 %278
  %280 = vrot.lane.b32.xlu0 %v248, 1
  %v281 = vpop.permute.xlu0 %280
  %282 = vrot.lane.b32.xlu0 %v249, 1
  %v283 = vpop.permute.xlu0 %282
  %284 = vrot.lane.b32.xlu0 %v250, 1
  %v285 = vpop.permute.xlu0 %284
  %vm286 = vcmask 7168
  %v287 = vsel %vm286, %v277, %v279
  %v288 = vsel %vm286, %v279, %v281
  %v289 = vsel %vm286, %v281, %v283
  %v290 = vsel %vm286, %v283, %v285
  %v295 = vsel %vm267, %v287, 0.0
  %v296 = vsel %vm268, %v288, 0.0
  %v297 = vsel %vm269, %v289, 0.0
  %v298 = vsel %vm270, %v290, 0.0
  %299 = vst [vmem:[#allocation3 + $0x60] sm:$0xff] %v295
  %300 = vst [vmem:[#allocation3 + $0x68] sm:$0xff] %v296
  %301 = vst [vmem:[#allocation3 + $0x70] sm:$0xff] %v297
  %302 = vst [vmem:[#allocation3 + $0x78] sm:$0xff] %v298
  %v303 = vld [vmem:[#allocation2 + $0x8] sm:$0xff]
  %v304 = vld [vmem:[#allocation2 + $0x10] sm:$0xff]
  %v305 = vld [vmem:[#allocation2 + $0x18] sm:$0xff]
  %v306 = vld [vmem:[#allocation2 + $0x20] sm:$0xff]
  %307 = vst [vmem:[#allocation3 + $0x80] sm:$0xff] %v303
  %308 = vst [vmem:[#allocation3 + $0x88] sm:$0xff] %v304
  %309 = vst [vmem:[#allocation3 + $0x90] sm:$0xff] %v305
  %310 = vst [vmem:[#allocation3 + $0x98] sm:$0xff] %v306
  %v311 = vld [vmem:[#allocation2 + $0x8] sm:$0xff]
  %v312 = vld [vmem:[#allocation2 + $0x10] sm:$0xff]
  %v313 = vld [vmem:[#allocation2 + $0x18] sm:$0xff]
  %v314 = vld [vmem:[#allocation2 + $0x20] sm:$0xff]
  %v315 = vld [vmem:[#allocation2 + $0x28] sm:$0xff]
  %vm316 = vmand %vm259, %vm198
  %vm317 = vmand %vm260, %vm199
  %vm318 = vmand %vm261, %vm200
  %vm319 = vmand %vm262, %vm201
  %vm320 = vmand %vm316, %vm206
  %vm321 = vmand %vm317, %vm207
  %vm322 = vmand %vm318, %vm208
  %vm323 = vmand %vm319, %vm209
  %329 = vrot.lane.b32.xlu0 %v311, 127
  %v330 = vpop.permute.xlu0 %329
  %331 = vrot.lane.b32.xlu0 %v312, 127
  %v332 = vpop.permute.xlu0 %331
  %333 = vrot.lane.b32.xlu0 %v313, 127
  %v334 = vpop.permute.xlu0 %333
  %335 = vrot.lane.b32.xlu0 %v314, 127
  %v336 = vpop.permute.xlu0 %335
  %337 = vrot.lane.b32.xlu0 %v315, 127
  %v338 = vpop.permute.xlu0 %337
  %vm339 = vcmask 1039360
  %v340 = vsel %vm339, %v330, %v332
  %v341 = vsel %vm339, %v332, %v334
  %v342 = vsel %vm339, %v334, %v336
  %v343 = vsel %vm339, %v336, %v338
  %v348 = vsel %vm320, %v340, 0.0
  %v349 = vsel %vm321, %v341, 0.0
  %v350 = vsel %vm322, %v342, 0.0
  %v351 = vsel %vm323, %v343, 0.0
  %352 = vst [vmem:[#allocation3 + $0xa0] sm:$0xff] %v348
  %353 = vst [vmem:[#allocation3 + $0xa8] sm:$0xff] %v349
  %354 = vst [vmem:[#allocation3 + $0xb0] sm:$0xff] %v350
  %355 = vst [vmem:[#allocation3 + $0xb8] sm:$0xff] %v351
  %v356 = vld [vmem:[#allocation2 + $0x8] sm:$0xff]
  %v357 = vld [vmem:[#allocation2 + $0x10] sm:$0xff]
  %v358 = vld [vmem:[#allocation2 + $0x18] sm:$0xff]
  %v359 = vld [vmem:[#allocation2 + $0x20] sm:$0xff]
  %v360 = vld [vmem:[#allocation2 + $0x28] sm:$0xff]
  %v361 = vadd.s32 %v45, 1
  %v362 = vadd.s32 %v46, 1
  %v363 = vadd.s32 %v47, 1
  %v364 = vadd.s32 %v48, 1
  %vm365 = vcmp.ge.s32.totalorder %v361, 0
  %vm366 = vcmp.ge.s32.totalorder %v362, 0
  %vm367 = vcmp.ge.s32.totalorder %v363, 0
  %vm368 = vcmp.ge.s32.totalorder %v364, 0
  %vm369 = vcmp.lt.s32.totalorder %v361, 16
  %vm370 = vcmp.lt.s32.totalorder %v362, 16
  %vm371 = vcmp.lt.s32.totalorder %v363, 16
  %vm372 = vcmp.lt.s32.totalorder %v364, 16
  %vm373 = vmand %vm365, %vm369
  %vm374 = vmand %vm366, %vm370
  %vm375 = vmand %vm367, %vm371
  %vm376 = vmand %vm368, %vm372
  %vm377 = vmand %vm373, %vm88
  %vm378 = vmand %vm374, %vm89
  %vm379 = vmand %vm375, %vm90
  %vm380 = vmand %vm376, %vm91
  %vm381 = vmand %vm377, %vm96
  %vm382 = vmand %vm378, %vm97
  %vm383 = vmand %vm379, %vm98
  %vm384 = vmand %vm380, %vm99
  %390 = vrot.lane.b32.xlu0 %v356, 113
  %v391 = vpop.permute.xlu0 %390
  %392 = vrot.lane.b32.xlu0 %v357, 113
  %v393 = vpop.permute.xlu0 %392
  %394 = vrot.lane.b32.xlu0 %v358, 113
  %v395 = vpop.permute.xlu0 %394
  %396 = vrot.lane.b32.xlu0 %v359, 113
  %v397 = vpop.permute.xlu0 %396
  %398 = vrot.lane.b32.xlu0 %v360, 113
  %v399 = vpop.permute.xlu0 %398
  %vm400 = vcmask 924672
  %v401 = vsel %vm400, %v391, %v393
  %v402 = vsel %vm400, %v393, %v395
  %v403 = vsel %vm400, %v395, %v397
  %v404 = vsel %vm400, %v397, %v399
  %v409 = vsel %vm381, %v401, 0.0
  %v410 = vsel %vm382, %v402, 0.0
  %v411 = vsel %vm383, %v403, 0.0
  %v412 = vsel %vm384, %v404, 0.0
  %413 = vst [vmem:[#allocation3 + $0xc0] sm:$0xff] %v409
  %414 = vst [vmem:[#allocation3 + $0xc8] sm:$0xff] %v410
  %415 = vst [vmem:[#allocation3 + $0xd0] sm:$0xff] %v411
  %416 = vst [vmem:[#allocation3 + $0xd8] sm:$0xff] %v412
  %v417 = vld [vmem:[#allocation2 + $0x8] sm:$0xff]
  %v418 = vld [vmem:[#allocation2 + $0x10] sm:$0xff]
  %v419 = vld [vmem:[#allocation2 + $0x18] sm:$0xff]
  %v420 = vld [vmem:[#allocation2 + $0x20] sm:$0xff]
  %v421 = vld [vmem:[#allocation2 + $0x28] sm:$0xff]
  %vm422 = vmand %vm373, %vm141
  %vm423 = vmand %vm374, %vm142
  %vm424 = vmand %vm375, %vm143
  %vm425 = vmand %vm376, %vm144
  %vm426 = vmand %vm422, %vm149
  %vm427 = vmand %vm423, %vm150
  %vm428 = vmand %vm424, %vm151
  %vm429 = vmand %vm425, %vm152
  %435 = vrot.lane.b32.xlu0 %v417, 112
  %v436 = vpop.permute.xlu0 %435
  %437 = vrot.lane.b32.xlu0 %v418, 112
  %v438 = vpop.permute.xlu0 %437
  %439 = vrot.lane.b32.xlu0 %v419, 112
  %v440 = vpop.permute.xlu0 %439
  %441 = vrot.lane.b32.xlu0 %v420, 112
  %v442 = vpop.permute.xlu0 %441
  %443 = vrot.lane.b32.xlu0 %v421, 112
  %v444 = vpop.permute.xlu0 %443
  %vm445 = vcmask 916480
  %v446 = vsel %vm445, %v436, %v438
  %v447 = vsel %vm445, %v438, %v440
  %v448 = vsel %vm445, %v440, %v442
  %v449 = vsel %vm445, %v442, %v444
  %v454 = vsel %vm426, %v446, 0.0
  %v455 = vsel %vm427, %v447, 0.0
  %v456 = vsel %vm428, %v448, 0.0
  %v457 = vsel %vm429, %v449, 0.0
  %458 = vst [vmem:[#allocation3 + $0xe0] sm:$0xff] %v454
  %459 = vst [vmem:[#allocation3 + $0xe8] sm:$0xff] %v455
  %460 = vst [vmem:[#allocation3 + $0xf0] sm:$0xff] %v456
  %461 = vst [vmem:[#allocation3 + $0xf8] sm:$0xff] %v457
  %v462 = vld [vmem:[#allocation2 + $0x8] sm:$0xff]
  %v463 = vld [vmem:[#allocation2 + $0x10] sm:$0xff]
  %v464 = vld [vmem:[#allocation2 + $0x18] sm:$0xff]
  %v465 = vld [vmem:[#allocation2 + $0x20] sm:$0xff]
  %v466 = vld [vmem:[#allocation2 + $0x28] sm:$0xff]
  %vm467 = vmand %vm373, %vm198
  %vm468 = vmand %vm374, %vm199
  %vm469 = vmand %vm375, %vm200
  %vm470 = vmand %vm376, %vm201
  %vm471 = vmand %vm467, %vm206
  %vm472 = vmand %vm468, %vm207
  %vm473 = vmand %vm469, %vm208
  %vm474 = vmand %vm470, %vm209
  %480 = vrot.lane.b32.xlu0 %v462, 111
  %v481 = vpop.permute.xlu0 %480
  %482 = vrot.lane.b32.xlu0 %v463, 111
  %v483 = vpop.permute.xlu0 %482
  %484 = vrot.lane.b32.xlu0 %v464, 111
  %v485 = vpop.permute.xlu0 %484
  %486 = vrot.lane.b32.xlu0 %v465, 111
  %v487 = vpop.permute.xlu0 %486
  %488 = vrot.lane.b32.xlu0 %v466, 111
  %v489 = vpop.permute.xlu0 %488
  %vm490 = vcmask 908288
  %v491 = vsel %vm490, %v481, %v483
  %v492 = vsel %vm490, %v483, %v485
  %v493 = vsel %vm490, %v485, %v487
  %v494 = vsel %vm490, %v487, %v489
  %v499 = vsel %vm471, %v491, 0.0
  %v500 = vsel %vm472, %v492, 0.0
  %v501 = vsel %vm473, %v493, 0.0
  %v502 = vsel %vm474, %v494, 0.0
  %503 = vst [vmem:[#allocation3 + $0x100] sm:$0xff] %v499
  %504 = vst [vmem:[#allocation3 + $0x108] sm:$0xff] %v500
  %505 = vst [vmem:[#allocation3 + $0x110] sm:$0xff] %v501
  %506 = vst [vmem:[#allocation3 + $0x118] sm:$0xff] %v502
  %v507 = vld [vmem:[%s1] sm:$0xff]
  %v508 = vld [vmem:[#allocation3] sm:$0xff]
  %v509 = vld [vmem:[#allocation3 + $0x8] sm:$0xff]
  %v510 = vld [vmem:[#allocation3 + $0x10] sm:$0xff]
  %v511 = vld [vmem:[#allocation3 + $0x18] sm:$0xff]
  %v512 = vld [vmem:[#allocation3 + $0x20] sm:$0xff]
  %v513 = vld [vmem:[#allocation3 + $0x28] sm:$0xff]
  %v514 = vld [vmem:[#allocation3 + $0x30] sm:$0xff]
  %v515 = vld [vmem:[#allocation3 + $0x38] sm:$0xff]
  %v516 = vld [vmem:[#allocation3 + $0x40] sm:$0xff]
  %v517 = vld [vmem:[#allocation3 + $0x48] sm:$0xff]
  %v518 = vld [vmem:[#allocation3 + $0x50] sm:$0xff]
  %v519 = vld [vmem:[#allocation3 + $0x58] sm:$0xff]
  %v520 = vld [vmem:[#allocation3 + $0x60] sm:$0xff]
  %v521 = vld [vmem:[#allocation3 + $0x68] sm:$0xff]
  %v522 = vld [vmem:[#allocation3 + $0x70] sm:$0xff]
  %v523 = vld [vmem:[#allocation3 + $0x78] sm:$0xff]
  %v524 = vld [vmem:[#allocation3 + $0x80] sm:$0xff]
  %v525 = vld [vmem:[#allocation3 + $0x88] sm:$0xff]
  %v526 = vld [vmem:[#allocation3 + $0x90] sm:$0xff]
  %v527 = vld [vmem:[#allocation3 + $0x98] sm:$0xff]
  %v528 = vld [vmem:[#allocation3 + $0xa0] sm:$0xff]
  %v529 = vld [vmem:[#allocation3 + $0xa8] sm:$0xff]
  %v530 = vld [vmem:[#allocation3 + $0xb0] sm:$0xff]
  %v531 = vld [vmem:[#allocation3 + $0xb8] sm:$0xff]
  %v532 = vld [vmem:[#allocation3 + $0xc0] sm:$0xff]
  %v533 = vld [vmem:[#allocation3 + $0xc8] sm:$0xff]
  %v534 = vld [vmem:[#allocation3 + $0xd0] sm:$0xff]
  %v535 = vld [vmem:[#allocation3 + $0xd8] sm:$0xff]
  %v536 = vld [vmem:[#allocation3 + $0xe0] sm:$0xff]
  %v537 = vld [vmem:[#allocation3 + $0xe8] sm:$0xff]
  %v538 = vld [vmem:[#allocation3 + $0xf0] sm:$0xff]
  %v539 = vld [vmem:[#allocation3 + $0xf8] sm:$0xff]
  %v540 = vld [vmem:[#allocation3 + $0x100] sm:$0xff]
  %v541 = vld [vmem:[#allocation3 + $0x108] sm:$0xff]
  %v542 = vld [vmem:[#allocation3 + $0x110] sm:$0xff]
  %v543 = vld [vmem:[#allocation3 + $0x118] sm:$0xff]
  %v544 = vld [vmem:[%s2] sm:$0xff]
  %546 = vset.pattern.permute.xlu0 0
  %547 = vperm.xlu0 %546, %v544
  %v548 = vpop.permute.xlu0 %547
  %vm550 = vcmask 588800
  %v552 = vsel %vm550, %v507, 0
  %554 = vmatprep.subr.mxu0 %v509
  %555 = vmatpush1.msra.mxu0 %v508
  %556 = vmatprep.subr.mxu0 %v513
  %557 = vmatpush1.msra.mxu0 %v512
  %558 = vmatprep.subr.mxu0 %v517
  %559 = vmatpush1.msra.mxu0 %v516
  %560 = vmatprep.subr.mxu0 %v521
  %561 = vmatpush1.msra.mxu0 %v520
  %562 = vmatprep.subr.mxu0 %v525
  %563 = vmatpush1.msra.mxu0 %v524
  %564 = vmatprep.subr.mxu0 %v529
  %565 = vmatpush1.msra.mxu0 %v528
  %566 = vmatprep.subr.mxu0 %v533
  %567 = vmatpush1.msra.mxu0 %v532
  %568 = vmatprep.subr.mxu0 %v537
  %569 = vmatpush1.msra.mxu0 %v536
  %570 = vmatprep.subr.mxu0 %v541
  %571 = vmatpush1.msra.mxu0 %v540
  %572 = vmatprep.subr.mxu0 0.0
  %573 = vmatpush1.msra.mxu0 0.0
  %574 = vmatprep.subr.mxu0 0.0
  %575 = vmatpush1.msra.mxu0 0.0
  %576 = vmatprep.subr.mxu0 0.0
  %577 = vmatpush1.msra.mxu0 0.0
  %578 = vmatprep.subr.mxu0 0.0
  %579 = vmatpush1.msra.mxu0 0.0
  %580 = vmatprep.subr.mxu0 0.0
  %581 = vmatpush1.msra.mxu0 0.0
  %582 = vmatprep.subr.mxu0 0.0
  %583 = vmatpush1.msra.mxu0 0.0
  %584 = vmatprep.subr.mxu0 0.0
  %585 = vmatpush1.msra.mxu0 0.0
  %586 = vmatprep.subr.mxu0 0.0
  %587 = vmatpush1.msra.mxu0 0.0
  %588 = vmatprep.subr.mxu0 0.0
  %589 = vmatpush1.msra.mxu0 0.0
  %590 = vmatprep.subr.mxu0 0.0
  %591 = vmatpush1.msra.mxu0 0.0
  %592 = vmatprep.subr.mxu0 0.0
  %593 = vmatpush1.msra.mxu0 0.0
  %594 = vmatprep.subr.mxu0 0.0
  %595 = vmatpush1.msra.mxu0 0.0
  %596 = vmatprep.subr.mxu0 0.0
  %597 = vmatpush1.msra.mxu0 0.0
  %598 = vmatprep.subr.mxu0 0.0
  %599 = vmatpush1.msra.mxu0 0.0
  %600 = vmatprep.subr.mxu0 0.0
  %601 = vmatpush1.msra.mxu0 0.0
  %602 = vmatprep.subr.mxu0 0.0
  %603 = vmatpush1.msra.mxu0 0.0
  %604 = vmatprep.subr.mxu0 0.0
  %605 = vmatpush1.msra.mxu0 0.0
  %606 = vmatprep.subr.mxu0 0.0
  %607 = vmatpush1.msra.mxu0 0.0
  %608 = vmatprep.subr.mxu0 0.0
  %609 = vmatpush1.msra.mxu0 0.0
  %610 = vmatprep.subr.mxu0 0.0
  %611 = vmatpush1.msra.mxu0 0.0
  %612 = vmatprep.subr.mxu0 0.0
  %613 = vmatpush1.msra.mxu0 0.0
  %614 = vmatprep.subr.mxu0 0.0
  %615 = vmatpush1.msra.mxu0 0.0
  %616 = vmatprep.subr.mxu0 0.0
  %617 = vmatpush1.msra.mxu0 0.0
  %618 = vmatprep.mubr.f32.mxu0 0.0
  %619 = vmatmul.mubr.f32.gmra.mrb[0].mxu0 %v552
  %v620 = vpop.f32.mrb[0].mxu0
  %v621 = vadd.f32 %v548, %v620
  %v622 = vpop.f32.mrb[0].mxu0
  %v623 = vadd.f32 %v548, %v622
  %624 = vdwg.mxu0
  %625 = vmatprep.subr.mxu0 %v511
  %626 = vmatpush1.msra.mxu0 %v510
  %627 = vmatprep.subr.mxu0 %v515
  %628 = vmatpush1.msra.mxu0 %v514
  %629 = vmatprep.subr.mxu0 %v519
  %630 = vmatpush1.msra.mxu0 %v518
  %631 = vmatprep.subr.mxu0 %v523
  %632 = vmatpush1.msra.mxu0 %v522
  %633 = vmatprep.subr.mxu0 %v527
  %634 = vmatpush1.msra.mxu0 %v526
  %635 = vmatprep.subr.mxu0 %v531
  %636 = vmatpush1.msra.mxu0 %v530
  %637 = vmatprep.subr.mxu0 %v535
  %638 = vmatpush1.msra.mxu0 %v534
  %639 = vmatprep.subr.mxu0 %v539
  %640 = vmatpush1.msra.mxu0 %v538
  %641 = vmatprep.subr.mxu0 %v543
  %642 = vmatpush1.msra.mxu0 %v542
  %643 = vmatprep.subr.mxu0 0.0
  %644 = vmatpush1.msra.mxu0 0.0
  %645 = vmatprep.subr.mxu0 0.0
  %646 = vmatpush1.msra.mxu0 0.0
  %647 = vmatprep.subr.mxu0 0.0
  %648 = vmatpush1.msra.mxu0 0.0
  %649 = vmatprep.subr.mxu0 0.0
  %650 = vmatpush1.msra.mxu0 0.0
  %651 = vmatprep.subr.mxu0 0.0
  %652 = vmatpush1.msra.mxu0 0.0
  %653 = vmatprep.subr.mxu0 0.0
  %654 = vmatpush1.msra.mxu0 0.0
  %655 = vmatprep.subr.mxu0 0.0
  %656 = vmatpush1.msra.mxu0 0.0
  %657 = vmatprep.subr.mxu0 0.0
  %658 = vmatpush1.msra.mxu0 0.0
  %659 = vmatprep.subr.mxu0 0.0
  %660 = vmatpush1.msra.mxu0 0.0
  %661 = vmatprep.subr.mxu0 0.0
  %662 = vmatpush1.msra.mxu0 0.0
  %663 = vmatprep.subr.mxu0 0.0
  %664 = vmatpush1.msra.mxu0 0.0
  %665 = vmatprep.subr.mxu0 0.0
  %666 = vmatpush1.msra.mxu0 0.0
  %667 = vmatprep.subr.mxu0 0.0
  %668 = vmatpush1.msra.mxu0 0.0
  %669 = vmatprep.subr.mxu0 0.0
  %670 = vmatpush1.msra.mxu0 0.0
  %671 = vmatprep.subr.mxu0 0.0
  %672 = vmatpush1.msra.mxu0 0.0
  %673 = vmatprep.subr.mxu0 0.0
  %674 = vmatpush1.msra.mxu0 0.0
  %675 = vmatprep.subr.mxu0 0.0
  %676 = vmatpush1.msra.mxu0 0.0
  %677 = vmatprep.subr.mxu0 0.0
  %678 = vmatpush1.msra.mxu0 0.0
  %679 = vmatprep.subr.mxu0 0.0
  %680 = vmatpush1.msra.mxu0 0.0
  %681 = vmatprep.subr.mxu0 0.0
  %682 = vmatpush1.msra.mxu0 0.0
  %683 = vmatprep.subr.mxu0 0.0
  %684 = vmatpush1.msra.mxu0 0.0
  %685 = vmatprep.subr.mxu0 0.0
  %686 = vmatpush1.msra.mxu0 0.0
  %687 = vmatprep.subr.mxu0 0.0
  %688 = vmatpush1.msra.mxu0 0.0
  %689 = vmatprep.mubr.f32.mxu0 0.0
  %690 = vmatmul.mubr.f32.gmra.mrb[0].mxu0 %v552
  %v691 = vpop.f32.mrb[0].mxu0
  %v692 = vadd.f32 %v548, %v691
  %v693 = vpop.f32.mrb[0].mxu0
  %v694 = vadd.f32 %v548, %v693
  %695 = vdwg.mxu0
  %v696 = vmax.f32 %v621, 0.0
  %v697 = vmax.f32 %v623, 0.0
  %v698 = vmax.f32 %v692, 0.0
  %v699 = vmax.f32 %v694, 0.0
  %700 = vst [vmem:[#allocation2 + $0x8] sm:$0xff] %v696
  %701 = vst [vmem:[#allocation2 + $0x10] sm:$0xff] %v697
  %702 = vst [vmem:[#allocation2 + $0x18] sm:$0xff] %v698
  %703 = vst [vmem:[#allocation2 + $0x20] sm:$0xff] %v699
  %v704 = vld [vmem:[#allocation2 + $0x8] sm:$0xff]
  %v705 = vld [vmem:[#allocation2 + $0x10] sm:$0xff]
  %v706 = vld [vmem:[#allocation2 + $0x18] sm:$0xff]
  %v707 = vld [vmem:[#allocation2 + $0x20] sm:$0xff]
  %v708 = vld [vmem:[#allocation2 + $0x8] sm:$0xff]
  %v709 = vld [vmem:[#allocation2 + $0x10] sm:$0xff]
  %v710 = vld [vmem:[#allocation2 + $0x18] sm:$0xff]
  %v711 = vld [vmem:[#allocation2 + $0x20] sm:$0xff]
  %v712 = vld [vmem:[#allocation2 + $0x28] sm:$0xff]
  %718 = vrot.lane.b32.xlu0 %v708, 127
  %v719 = vpop.permute.xlu0 %718
  %720 = vrot.lane.b32.xlu0 %v709, 127
  %v721 = vpop.permute.xlu0 %720
  %722 = vrot.lane.b32.xlu0 %v710, 127
  %v723 = vpop.permute.xlu0 %722
  %724 = vrot.lane.b32.xlu0 %v711, 127
  %v725 = vpop.permute.xlu0 %724
  %726 = vrot.lane.b32.xlu0 %v712, 127
  %v727 = vpop.permute.xlu0 %726
  %v728 = vsel %vm339, %v719, %v721
  %v729 = vsel %vm339, %v721, %v723
  %v730 = vsel %vm339, %v723, %v725
  %v731 = vsel %vm339, %v725, %v727
  %v736 = vmax.f32 %v704, %v728
  %v737 = vmax.f32 %v705, %v729
  %v738 = vmax.f32 %v706, %v730
  %v739 = vmax.f32 %v707, %v731
  %v741 = vmax.f32 %v708, %v728
  %v742 = vmax.f32 %v709, %v729
  %v743 = vmax.f32 %v710, %v730
  %v744 = vmax.f32 %v711, %v731
  %v745 = vmax.f32 %v712, %v727
  %751 = vrot.lane.b32.xlu0 %v741, 112
  %v752 = vpop.permute.xlu0 %751
  %753 = vrot.lane.b32.xlu0 %v742, 112
  %v754 = vpop.permute.xlu0 %753
  %755 = vrot.lane.b32.xlu0 %v743, 112
  %v756 = vpop.permute.xlu0 %755
  %757 = vrot.lane.b32.xlu0 %v744, 112
  %v758 = vpop.permute.xlu0 %757
  %759 = vrot.lane.b32.xlu0 %v745, 112
  %v760 = vpop.permute.xlu0 %759
  %v761 = vsel %vm445, %v752, %v754
  %v762 = vsel %vm445, %v754, %v756
  %v763 = vsel %vm445, %v756, %v758
  %v764 = vsel %vm445, %v758, %v760
  %v769 = vmax.f32 %v736, %v761
  %v770 = vmax.f32 %v737, %v762
  %v771 = vmax.f32 %v738, %v763
  %v772 = vmax.f32 %v739, %v764
  %773 = vst [vmem:[#allocation2 + $0x8] sm:$0xff] %v769
  %774 = vst [vmem:[#allocation2 + $0x10] sm:$0xff] %v770
  %775 = vst [vmem:[#allocation2 + $0x18] sm:$0xff] %v771
  %776 = vst [vmem:[#allocation2 + $0x20] sm:$0xff] %v772
  %v777 = vld [vmem:[#allocation2] sm:$0xff]
  %v778 = vld [vmem:[#allocation2 + $0x8] sm:$0xff]
  %v779 = vld [vmem:[#allocation2 + $0x10] sm:$0xff]
  %v780 = vld [vmem:[#allocation2 + $0x18] sm:$0xff]
  %v781 = vld [vmem:[#allocation2 + $0x20] sm:$0xff]
  %v782 = vadd.s32 %v45, 4294967294
  %v783 = vadd.s32 %v46, 4294967294
  %v784 = vadd.s32 %v47, 4294967294
  %v785 = vadd.s32 %v48, 4294967294
  %v786 = vadd.s32 %v37, 4294967294
  %v787 = vadd.s32 %v38, 4294967294
  %v788 = vadd.s32 %v39, 4294967294
  %v789 = vadd.s32 %v40, 4294967294
  %vm790 = vcmp.ge.s32.totalorder %v782, 0
  %vm791 = vcmp.ge.s32.totalorder %v783, 0
  %vm792 = vcmp.ge.s32.totalorder %v784, 0
  %vm793 = vcmp.ge.s32.totalorder %v785, 0
  %vm794 = vcmp.lt.s32.totalorder %v782, 16
  %vm795 = vcmp.lt.s32.totalorder %v783, 16
  %vm796 = vcmp.lt.s32.totalorder %v784, 16
  %vm797 = vcmp.lt.s32.totalorder %v785, 16
  %vm798 = vmand %vm790, %vm794
  %vm799 = vmand %vm791, %vm795
  %vm800 = vmand %vm792, %vm796
  %vm801 = vmand %vm793, %vm797
  %vm802 = vcmp.ge.s32.totalorder %v786, 0
  %vm803 = vcmp.ge.s32.totalorder %v787, 0
  %vm804 = vcmp.ge.s32.totalorder %v788, 0
  %vm805 = vcmp.ge.s32.totalorder %v789, 0
  %vm806 = vmand %vm798, %vm802
  %vm807 = vmand %vm799, %vm803
  %vm808 = vmand %vm800, %vm804
  %vm809 = vmand %vm801, %vm805
  %vm810 = vcmp.lt.s32.totalorder %v786, 16
  %vm811 = vcmp.lt.s32.totalorder %v787, 16
  %vm812 = vcmp.lt.s32.totalorder %v788, 16
  %vm813 = vcmp.lt.s32.totalorder %v789, 16
  %vm814 = vmand %vm806, %vm810
  %vm815 = vmand %vm807, %vm811
  %vm816 = vmand %vm808, %vm812
  %vm817 = vmand %vm809, %vm813
  %823 = vrot.lane.b32.xlu0 %v777, 34
  %v824 = vpop.permute.xlu0 %823
  %825 = vrot.lane.b32.xlu0 %v778, 34
  %v826 = vpop.permute.xlu0 %825
  %827 = vrot.lane.b32.xlu0 %v779, 34
  %v828 = vpop.permute.xlu0 %827
  %829 = vrot.lane.b32.xlu0 %v780, 34
  %v830 = vpop.permute.xlu0 %829
  %831 = vrot.lane.b32.xlu0 %v781, 34
  %v832 = vpop.permute.xlu0 %831
  %vm833 = vcmask 277504
  %v834 = vsel %vm833, %v824, %v826
  %v835 = vsel %vm833, %v826, %v828
  %v836 = vsel %vm833, %v828, %v830
  %v837 = vsel %vm833, %v830, %v832
  %v842 = vsel %vm814, %v834, 0.0
  %v843 = vsel %vm815, %v835, 0.0
  %v844 = vsel %vm816, %v836, 0.0
  %v845 = vsel %vm817, %v837, 0.0
  %846 = vst [vmem:[#allocation3] sm:$0xff] %v842
  %847 = vst [vmem:[#allocation3 + $0x8] sm:$0xff] %v843
  %848 = vst [vmem:[#allocation3 + $0x10] sm:$0xff] %v844
  %849 = vst [vmem:[#allocation3 + $0x18] sm:$0xff] %v845
  %v850 = vld [vmem:[#allocation2] sm:$0xff]
  %v851 = vld [vmem:[#allocation2 + $0x8] sm:$0xff]
  %v852 = vld [vmem:[#allocation2 + $0x10] sm:$0xff]
  %v853 = vld [vmem:[#allocation2 + $0x18] sm:$0xff]
  %v854 = vld [vmem:[#allocation2 + $0x20] sm:$0xff]
  %vm855 = vmand %vm798, %vm141
  %vm856 = vmand %vm799, %vm142
  %vm857 = vmand %vm800, %vm143
  %vm858 = vmand %vm801, %vm144
  %vm859 = vmand %vm855, %vm149
  %vm860 = vmand %vm856, %vm150
  %vm861 = vmand %vm857, %vm151
  %vm862 = vmand %vm858, %vm152
  %868 = vrot.lane.b32.xlu0 %v850, 32
  %v869 = vpop.permute.xlu0 %868
  %870 = vrot.lane.b32.xlu0 %v851, 32
  %v871 = vpop.permute.xlu0 %870
  %872 = vrot.lane.b32.xlu0 %v852, 32
  %v873 = vpop.permute.xlu0 %872
  %874 = vrot.lane.b32.xlu0 %v853, 32
  %v875 = vpop.permute.xlu0 %874
  %876 = vrot.lane.b32.xlu0 %v854, 32
  %v877 = vpop.permute.xlu0 %876
  %vm878 = vcmask 261120
  %v879 = vsel %vm878, %v869, %v871
  %v880 = vsel %vm878, %v871, %v873
  %v881 = vsel %vm878, %v873, %v875
  %v882 = vsel %vm878, %v875, %v877
  %v887 = vsel %vm859, %v879, 0.0
  %v888 = vsel %vm860, %v880, 0.0
  %v889 = vsel %vm861, %v881, 0.0
  %v890 = vsel %vm862, %v882, 0.0
  %891 = vst [vmem:[#allocation3 + $0x20] sm:$0xff] %v887
  %892 = vst [vmem:[#allocation3 + $0x28] sm:$0xff] %v888
  %893 = vst [vmem:[#allocation3 + $0x30] sm:$0xff] %v889
  %894 = vst [vmem:[#allocation3 + $0x38] sm:$0xff] %v890
  %v895 = vld [vmem:[#allocation2] sm:$0xff]
  %v896 = vld [vmem:[#allocation2 + $0x8] sm:$0xff]
  %v897 = vld [vmem:[#allocation2 + $0x10] sm:$0xff]
  %v898 = vld [vmem:[#allocation2 + $0x18] sm:$0xff]
  %v899 = vld [vmem:[#allocation2 + $0x20] sm:$0xff]
  %v900 = vadd.s32 %v37, 2
  %v901 = vadd.s32 %v38, 2
  %v902 = vadd.s32 %v39, 2
  %v903 = vadd.s32 %v40, 2
  %vm904 = vcmp.ge.s32.totalorder %v900, 0
  %vm905 = vcmp.ge.s32.totalorder %v901, 0
  %vm906 = vcmp.ge.s32.totalorder %v902, 0
  %vm907 = vcmp.ge.s32.totalorder %v903, 0
  %vm908 = vmand %vm798, %vm904
  %vm909 = vmand %vm799, %vm905
  %vm910 = vmand %vm800, %vm906
  %vm911 = vmand %vm801, %vm907
  %vm912 = vcmp.lt.s32.totalorder %v900, 16
  %vm913 = vcmp.lt.s32.totalorder %v901, 16
  %vm914 = vcmp.lt.s32.totalorder %v902, 16
  %vm915 = vcmp.lt.s32.totalorder %v903, 16
  %vm916 = vmand %vm908, %vm912
  %vm917 = vmand %vm909, %vm913
  %vm918 = vmand %vm910, %vm914
  %vm919 = vmand %vm911, %vm915
  %925 = vrot.lane.b32.xlu0 %v895, 30
  %v926 = vpop.permute.xlu0 %925
  %927 = vrot.lane.b32.xlu0 %v896, 30
  %v928 = vpop.permute.xlu0 %927
  %929 = vrot.lane.b32.xlu0 %v897, 30
  %v930 = vpop.permute.xlu0 %929
  %931 = vrot.lane.b32.xlu0 %v898, 30
  %v932 = vpop.permute.xlu0 %931
  %933 = vrot.lane.b32.xlu0 %v899, 30
  %v934 = vpop.permute.xlu0 %933
  %vm935 = vcmask 244736
  %v936 = vsel %vm935, %v926, %v928
  %v937 = vsel %vm935, %v928, %v930
  %v938 = vsel %vm935, %v930, %v932
  %v939 = vsel %vm935, %v932, %v934
  %v944 = vsel %vm916, %v936, 0.0
  %v945 = vsel %vm917, %v937, 0.0
  %v946 = vsel %vm918, %v938, 0.0
  %v947 = vsel %vm919, %v939, 0.0
  %948 = vst [vmem:[#allocation3 + $0x40] sm:$0xff] %v944
  %949 = vst [vmem:[#allocation3 + $0x48] sm:$0xff] %v945
  %950 = vst [vmem:[#allocation3 + $0x50] sm:$0xff] %v946
  %951 = vst [vmem:[#allocation3 + $0x58] sm:$0xff] %v947
  %v952 = vld [vmem:[#allocation2] sm:$0xff]
  %v953 = vld [vmem:[#allocation2 + $0x8] sm:$0xff]
  %v954 = vld [vmem:[#allocation2 + $0x10] sm:$0xff]
  %v955 = vld [vmem:[#allocation2 + $0x18] sm:$0xff]
  %v956 = vld [vmem:[#allocation2 + $0x20] sm:$0xff]
  %vm957 = vmand %vm259, %vm802
  %vm958 = vmand %vm260, %vm803
  %vm959 = vmand %vm261, %vm804
  %vm960 = vmand %vm262, %vm805
  %vm961 = vmand %vm957, %vm810
  %vm962 = vmand %vm958, %vm811
  %vm963 = vmand %vm959, %vm812
  %vm964 = vmand %vm960, %vm813
  %970 = vrot.lane.b32.xlu0 %v952, 2
  %v971 = vpop.permute.xlu0 %970
  %972 = vrot.lane.b32.xlu0 %v953, 2
  %v973 = vpop.permute.xlu0 %972
  %974 = vrot.lane.b32.xlu0 %v954, 2
  %v975 = vpop.permute.xlu0 %974
  %976 = vrot.lane.b32.xlu0 %v955, 2
  %v977 = vpop.permute.xlu0 %976
  %978 = vrot.lane.b32.xlu0 %v956, 2
  %v979 = vpop.permute.xlu0 %978
  %vm980 = vcmask 15360
  %v981 = vsel %vm980, %v971, %v973
  %v982 = vsel %vm980, %v973, %v975
  %v983 = vsel %vm980, %v975, %v977
  %v984 = vsel %vm980, %v977, %v979
  %v989 = vsel %vm961, %v981, 0.0
  %v990 = vsel %vm962, %v982, 0.0
  %v991 = vsel %vm963, %v983, 0.0
  %v992 = vsel %vm964, %v984, 0.0
  %993 = vst [vmem:[#allocation3 + $0x60] sm:$0xff] %v989
  %994 = vst [vmem:[#allocation3 + $0x68] sm:$0xff] %v990
  %995 = vst [vmem:[#allocation3 + $0x70] sm:$0xff] %v991
  %996 = vst [vmem:[#allocation3 + $0x78] sm:$0xff] %v992
  %v997 = vld [vmem:[#allocation2 + $0x8] sm:$0xff]
  %v998 = vld [vmem:[#allocation2 + $0x10] sm:$0xff]
  %v999 = vld [vmem:[#allocation2 + $0x18] sm:$0xff]
  %v1000 = vld [vmem:[#allocation2 + $0x20] sm:$0xff]
  %1001 = vst [vmem:[#allocation3 + $0x80] sm:$0xff] %v997
  %1002 = vst [vmem:[#allocation3 + $0x88] sm:$0xff] %v998
  %1003 = vst [vmem:[#allocation3 + $0x90] sm:$0xff] %v999
  %1004 = vst [vmem:[#allocation3 + $0x98] sm:$0xff] %v1000
  %v1005 = vld [vmem:[#allocation2 + $0x8] sm:$0xff]
  %v1006 = vld [vmem:[#allocation2 + $0x10] sm:$0xff]
  %v1007 = vld [vmem:[#allocation2 + $0x18] sm:$0xff]
  %v1008 = vld [vmem:[#allocation2 + $0x20] sm:$0xff]
  %v1009 = vld [vmem:[#allocation2 + $0x28] sm:$0xff]
  %vm1010 = vmand %vm259, %vm904
  %vm1011 = vmand %vm260, %vm905
  %vm1012 = vmand %vm261, %vm906
  %vm1013 = vmand %vm262, %vm907
  %vm1014 = vmand %vm1010, %vm912
  %vm1015 = vmand %vm1011, %vm913
  %vm1016 = vmand %vm1012, %vm914
  %vm1017 = vmand %vm1013, %vm915
  %1023 = vrot.lane.b32.xlu0 %v1005, 126
  %v1024 = vpop.permute.xlu0 %1023
  %1025 = vrot.lane.b32.xlu0 %v1006, 126
  %v1026 = vpop.permute.xlu0 %1025
  %1027 = vrot.lane.b32.xlu0 %v1007, 126
  %v1028 = vpop.permute.xlu0 %1027
  %1029 = vrot.lane.b32.xlu0 %v1008, 126
  %v1030 = vpop.permute.xlu0 %1029
  %1031 = vrot.lane.b32.xlu0 %v1009, 126
  %v1032 = vpop.permute.xlu0 %1031
  %vm1033 = vcmask 1031168
  %v1034 = vsel %vm1033, %v1024, %v1026
  %v1035 = vsel %vm1033, %v1026, %v1028
  %v1036 = vsel %vm1033, %v1028, %v1030
  %v1037 = vsel %vm1033, %v1030, %v1032
  %v1042 = vsel %vm1014, %v1034, 0.0
  %v1043 = vsel %vm1015, %v1035, 0.0
  %v1044 = vsel %vm1016, %v1036, 0.0
  %v1045 = vsel %vm1017, %v1037, 0.0
  %1046 = vst [vmem:[#allocation3 + $0xa0] sm:$0xff] %v1042
  %1047 = vst [vmem:[#allocation3 + $0xa8] sm:$0xff] %v1043
  %1048 = vst [vmem:[#allocation3 + $0xb0] sm:$0xff] %v1044
  %1049 = vst [vmem:[#allocation3 + $0xb8] sm:$0xff] %v1045
  %v1050 = vld [vmem:[#allocation2 + $0x8] sm:$0xff]
  %v1051 = vld [vmem:[#allocation2 + $0x10] sm:$0xff]
  %v1052 = vld [vmem:[#allocation2 + $0x18] sm:$0xff]
  %v1053 = vld [vmem:[#allocation2 + $0x20] sm:$0xff]
  %v1054 = vld [vmem:[#allocation2 + $0x28] sm:$0xff]
  %v1055 = vadd.s32 %v45, 2
  %v1056 = vadd.s32 %v46, 2
  %v1057 = vadd.s32 %v47, 2
  %v1058 = vadd.s32 %v48, 2
  %vm1059 = vcmp.ge.s32.totalorder %v1055, 0
  %vm1060 = vcmp.ge.s32.totalorder %v1056, 0
  %vm1061 = vcmp.ge.s32.totalorder %v1057, 0
  %vm1062 = vcmp.ge.s32.totalorder %v1058, 0
  %vm1063 = vcmp.lt.s32.totalorder %v1055, 16
  %vm1064 = vcmp.lt.s32.totalorder %v1056, 16
  %vm1065 = vcmp.lt.s32.totalorder %v1057, 16
  %vm1066 = vcmp.lt.s32.totalorder %v1058, 16
  %vm1067 = vmand %vm1059, %vm1063
  %vm1068 = vmand %vm1060, %vm1064
  %vm1069 = vmand %vm1061, %vm1065
  %vm1070 = vmand %vm1062, %vm1066
  %vm1071 = vmand %vm1067, %vm802
  %vm1072 = vmand %vm1068, %vm803
  %vm1073 = vmand %vm1069, %vm804
  %vm1074 = vmand %vm1070, %vm805
  %vm1075 = vmand %vm1071, %vm810
  %vm1076 = vmand %vm1072, %vm811
  %vm1077 = vmand %vm1073, %vm812
  %vm1078 = vmand %vm1074, %vm813
  %1084 = vrot.lane.b32.xlu0 %v1050, 98
  %v1085 = vpop.permute.xlu0 %1084
  %1086 = vrot.lane.b32.xlu0 %v1051, 98
  %v1087 = vpop.permute.xlu0 %1086
  %1088 = vrot.lane.b32.xlu0 %v1052, 98
  %v1089 = vpop.permute.xlu0 %1088
  %1090 = vrot.lane.b32.xlu0 %v1053, 98
  %v1091 = vpop.permute.xlu0 %1090
  %1092 = vrot.lane.b32.xlu0 %v1054, 98
  %v1093 = vpop.permute.xlu0 %1092
  %vm1094 = vcmask 801792
  %v1095 = vsel %vm1094, %v1085, %v1087
  %v1096 = vsel %vm1094, %v1087, %v1089
  %v1097 = vsel %vm1094, %v1089, %v1091
  %v1098 = vsel %vm1094, %v1091, %v1093
  %v1103 = vsel %vm1075, %v1095, 0.0
  %v1104 = vsel %vm1076, %v1096, 0.0
  %v1105 = vsel %vm1077, %v1097, 0.0
  %v1106 = vsel %vm1078, %v1098, 0.0
  %1107 = vst [vmem:[#allocation3 + $0xc0] sm:$0xff] %v1103
  %1108 = vst [vmem:[#allocation3 + $0xc8] sm:$0xff] %v1104
  %1109 = vst [vmem:[#allocation3 + $0xd0] sm:$0xff] %v1105
  %1110 = vst [vmem:[#allocation3 + $0xd8] sm:$0xff] %v1106
  %v1111 = vld [vmem:[#allocation2 + $0x8] sm:$0xff]
  %v1112 = vld [vmem:[#allocation2 + $0x10] sm:$0xff]
  %v1113 = vld [vmem:[#allocation2 + $0x18] sm:$0xff]
  %v1114 = vld [vmem:[#allocation2 + $0x20] sm:$0xff]
  %v1115 = vld [vmem:[#allocation2 + $0x28] sm:$0xff]
  %vm1116 = vmand %vm1067, %vm141
  %vm1117 = vmand %vm1068, %vm142
  %vm1118 = vmand %vm1069, %vm143
  %vm1119 = vmand %vm1070, %vm144
  %vm1120 = vmand %vm1116, %vm149
  %vm1121 = vmand %vm1117, %vm150
  %vm1122 = vmand %vm1118, %vm151
  %vm1123 = vmand %vm1119, %vm152
  %1129 = vrot.lane.b32.xlu0 %v1111, 96
  %v1130 = vpop.permute.xlu0 %1129
  %1131 = vrot.lane.b32.xlu0 %v1112, 96
  %v1132 = vpop.permute.xlu0 %1131
  %1133 = vrot.lane.b32.xlu0 %v1113, 96
  %v1134 = vpop.permute.xlu0 %1133
  %1135 = vrot.lane.b32.xlu0 %v1114, 96
  %v1136 = vpop.permute.xlu0 %1135
  %1137 = vrot.lane.b32.xlu0 %v1115, 96
  %v1138 = vpop.permute.xlu0 %1137
  %vm1139 = vcmask 785408
  %v1140 = vsel %vm1139, %v1130, %v1132
  %v1141 = vsel %vm1139, %v1132, %v1134
  %v1142 = vsel %vm1139, %v1134, %v1136
  %v1143 = vsel %vm1139, %v1136, %v1138
  %v1148 = vsel %vm1120, %v1140, 0.0
  %v1149 = vsel %vm1121, %v1141, 0.0
  %v1150 = vsel %vm1122, %v1142, 0.0
  %v1151 = vsel %vm1123, %v1143, 0.0
  %1152 = vst [vmem:[#allocation3 + $0xe0] sm:$0xff] %v1148
  %1153 = vst [vmem:[#allocation3 + $0xe8] sm:$0xff] %v1149
  %1154 = vst [vmem:[#allocation3 + $0xf0] sm:$0xff] %v1150
  %1155 = vst [vmem:[#allocation3 + $0xf8] sm:$0xff] %v1151
  %v1156 = vld [vmem:[#allocation2 + $0x8] sm:$0xff]
  %v1157 = vld [vmem:[#allocation2 + $0x10] sm:$0xff]
  %v1158 = vld [vmem:[#allocation2 + $0x18] sm:$0xff]
  %v1159 = vld [vmem:[#allocation2 + $0x20] sm:$0xff]
  %v1160 = vld [vmem:[#allocation2 + $0x28] sm:$0xff]
  %vm1161 = vmand %vm1067, %vm904
  %vm1162 = vmand %vm1068, %vm905
  %vm1163 = vmand %vm1069, %vm906
  %vm1164 = vmand %vm1070, %vm907
  %vm1165 = vmand %vm1161, %vm912
  %vm1166 = vmand %vm1162, %vm913
  %vm1167 = vmand %vm1163, %vm914
  %vm1168 = vmand %vm1164, %vm915
  %1174 = vrot.lane.b32.xlu0 %v1156, 94
  %v1175 = vpop.permute.xlu0 %1174
  %1176 = vrot.lane.b32.xlu0 %v1157, 94
  %v1177 = vpop.permute.xlu0 %1176
  %1178 = vrot.lane.b32.xlu0 %v1158, 94
  %v1179 = vpop.permute.xlu0 %1178
  %1180 = vrot.lane.b32.xlu0 %v1159, 94
  %v1181 = vpop.permute.xlu0 %1180
  %1182 = vrot.lane.b32.xlu0 %v1160, 94
  %v1183 = vpop.permute.xlu0 %1182
  %vm1184 = vcmask 769024
  %v1185 = vsel %vm1184, %v1175, %v1177
  %v1186 = vsel %vm1184, %v1177, %v1179
  %v1187 = vsel %vm1184, %v1179, %v1181
  %v1188 = vsel %vm1184, %v1181, %v1183
  %v1193 = vsel %vm1165, %v1185, 0.0
  %v1194 = vsel %vm1166, %v1186, 0.0
  %v1195 = vsel %vm1167, %v1187, 0.0
  %v1196 = vsel %vm1168, %v1188, 0.0
  %1197 = vst [vmem:[#allocation3 + $0x100] sm:$0xff] %v1193
  %1198 = vst [vmem:[#allocation3 + $0x108] sm:$0xff] %v1194
  %1199 = vst [vmem:[#allocation3 + $0x110] sm:$0xff] %v1195
  %1200 = vst [vmem:[#allocation3 + $0x118] sm:$0xff] %v1196
  %v1201 = vld [vmem:[%s3] sm:$0xff]
  %v1202 = vld [vmem:[#allocation3] sm:$0xff]
  %v1203 = vld [vmem:[#allocation3 + $0x8] sm:$0xff]
  %v1204 = vld [vmem:[#allocation3 + $0x10] sm:$0xff]
  %v1205 = vld [vmem:[#allocation3 + $0x18] sm:$0xff]
  %v1206 = vld [vmem:[#allocation3 + $0x20] sm:$0xff]
  %v1207 = vld [vmem:[#allocation3 + $0x28] sm:$0xff]
  %v1208 = vld [vmem:[#allocation3 + $0x30] sm:$0xff]
  %v1209 = vld [vmem:[#allocation3 + $0x38] sm:$0xff]
  %v1210 = vld [vmem:[#allocation3 + $0x40] sm:$0xff]
  %v1211 = vld [vmem:[#allocation3 + $0x48] sm:$0xff]
  %v1212 = vld [vmem:[#allocation3 + $0x50] sm:$0xff]
  %v1213 = vld [vmem:[#allocation3 + $0x58] sm:$0xff]
  %v1214 = vld [vmem:[#allocation3 + $0x60] sm:$0xff]
  %v1215 = vld [vmem:[#allocation3 + $0x68] sm:$0xff]
  %v1216 = vld [vmem:[#allocation3 + $0x70] sm:$0xff]
  %v1217 = vld [vmem:[#allocation3 + $0x78] sm:$0xff]
  %v1218 = vld [vmem:[#allocation3 + $0x80] sm:$0xff]
  %v1219 = vld [vmem:[#allocation3 + $0x88] sm:$0xff]
  %v1220 = vld [vmem:[#allocation3 + $0x90] sm:$0xff]
  %v1221 = vld [vmem:[#allocation3 + $0x98] sm:$0xff]
  %v1222 = vld [vmem:[#allocation3 + $0xa0] sm:$0xff]
  %v1223 = vld [vmem:[#allocation3 + $0xa8] sm:$0xff]
  %v1224 = vld [vmem:[#allocation3 + $0xb0] sm:$0xff]
  %v1225 = vld [vmem:[#allocation3 + $0xb8] sm:$0xff]
  %v1226 = vld [vmem:[#allocation3 + $0xc0] sm:$0xff]
  %v1227 = vld [vmem:[#allocation3 + $0xc8] sm:$0xff]
  %v1228 = vld [vmem:[#allocation3 + $0xd0] sm:$0xff]
  %v1229 = vld [vmem:[#allocation3 + $0xd8] sm:$0xff]
  %v1230 = vld [vmem:[#allocation3 + $0xe0] sm:$0xff]
  %v1231 = vld [vmem:[#allocation3 + $0xe8] sm:$0xff]
  %v1232 = vld [vmem:[#allocation3 + $0xf0] sm:$0xff]
  %v1233 = vld [vmem:[#allocation3 + $0xf8] sm:$0xff]
  %v1234 = vld [vmem:[#allocation3 + $0x100] sm:$0xff]
  %v1235 = vld [vmem:[#allocation3 + $0x108] sm:$0xff]
  %v1236 = vld [vmem:[#allocation3 + $0x110] sm:$0xff]
  %v1237 = vld [vmem:[#allocation3 + $0x118] sm:$0xff]
  %v1238 = vld [vmem:[%s4] sm:$0xff]
  %1240 = vset.pattern.permute.xlu0 0
  %1241 = vperm.xlu0 %1240, %v1238
  %v1242 = vpop.permute.xlu0 %1241
  %v1245 = vsel %vm550, %v1201, 0
  %1247 = vmatprep.subr.mxu0 %v1203
  %1248 = vmatpush1.msra.mxu0 %v1202
  %1249 = vmatprep.subr.mxu0 %v1207
  %1250 = vmatpush1.msra.mxu0 %v1206
  %1251 = vmatprep.subr.mxu0 %v1211
  %1252 = vmatpush1.msra.mxu0 %v1210
  %1253 = vmatprep.subr.mxu0 %v1215
  %1254 = vmatpush1.msra.mxu0 %v1214
  %1255 = vmatprep.subr.mxu0 %v1219
  %1256 = vmatpush1.msra.mxu0 %v1218
  %1257 = vmatprep.subr.mxu0 %v1223
  %1258 = vmatpush1.msra.mxu0 %v1222
  %1259 = vmatprep.subr.mxu0 %v1227
  %1260 = vmatpush1.msra.mxu0 %v1226
  %1261 = vmatprep.subr.mxu0 %v1231
  %1262 = vmatpush1.msra.mxu0 %v1230
  %1263 = vmatprep.subr.mxu0 %v1235
  %1264 = vmatpush1.msra.mxu0 %v1234
  %1265 = vmatprep.subr.mxu0 0.0
  %1266 = vmatpush1.msra.mxu0 0.0
  %1267 = vmatprep.subr.mxu0 0.0
  %1268 = vmatpush1.msra.mxu0 0.0
  %1269 = vmatprep.subr.mxu0 0.0
  %1270 = vmatpush1.msra.mxu0 0.0
  %1271 = vmatprep.subr.mxu0 0.0
  %1272 = vmatpush1.msra.mxu0 0.0
  %1273 = vmatprep.subr.mxu0 0.0
  %1274 = vmatpush1.msra.mxu0 0.0
  %1275 = vmatprep.subr.mxu0 0.0
  %1276 = vmatpush1.msra.mxu0 0.0
  %1277 = vmatprep.subr.mxu0 0.0
  %1278 = vmatpush1.msra.mxu0 0.0
  %1279 = vmatprep.subr.mxu0 0.0
  %1280 = vmatpush1.msra.mxu0 0.0
  %1281 = vmatprep.subr.mxu0 0.0
  %1282 = vmatpush1.msra.mxu0 0.0
  %1283 = vmatprep.subr.mxu0 0.0
  %1284 = vmatpush1.msra.mxu0 0.0
  %1285 = vmatprep.subr.mxu0 0.0
  %1286 = vmatpush1.msra.mxu0 0.0
  %1287 = vmatprep.subr.mxu0 0.0
  %1288 = vmatpush1.msra.mxu0 0.0
  %1289 = vmatprep.subr.mxu0 0.0
  %1290 = vmatpush1.msra.mxu0 0.0
  %1291 = vmatprep.subr.mxu0 0.0
  %1292 = vmatpush1.msra.mxu0 0.0
  %1293 = vmatprep.subr.mxu0 0.0
  %1294 = vmatpush1.msra.mxu0 0.0
  %1295 = vmatprep.subr.mxu0 0.0
  %1296 = vmatpush1.msra.mxu0 0.0
  %1297 = vmatprep.subr.mxu0 0.0
  %1298 = vmatpush1.msra.mxu0 0.0
  %1299 = vmatprep.subr.mxu0 0.0
  %1300 = vmatpush1.msra.mxu0 0.0
  %1301 = vmatprep.subr.mxu0 0.0
  %1302 = vmatpush1.msra.mxu0 0.0
  %1303 = vmatprep.subr.mxu0 0.0
  %1304 = vmatpush1.msra.mxu0 0.0
  %1305 = vmatprep.subr.mxu0 0.0
  %1306 = vmatpush1.msra.mxu0 0.0
  %1307 = vmatprep.subr.mxu0 0.0
  %1308 = vmatpush1.msra.mxu0 0.0
  %1309 = vmatprep.subr.mxu0 0.0
  %1310 = vmatpush1.msra.mxu0 0.0
  %1311 = vmatprep.mubr.f32.mxu0 0.0
  %1312 = vmatmul.mubr.f32.gmra.mrb[0].mxu0 %v1245
  %v1313 = vpop.f32.mrb[0].mxu0
  %v1314 = vadd.f32 %v1242, %v1313
  %v1315 = vpop.f32.mrb[0].mxu0
  %v1316 = vadd.f32 %v1242, %v1315
  %1317 = vdwg.mxu0
  %1318 = vmatprep.subr.mxu0 %v1205
  %1319 = vmatpush1.msra.mxu0 %v1204
  %1320 = vmatprep.subr.mxu0 %v1209
  %1321 = vmatpush1.msra.mxu0 %v1208
  %1322 = vmatprep.subr.mxu0 %v1213
  %1323 = vmatpush1.msra.mxu0 %v1212
  %1324 = vmatprep.subr.mxu0 %v1217
  %1325 = vmatpush1.msra.mxu0 %v1216
  %1326 = vmatprep.subr.mxu0 %v1221
  %1327 = vmatpush1.msra.mxu0 %v1220
  %1328 = vmatprep.subr.mxu0 %v1225
  %1329 = vmatpush1.msra.mxu0 %v1224
  %1330 = vmatprep.subr.mxu0 %v1229
  %1331 = vmatpush1.msra.mxu0 %v1228
  %1332 = vmatprep.subr.mxu0 %v1233
  %1333 = vmatpush1.msra.mxu0 %v1232
  %1334 = vmatprep.subr.mxu0 %v1237
  %1335 = vmatpush1.msra.mxu0 %v1236
  %1336 = vmatprep.subr.mxu0 0.0
  %1337 = vmatpush1.msra.mxu0 0.0
  %1338 = vmatprep.subr.mxu0 0.0
  %1339 = vmatpush1.msra.mxu0 0.0
  %1340 = vmatprep.subr.mxu0 0.0
  %1341 = vmatpush1.msra.mxu0 0.0
  %1342 = vmatprep.subr.mxu0 0.0
  %1343 = vmatpush1.msra.mxu0 0.0
  %1344 = vmatprep.subr.mxu0 0.0
  %1345 = vmatpush1.msra.mxu0 0.0
  %1346 = vmatprep.subr.mxu0 0.0
  %1347 = vmatpush1.msra.mxu0 0.0
  %1348 = vmatprep.subr.mxu0 0.0
  %1349 = vmatpush1.msra.mxu0 0.0
  %1350 = vmatprep.subr.mxu0 0.0
  %1351 = vmatpush1.msra.mxu0 0.0
  %1352 = vmatprep.subr.mxu0 0.0
  %1353 = vmatpush1.msra.mxu0 0.0
  %1354 = vmatprep.subr.mxu0 0.0
  %1355 = vmatpush1.msra.mxu0 0.0
  %1356 = vmatprep.subr.mxu0 0.0
  %1357 = vmatpush1.msra.mxu0 0.0
  %1358 = vmatprep.subr.mxu0 0.0
  %1359 = vmatpush1.msra.mxu0 0.0
  %1360 = vmatprep.subr.mxu0 0.0
  %1361 = vmatpush1.msra.mxu0 0.0
  %1362 = vmatprep.subr.mxu0 0.0
  %1363 = vmatpush1.msra.mxu0 0.0
  %1364 = vmatprep.subr.mxu0 0.0
  %1365 = vmatpush1.msra.mxu0 0.0
  %1366 = vmatprep.subr.mxu0 0.0
  %1367 = vmatpush1.msra.mxu0 0.0
  %1368 = vmatprep.subr.mxu0 0.0
  %1369 = vmatpush1.msra.mxu0 0.0
  %1370 = vmatprep.subr.mxu0 0.0
  %1371 = vmatpush1.msra.mxu0 0.0
  %1372 = vmatprep.subr.mxu0 0.0
  %1373 = vmatpush1.msra.mxu0 0.0
  %1374 = vmatprep.subr.mxu0 0.0
  %1375 = vmatpush1.msra.mxu0 0.0
  %1376 = vmatprep.subr.mxu0 0.0
  %1377 = vmatpush1.msra.mxu0 0.0
  %1378 = vmatprep.subr.mxu0 0.0
  %1379 = vmatpush1.msra.mxu0 0.0
  %1380 = vmatprep.subr.mxu0 0.0
  %1381 = vmatpush1.msra.mxu0 0.0
  %1382 = vmatprep.mubr.f32.mxu0 0.0
  %1383 = vmatmul.mubr.f32.gmra.mrb[0].mxu0 %v1245
  %v1384 = vpop.f32.mrb[0].mxu0
  %v1385 = vadd.f32 %v1242, %v1384
  %v1386 = vpop.f32.mrb[0].mxu0
  %v1387 = vadd.f32 %v1242, %v1386
  %1388 = vdwg.mxu0
  %v1389 = vmax.f32 %v1314, 0.0
  %v1390 = vmax.f32 %v1316, 0.0
  %v1391 = vmax.f32 %v1385, 0.0
  %v1392 = vmax.f32 %v1387, 0.0
  %1393 = vst [vmem:[#allocation2 + $0x8] sm:$0xff] %v1389
  %1394 = vst [vmem:[#allocation2 + $0x10] sm:$0xff] %v1390
  %1395 = vst [vmem:[#allocation2 + $0x18] sm:$0xff] %v1391
  %1396 = vst [vmem:[#allocation2 + $0x20] sm:$0xff] %v1392
  %v1397 = vld [vmem:[#allocation2 + $0x8] sm:$0xff]
  %v1398 = vld [vmem:[#allocation2 + $0x10] sm:$0xff]
  %v1399 = vld [vmem:[#allocation2 + $0x18] sm:$0xff]
  %v1400 = vld [vmem:[#allocation2 + $0x20] sm:$0xff]
  %v1401 = vld [vmem:[#allocation2 + $0x8] sm:$0xff]
  %v1402 = vld [vmem:[#allocation2 + $0x10] sm:$0xff]
  %v1403 = vld [vmem:[#allocation2 + $0x18] sm:$0xff]
  %v1404 = vld [vmem:[#allocation2 + $0x20] sm:$0xff]
  %v1405 = vld [vmem:[#allocation2 + $0x28] sm:$0xff]
  %1411 = vrot.lane.b32.xlu0 %v1401, 126
  %v1412 = vpop.permute.xlu0 %1411
  %1413 = vrot.lane.b32.xlu0 %v1402, 126
  %v1414 = vpop.permute.xlu0 %1413
  %1415 = vrot.lane.b32.xlu0 %v1403, 126
  %v1416 = vpop.permute.xlu0 %1415
  %1417 = vrot.lane.b32.xlu0 %v1404, 126
  %v1418 = vpop.permute.xlu0 %1417
  %1419 = vrot.lane.b32.xlu0 %v1405, 126
  %v1420 = vpop.permute.xlu0 %1419
  %v1421 = vsel %vm1033, %v1412, %v1414
  %v1422 = vsel %vm1033, %v1414, %v1416
  %v1423 = vsel %vm1033, %v1416, %v1418
  %v1424 = vsel %vm1033, %v1418, %v1420
  %v1429 = vmax.f32 %v1397, %v1421
  %v1430 = vmax.f32 %v1398, %v1422
  %v1431 = vmax.f32 %v1399, %v1423
  %v1432 = vmax.f32 %v1400, %v1424
  %v1434 = vmax.f32 %v1401, %v1421
  %v1435 = vmax.f32 %v1402, %v1422
  %v1436 = vmax.f32 %v1403, %v1423
  %v1437 = vmax.f32 %v1404, %v1424
  %v1438 = vmax.f32 %v1405, %v1420
  %1444 = vrot.lane.b32.xlu0 %v1434, 96
  %v1445 = vpop.permute.xlu0 %1444
  %1446 = vrot.lane.b32.xlu0 %v1435, 96
  %v1447 = vpop.permute.xlu0 %1446
  %1448 = vrot.lane.b32.xlu0 %v1436, 96
  %v1449 = vpop.permute.xlu0 %1448
  %1450 = vrot.lane.b32.xlu0 %v1437, 96
  %v1451 = vpop.permute.xlu0 %1450
  %1452 = vrot.lane.b32.xlu0 %v1438, 96
  %v1453 = vpop.permute.xlu0 %1452
  %v1454 = vsel %vm1139, %v1445, %v1447
  %v1455 = vsel %vm1139, %v1447, %v1449
  %v1456 = vsel %vm1139, %v1449, %v1451
  %v1457 = vsel %vm1139, %v1451, %v1453
  %v1462 = vmax.f32 %v1429, %v1454
  %v1463 = vmax.f32 %v1430, %v1455
  %v1464 = vmax.f32 %v1431, %v1456
  %v1465 = vmax.f32 %v1432, %v1457
  %1466 = vst [vmem:[#allocation2 + $0x8] sm:$0xff] %v1462
  %1467 = vst [vmem:[#allocation2 + $0x10] sm:$0xff] %v1463
  %1468 = vst [vmem:[#allocation2 + $0x18] sm:$0xff] %v1464
  %1469 = vst [vmem:[#allocation2 + $0x20] sm:$0xff] %v1465
  %v1470 = vld [vmem:[#allocation2] sm:$0xff]
  %v1471 = vld [vmem:[#allocation2 + $0x8] sm:$0xff]
  %v1472 = vld [vmem:[#allocation2 + $0x10] sm:$0xff]
  %v1473 = vld [vmem:[#allocation2 + $0x18] sm:$0xff]
  %v1474 = vld [vmem:[#allocation2 + $0x20] sm:$0xff]
  %v1475 = vadd.s32 %v45, 4294967292
  %v1476 = vadd.s32 %v46, 4294967292
  %v1477 = vadd.s32 %v47, 4294967292
  %v1478 = vadd.s32 %v48, 4294967292
  %v1479 = vadd.s32 %v37, 4294967292
  %v1480 = vadd.s32 %v38, 4294967292
  %v1481 = vadd.s32 %v39, 4294967292
  %v1482 = vadd.s32 %v40, 4294967292
  %vm1483 = vcmp.ge.s32.totalorder %v1475, 0
  %vm1484 = vcmp.ge.s32.totalorder %v1476, 0
  %vm1485 = vcmp.ge.s32.totalorder %v1477, 0
  %vm1486 = vcmp.ge.s32.totalorder %v1478, 0
  %vm1487 = vcmp.lt.s32.totalorder %v1475, 16
  %vm1488 = vcmp.lt.s32.totalorder %v1476, 16
  %vm1489 = vcmp.lt.s32.totalorder %v1477, 16
  %vm1490 = vcmp.lt.s32.totalorder %v1478, 16
  %vm1491 = vmand %vm1483, %vm1487
  %vm1492 = vmand %vm1484, %vm1488
  %vm1493 = vmand %vm1485, %vm1489
  %vm1494 = vmand %vm1486, %vm1490
  %vm1495 = vcmp.ge.s32.totalorder %v1479, 0
  %vm1496 = vcmp.ge.s32.totalorder %v1480, 0
  %vm1497 = vcmp.ge.s32.totalorder %v1481, 0
  %vm1498 = vcmp.ge.s32.totalorder %v1482, 0
  %vm1499 = vmand %vm1491, %vm1495
  %vm1500 = vmand %vm1492, %vm1496
  %vm1501 = vmand %vm1493, %vm1497
  %vm1502 = vmand %vm1494, %vm1498
  %vm1503 = vcmp.lt.s32.totalorder %v1479, 16
  %vm1504 = vcmp.lt.s32.totalorder %v1480, 16
  %vm1505 = vcmp.lt.s32.totalorder %v1481, 16
  %vm1506 = vcmp.lt.s32.totalorder %v1482, 16
  %vm1507 = vmand %vm1499, %vm1503
  %vm1508 = vmand %vm1500, %vm1504
  %vm1509 = vmand %vm1501, %vm1505
  %vm1510 = vmand %vm1502, %vm1506
  %1516 = vrot.lane.b32.xlu0 %v1470, 68
  %v1517 = vpop.permute.xlu0 %1516
  %1518 = vrot.lane.b32.xlu0 %v1471, 68
  %v1519 = vpop.permute.xlu0 %1518
  %1520 = vrot.lane.b32.xlu0 %v1472, 68
  %v1521 = vpop.permute.xlu0 %1520
  %1522 = vrot.lane.b32.xlu0 %v1473, 68
  %v1523 = vpop.permute.xlu0 %1522
  %1524 = vrot.lane.b32.xlu0 %v1474, 68
  %v1525 = vpop.permute.xlu0 %1524
  %vm1526 = vcmask 556032
  %v1527 = vsel %vm1526, %v1517, %v1519
  %v1528 = vsel %vm1526, %v1519, %v1521
  %v1529 = vsel %vm1526, %v1521, %v1523
  %v1530 = vsel %vm1526, %v1523, %v1525
  %v1535 = vsel %vm1507, %v1527, 0.0
  %v1536 = vsel %vm1508, %v1528, 0.0
  %v1537 = vsel %vm1509, %v1529, 0.0
  %v1538 = vsel %vm1510, %v1530, 0.0
  %1539 = vst [vmem:[#allocation3] sm:$0xff] %v1535
  %1540 = vst [vmem:[#allocation3 + $0x8] sm:$0xff] %v1536
  %1541 = vst [vmem:[#allocation3 + $0x10] sm:$0xff] %v1537
  %1542 = vst [vmem:[#allocation3 + $0x18] sm:$0xff] %v1538
  %v1543 = vld [vmem:[#allocation2] sm:$0xff]
  %v1544 = vld [vmem:[#allocation2 + $0x8] sm:$0xff]
  %v1545 = vld [vmem:[#allocation2 + $0x10] sm:$0xff]
  %v1546 = vld [vmem:[#allocation2 + $0x18] sm:$0xff]
  %v1547 = vld [vmem:[#allocation2 + $0x20] sm:$0xff]
  %vm1548 = vmand %vm1491, %vm141
  %vm1549 = vmand %vm1492, %vm142
  %vm1550 = vmand %vm1493, %vm143
  %vm1551 = vmand %vm1494, %vm144
  %vm1552 = vmand %vm1548, %vm149
  %vm1553 = vmand %vm1549, %vm150
  %vm1554 = vmand %vm1550, %vm151
  %vm1555 = vmand %vm1551, %vm152
  %1561 = vrot.lane.b32.xlu0 %v1543, 64
  %v1562 = vpop.permute.xlu0 %1561
  %1563 = vrot.lane.b32.xlu0 %v1544, 64
  %v1564 = vpop.permute.xlu0 %1563
  %1565 = vrot.lane.b32.xlu0 %v1545, 64
  %v1566 = vpop.permute.xlu0 %1565
  %1567 = vrot.lane.b32.xlu0 %v1546, 64
  %v1568 = vpop.permute.xlu0 %1567
  %1569 = vrot.lane.b32.xlu0 %v1547, 64
  %v1570 = vpop.permute.xlu0 %1569
  %vm1571 = vcmask 523264
  %v1572 = vsel %vm1571, %v1562, %v1564
  %v1573 = vsel %vm1571, %v1564, %v1566
  %v1574 = vsel %vm1571, %v1566, %v1568
  %v1575 = vsel %vm1571, %v1568, %v1570
  %v1580 = vsel %vm1552, %v1572, 0.0
  %v1581 = vsel %vm1553, %v1573, 0.0
  %v1582 = vsel %vm1554, %v1574, 0.0
  %v1583 = vsel %vm1555, %v1575, 0.0
  %1584 = vst [vmem:[#allocation3 + $0x20] sm:$0xff] %v1580
  %1585 = vst [vmem:[#allocation3 + $0x28] sm:$0xff] %v1581
  %1586 = vst [vmem:[#allocation3 + $0x30] sm:$0xff] %v1582
  %1587 = vst [vmem:[#allocation3 + $0x38] sm:$0xff] %v1583
  %v1588 = vld [vmem:[#allocation2] sm:$0xff]
  %v1589 = vld [vmem:[#allocation2 + $0x8] sm:$0xff]
  %v1590 = vld [vmem:[#allocation2 + $0x10] sm:$0xff]
  %v1591 = vld [vmem:[#allocation2 + $0x18] sm:$0xff]
  %v1592 = vld [vmem:[#allocation2 + $0x20] sm:$0xff]
  %v1593 = vadd.s32 %v37, 4
  %v1594 = vadd.s32 %v38, 4
  %v1595 = vadd.s32 %v39, 4
  %v1596 = vadd.s32 %v40, 4
  %vm1597 = vcmp.ge.s32.totalorder %v1593, 0
  %vm1598 = vcmp.ge.s32.totalorder %v1594, 0
  %vm1599 = vcmp.ge.s32.totalorder %v1595, 0
  %vm1600 = vcmp.ge.s32.totalorder %v1596, 0
  %vm1601 = vmand %vm1491, %vm1597
  %vm1602 = vmand %vm1492, %vm1598
  %vm1603 = vmand %vm1493, %vm1599
  %vm1604 = vmand %vm1494, %vm1600
  %vm1605 = vcmp.lt.s32.totalorder %v1593, 16
  %vm1606 = vcmp.lt.s32.totalorder %v1594, 16
  %vm1607 = vcmp.lt.s32.totalorder %v1595, 16
  %vm1608 = vcmp.lt.s32.totalorder %v1596, 16
  %vm1609 = vmand %vm1601, %vm1605
  %vm1610 = vmand %vm1602, %vm1606
  %vm1611 = vmand %vm1603, %vm1607
  %vm1612 = vmand %vm1604, %vm1608
  %1618 = vrot.lane.b32.xlu0 %v1588, 60
  %v1619 = vpop.permute.xlu0 %1618
  %1620 = vrot.lane.b32.xlu0 %v1589, 60
  %v1621 = vpop.permute.xlu0 %1620
  %1622 = vrot.lane.b32.xlu0 %v1590, 60
  %v1623 = vpop.permute.xlu0 %1622
  %1624 = vrot.lane.b32.xlu0 %v1591, 60
  %v1625 = vpop.permute.xlu0 %1624
  %1626 = vrot.lane.b32.xlu0 %v1592, 60
  %v1627 = vpop.permute.xlu0 %1626
  %vm1628 = vcmask 490496
  %v1629 = vsel %vm1628, %v1619, %v1621
  %v1630 = vsel %vm1628, %v1621, %v1623
  %v1631 = vsel %vm1628, %v1623, %v1625
  %v1632 = vsel %vm1628, %v1625, %v1627
  %v1637 = vsel %vm1609, %v1629, 0.0
  %v1638 = vsel %vm1610, %v1630, 0.0
  %v1639 = vsel %vm1611, %v1631, 0.0
  %v1640 = vsel %vm1612, %v1632, 0.0
  %1641 = vst [vmem:[#allocation3 + $0x40] sm:$0xff] %v1637
  %1642 = vst [vmem:[#allocation3 + $0x48] sm:$0xff] %v1638
  %1643 = vst [vmem:[#allocation3 + $0x50] sm:$0xff] %v1639
  %1644 = vst [vmem:[#allocation3 + $0x58] sm:$0xff] %v1640
  %v1645 = vld [vmem:[#allocation2] sm:$0xff]
  %v1646 = vld [vmem:[#allocation2 + $0x8] sm:$0xff]
  %v1647 = vld [vmem:[#allocation2 + $0x10] sm:$0xff]
  %v1648 = vld [vmem:[#allocation2 + $0x18] sm:$0xff]
  %v1649 = vld [vmem:[#allocation2 + $0x20] sm:$0xff]
  %vm1650 = vmand %vm259, %vm1495
  %vm1651 = vmand %vm260, %vm1496
  %vm1652 = vmand %vm261, %vm1497
  %vm1653 = vmand %vm262, %vm1498
  %vm1654 = vmand %vm1650, %vm1503
  %vm1655 = vmand %vm1651, %vm1504
  %vm1656 = vmand %vm1652, %vm1505
  %vm1657 = vmand %vm1653, %vm1506
  %1663 = vrot.lane.b32.xlu0 %v1645, 4
  %v1664 = vpop.permute.xlu0 %1663
  %1665 = vrot.lane.b32.xlu0 %v1646, 4
  %v1666 = vpop.permute.xlu0 %1665
  %1667 = vrot.lane.b32.xlu0 %v1647, 4
  %v1668 = vpop.permute.xlu0 %1667
  %1669 = vrot.lane.b32.xlu0 %v1648, 4
  %v1670 = vpop.permute.xlu0 %1669
  %1671 = vrot.lane.b32.xlu0 %v1649, 4
  %v1672 = vpop.permute.xlu0 %1671
  %vm1673 = vcmask 31744
  %v1674 = vsel %vm1673, %v1664, %v1666
  %v1675 = vsel %vm1673, %v1666, %v1668
  %v1676 = vsel %vm1673, %v1668, %v1670
  %v1677 = vsel %vm1673, %v1670, %v1672
  %v1682 = vsel %vm1654, %v1674, 0.0
  %v1683 = vsel %vm1655, %v1675, 0.0
  %v1684 = vsel %vm1656, %v1676, 0.0
  %v1685 = vsel %vm1657, %v1677, 0.0
  %1686 = vst [vmem:[#allocation3 + $0x60] sm:$0xff] %v1682
  %1687 = vst [vmem:[#allocation3 + $0x68] sm:$0xff] %v1683
  %1688 = vst [vmem:[#allocation3 + $0x70] sm:$0xff] %v1684
  %1689 = vst [vmem:[#allocation3 + $0x78] sm:$0xff] %v1685
  %v1690 = vld [vmem:[#allocation2 + $0x8] sm:$0xff]
  %v1691 = vld [vmem:[#allocation2 + $0x10] sm:$0xff]
  %v1692 = vld [vmem:[#allocation2 + $0x18] sm:$0xff]
  %v1693 = vld [vmem:[#allocation2 + $0x20] sm:$0xff]
  %1694 = vst [vmem:[#allocation3 + $0x80] sm:$0xff] %v1690
  %1695 = vst [vmem:[#allocation3 + $0x88] sm:$0xff] %v1691
  %1696 = vst [vmem:[#allocation3 + $0x90] sm:$0xff] %v1692
  %1697 = vst [vmem:[#allocation3 + $0x98] sm:$0xff] %v1693
  %v1698 = vld [vmem:[#allocation2 + $0x8] sm:$0xff]
  %v1699 = vld [vmem:[#allocation2 + $0x10] sm:$0xff]
  %v1700 = vld [vmem:[#allocation2 + $0x18] sm:$0xff]
  %v1701 = vld [vmem:[#allocation2 + $0x20] sm:$0xff]
  %v1702 = vld [vmem:[#allocation2 + $0x28] sm:$0xff]
  %vm1703 = vmand %vm259, %vm1597
  %vm1704 = vmand %vm260, %vm1598
  %vm1705 = vmand %vm261, %vm1599
  %vm1706 = vmand %vm262, %vm1600
  %vm1707 = vmand %vm1703, %vm1605
  %vm1708 = vmand %vm1704, %vm1606
  %vm1709 = vmand %vm1705, %vm1607
  %vm1710 = vmand %vm1706, %vm1608
  %1716 = vrot.lane.b32.xlu0 %v1698, 124
  %v1717 = vpop.permute.xlu0 %1716
  %1718 = vrot.lane.b32.xlu0 %v1699, 124
  %v1719 = vpop.permute.xlu0 %1718
  %1720 = vrot.lane.b32.xlu0 %v1700, 124
  %v1721 = vpop.permute.xlu0 %1720
  %1722 = vrot.lane.b32.xlu0 %v1701, 124
  %v1723 = vpop.permute.xlu0 %1722
  %1724 = vrot.lane.b32.xlu0 %v1702, 124
  %v1725 = vpop.permute.xlu0 %1724
  %vm1726 = vcmask 1014784
  %v1727 = vsel %vm1726, %v1717, %v1719
  %v1728 = vsel %vm1726, %v1719, %v1721
  %v1729 = vsel %vm1726, %v1721, %v1723
  %v1730 = vsel %vm1726, %v1723, %v1725
  %v1735 = vsel %vm1707, %v1727, 0.0
  %v1736 = vsel %vm1708, %v1728, 0.0
  %v1737 = vsel %vm1709, %v1729, 0.0
  %v1738 = vsel %vm1710, %v1730, 0.0
  %1739 = vst [vmem:[#allocation3 + $0xa0] sm:$0xff] %v1735
  %1740 = vst [vmem:[#allocation3 + $0xa8] sm:$0xff] %v1736
  %1741 = vst [vmem:[#allocation3 + $0xb0] sm:$0xff] %v1737
  %1742 = vst [vmem:[#allocation3 + $0xb8] sm:$0xff] %v1738
  %v1743 = vld [vmem:[#allocation2 + $0x8] sm:$0xff]
  %v1744 = vld [vmem:[#allocation2 + $0x10] sm:$0xff]
  %v1745 = vld [vmem:[#allocation2 + $0x18] sm:$0xff]
  %v1746 = vld [vmem:[#allocation2 + $0x20] sm:$0xff]
  %v1747 = vld [vmem:[#allocation2 + $0x28] sm:$0xff]
  %v1748 = vadd.s32 %v45, 4
  %v1749 = vadd.s32 %v46, 4
  %v1750 = vadd.s32 %v47, 4
  %v1751 = vadd.s32 %v48, 4
  %vm1752 = vcmp.ge.s32.totalorder %v1748, 0
  %vm1753 = vcmp.ge.s32.totalorder %v1749, 0
  %vm1754 = vcmp.ge.s32.totalorder %v1750, 0
  %vm1755 = vcmp.ge.s32.totalorder %v1751, 0
  %vm1756 = vcmp.lt.s32.totalorder %v1748, 16
  %vm1757 = vcmp.lt.s32.totalorder %v1749, 16
  %vm1758 = vcmp.lt.s32.totalorder %v1750, 16
  %vm1759 = vcmp.lt.s32.totalorder %v1751, 16
  %vm1760 = vmand %vm1752, %vm1756
  %vm1761 = vmand %vm1753, %vm1757
  %vm1762 = vmand %vm1754, %vm1758
  %vm1763 = vmand %vm1755, %vm1759
  %vm1764 = vmand %vm1760, %vm1495
  %vm1765 = vmand %vm1761, %vm1496
  %vm1766 = vmand %vm1762, %vm1497
  %vm1767 = vmand %vm1763, %vm1498
  %vm1768 = vmand %vm1764, %vm1503
  %vm1769 = vmand %vm1765, %vm1504
  %vm1770 = vmand %vm1766, %vm1505
  %vm1771 = vmand %vm1767, %vm1506
  %1777 = vrot.lane.b32.xlu0 %v1743, 68
  %v1778 = vpop.permute.xlu0 %1777
  %1779 = vrot.lane.b32.xlu0 %v1744, 68
  %v1780 = vpop.permute.xlu0 %1779
  %1781 = vrot.lane.b32.xlu0 %v1745, 68
  %v1782 = vpop.permute.xlu0 %1781
  %1783 = vrot.lane.b32.xlu0 %v1746, 68
  %v1784 = vpop.permute.xlu0 %1783
  %1785 = vrot.lane.b32.xlu0 %v1747, 68
  %v1786 = vpop.permute.xlu0 %1785
  %v1787 = vsel %vm1526, %v1778, %v1780
  %v1788 = vsel %vm1526, %v1780, %v1782
  %v1789 = vsel %vm1526, %v1782, %v1784
  %v1790 = vsel %vm1526, %v1784, %v1786
  %v1795 = vsel %vm1768, %v1787, 0.0
  %v1796 = vsel %vm1769, %v1788, 0.0
  %v1797 = vsel %vm1770, %v1789, 0.0
  %v1798 = vsel %vm1771, %v1790, 0.0
  %1799 = vst [vmem:[#allocation3 + $0xc0] sm:$0xff] %v1795
  %1800 = vst [vmem:[#allocation3 + $0xc8] sm:$0xff] %v1796
  %1801 = vst [vmem:[#allocation3 + $0xd0] sm:$0xff] %v1797
  %1802 = vst [vmem:[#allocation3 + $0xd8] sm:$0xff] %v1798
  %v1803 = vld [vmem:[#allocation2 + $0x8] sm:$0xff]
  %v1804 = vld [vmem:[#allocation2 + $0x10] sm:$0xff]
  %v1805 = vld [vmem:[#allocation2 + $0x18] sm:$0xff]
  %v1806 = vld [vmem:[#allocation2 + $0x20] sm:$0xff]
  %v1807 = vld [vmem:[#allocation2 + $0x28] sm:$0xff]
  %vm1808 = vmand %vm1760, %vm141
  %vm1809 = vmand %vm1761, %vm142
  %vm1810 = vmand %vm1762, %vm143
  %vm1811 = vmand %vm1763, %vm144
  %vm1812 = vmand %vm1808, %vm149
  %vm1813 = vmand %vm1809, %vm150
  %vm1814 = vmand %vm1810, %vm151
  %vm1815 = vmand %vm1811, %vm152
  %1821 = vrot.lane.b32.xlu0 %v1803, 64
  %v1822 = vpop.permute.xlu0 %1821
  %1823 = vrot.lane.b32.xlu0 %v1804, 64
  %v1824 = vpop.permute.xlu0 %1823
  %1825 = vrot.lane.b32.xlu0 %v1805, 64
  %v1826 = vpop.permute.xlu0 %1825
  %1827 = vrot.lane.b32.xlu0 %v1806, 64
  %v1828 = vpop.permute.xlu0 %1827
  %1829 = vrot.lane.b32.xlu0 %v1807, 64
  %v1830 = vpop.permute.xlu0 %1829
  %v1831 = vsel %vm1571, %v1822, %v1824
  %v1832 = vsel %vm1571, %v1824, %v1826
  %v1833 = vsel %vm1571, %v1826, %v1828
  %v1834 = vsel %vm1571, %v1828, %v1830
  %v1839 = vsel %vm1812, %v1831, 0.0
  %v1840 = vsel %vm1813, %v1832, 0.0
  %v1841 = vsel %vm1814, %v1833, 0.0
  %v1842 = vsel %vm1815, %v1834, 0.0
  %1843 = vst [vmem:[#allocation3 + $0xe0] sm:$0xff] %v1839
  %1844 = vst [vmem:[#allocation3 + $0xe8] sm:$0xff] %v1840
  %1845 = vst [vmem:[#allocation3 + $0xf0] sm:$0xff] %v1841
  %1846 = vst [vmem:[#allocation3 + $0xf8] sm:$0xff] %v1842
  %v1847 = vld [vmem:[#allocation2 + $0x8] sm:$0xff]
  %v1848 = vld [vmem:[#allocation2 + $0x10] sm:$0xff]
  %v1849 = vld [vmem:[#allocation2 + $0x18] sm:$0xff]
  %v1850 = vld [vmem:[#allocation2 + $0x20] sm:$0xff]
  %v1851 = vld [vmem:[#allocation2 + $0x28] sm:$0xff]
  %vm1852 = vmand %vm1760, %vm1597
  %vm1853 = vmand %vm1761, %vm1598
  %vm1854 = vmand %vm1762, %vm1599
  %vm1855 = vmand %vm1763, %vm1600
  %vm1856 = vmand %vm1852, %vm1605
  %vm1857 = vmand %vm1853, %vm1606
  %vm1858 = vmand %vm1854, %vm1607
  %vm1859 = vmand %vm1855, %vm1608
  %1865 = vrot.lane.b32.xlu0 %v1847, 60
  %v1866 = vpop.permute.xlu0 %1865
  %1867 = vrot.lane.b32.xlu0 %v1848, 60
  %v1868 = vpop.permute.xlu0 %1867
  %1869 = vrot.lane.b32.xlu0 %v1849, 60
  %v1870 = vpop.permute.xlu0 %1869
  %1871 = vrot.lane.b32.xlu0 %v1850, 60
  %v1872 = vpop.permute.xlu0 %1871
  %1873 = vrot.lane.b32.xlu0 %v1851, 60
  %v1874 = vpop.permute.xlu0 %1873
  %v1875 = vsel %vm1628, %v1866, %v1868
  %v1876 = vsel %vm1628, %v1868, %v1870
  %v1877 = vsel %vm1628, %v1870, %v1872
  %v1878 = vsel %vm1628, %v1872, %v1874
  %v1883 = vsel %vm1856, %v1875, 0.0
  %v1884 = vsel %vm1857, %v1876, 0.0
  %v1885 = vsel %vm1858, %v1877, 0.0
  %v1886 = vsel %vm1859, %v1878, 0.0
  %1887 = vst [vmem:[#allocation3 + $0x100] sm:$0xff] %v1883
  %1888 = vst [vmem:[#allocation3 + $0x108] sm:$0xff] %v1884
  %1889 = vst [vmem:[#allocation3 + $0x110] sm:$0xff] %v1885
  %1890 = vst [vmem:[#allocation3 + $0x118] sm:$0xff] %v1886
  %v1891 = vld [vmem:[%s3] sm:$0xff]
  %v1892 = vld [vmem:[#allocation3] sm:$0xff]
  %v1893 = vld [vmem:[#allocation3 + $0x8] sm:$0xff]
  %v1894 = vld [vmem:[#allocation3 + $0x10] sm:$0xff]
  %v1895 = vld [vmem:[#allocation3 + $0x18] sm:$0xff]
  %v1896 = vld [vmem:[#allocation3 + $0x20] sm:$0xff]
  %v1897 = vld [vmem:[#allocation3 + $0x28] sm:$0xff]
  %v1898 = vld [vmem:[#allocation3 + $0x30] sm:$0xff]
  %v1899 = vld [vmem:[#allocation3 + $0x38] sm:$0xff]
  %v1900 = vld [vmem:[#allocation3 + $0x40] sm:$0xff]
  %v1901 = vld [vmem:[#allocation3 + $0x48] sm:$0xff]
  %v1902 = vld [vmem:[#allocation3 + $0x50] sm:$0xff]
  %v1903 = vld [vmem:[#allocation3 + $0x58] sm:$0xff]
  %v1904 = vld [vmem:[#allocation3 + $0x60] sm:$0xff]
  %v1905 = vld [vmem:[#allocation3 + $0x68] sm:$0xff]
  %v1906 = vld [vmem:[#allocation3 + $0x70] sm:$0xff]
  %v1907 = vld [vmem:[#allocation3 + $0x78] sm:$0xff]
  %v1908 = vld [vmem:[#allocation3 + $0x80] sm:$0xff]
  %v1909 = vld [vmem:[#allocation3 + $0x88] sm:$0xff]
  %v1910 = vld [vmem:[#allocation3 + $0x90] sm:$0xff]
  %v1911 = vld [vmem:[#allocation3 + $0x98] sm:$0xff]
  %v1912 = vld [vmem:[#allocation3 + $0xa0] sm:$0xff]
  %v1913 = vld [vmem:[#allocation3 + $0xa8] sm:$0xff]
  %v1914 = vld [vmem:[#allocation3 + $0xb0] sm:$0xff]
  %v1915 = vld [vmem:[#allocation3 + $0xb8] sm:$0xff]
  %v1916 = vld [vmem:[#allocation3 + $0xc0] sm:$0xff]
  %v1917 = vld [vmem:[#allocation3 + $0xc8] sm:$0xff]
  %v1918 = vld [vmem:[#allocation3 + $0xd0] sm:$0xff]
  %v1919 = vld [vmem:[#allocation3 + $0xd8] sm:$0xff]
  %v1920 = vld [vmem:[#allocation3 + $0xe0] sm:$0xff]
  %v1921 = vld [vmem:[#allocation3 + $0xe8] sm:$0xff]
  %v1922 = vld [vmem:[#allocation3 + $0xf0] sm:$0xff]
  %v1923 = vld [vmem:[#allocation3 + $0xf8] sm:$0xff]
  %v1924 = vld [vmem:[#allocation3 + $0x100] sm:$0xff]
  %v1925 = vld [vmem:[#allocation3 + $0x108] sm:$0xff]
  %v1926 = vld [vmem:[#allocation3 + $0x110] sm:$0xff]
  %v1927 = vld [vmem:[#allocation3 + $0x118] sm:$0xff]
  %v1928 = vld [vmem:[%s4] sm:$0xff]
  %1930 = vset.pattern.permute.xlu0 0
  %1931 = vperm.xlu0 %1930, %v1928
  %v1932 = vpop.permute.xlu0 %1931
  %v1935 = vsel %vm550, %v1891, 0
  %1937 = vmatprep.subr.mxu0 %v1893
  %1938 = vmatpush1.msra.mxu0 %v1892
  %1939 = vmatprep.subr.mxu0 %v1897
  %1940 = vmatpush1.msra.mxu0 %v1896
  %1941 = vmatprep.subr.mxu0 %v1901
  %1942 = vmatpush1.msra.mxu0 %v1900
  %1943 = vmatprep.subr.mxu0 %v1905
  %1944 = vmatpush1.msra.mxu0 %v1904
  %1945 = vmatprep.subr.mxu0 %v1909
  %1946 = vmatpush1.msra.mxu0 %v1908
  %1947 = vmatprep.subr.mxu0 %v1913
  %1948 = vmatpush1.msra.mxu0 %v1912
  %1949 = vmatprep.subr.mxu0 %v1917
  %1950 = vmatpush1.msra.mxu0 %v1916
  %1951 = vmatprep.subr.mxu0 %v1921
  %1952 = vmatpush1.msra.mxu0 %v1920
  %1953 = vmatprep.subr.mxu0 %v1925
  %1954 = vmatpush1.msra.mxu0 %v1924
  %1955 = vmatprep.subr.mxu0 0.0
  %1956 = vmatpush1.msra.mxu0 0.0
  %1957 = vmatprep.subr.mxu0 0.0
  %1958 = vmatpush1.msra.mxu0 0.0
  %1959 = vmatprep.subr.mxu0 0.0
  %1960 = vmatpush1.msra.mxu0 0.0
  %1961 = vmatprep.subr.mxu0 0.0
  %1962 = vmatpush1.msra.mxu0 0.0
  %1963 = vmatprep.subr.mxu0 0.0
  %1964 = vmatpush1.msra.mxu0 0.0
  %1965 = vmatprep.subr.mxu0 0.0
  %1966 = vmatpush1.msra.mxu0 0.0
  %1967 = vmatprep.subr.mxu0 0.0
  %1968 = vmatpush1.msra.mxu0 0.0
  %1969 = vmatprep.subr.mxu0 0.0
  %1970 = vmatpush1.msra.mxu0 0.0
  %1971 = vmatprep.subr.mxu0 0.0
  %1972 = vmatpush1.msra.mxu0 0.0
  %1973 = vmatprep.subr.mxu0 0.0
  %1974 = vmatpush1.msra.mxu0 0.0
  %1975 = vmatprep.subr.mxu0 0.0
  %1976 = vmatpush1.msra.mxu0 0.0
  %1977 = vmatprep.subr.mxu0 0.0
  %1978 = vmatpush1.msra.mxu0 0.0
  %1979 = vmatprep.subr.mxu0 0.0
  %1980 = vmatpush1.msra.mxu0 0.0
  %1981 = vmatprep.subr.mxu0 0.0
  %1982 = vmatpush1.msra.mxu0 0.0
  %1983 = vmatprep.subr.mxu0 0.0
  %1984 = vmatpush1.msra.mxu0 0.0
  %1985 = vmatprep.subr.mxu0 0.0
  %1986 = vmatpush1.msra.mxu0 0.0
  %1987 = vmatprep.subr.mxu0 0.0
  %1988 = vmatpush1.msra.mxu0 0.0
  %1989 = vmatprep.subr.mxu0 0.0
  %1990 = vmatpush1.msra.mxu0 0.0
  %1991 = vmatprep.subr.mxu0 0.0
  %1992 = vmatpush1.msra.mxu0 0.0
  %1993 = vmatprep.subr.mxu0 0.0
  %1994 = vmatpush1.msra.mxu0 0.0
  %1995 = vmatprep.subr.mxu0 0.0
  %1996 = vmatpush1.msra.mxu0 0.0
  %1997 = vmatprep.subr.mxu0 0.0
  %1998 = vmatpush1.msra.mxu0 0.0
  %1999 = vmatprep.subr.mxu0 0.0
  %2000 = vmatpush1.msra.mxu0 0.0
  %2001 = vmatprep.mubr.f32.mxu0 0.0
  %2002 = vmatmul.mubr.f32.gmra.mrb[0].mxu0 %v1935
  %v2003 = vpop.f32.mrb[0].mxu0
  %v2004 = vadd.f32 %v1932, %v2003
  %v2005 = vpop.f32.mrb[0].mxu0
  %v2006 = vadd.f32 %v1932, %v2005
  %2007 = vdwg.mxu0
  %2008 = vmatprep.subr.mxu0 %v1895
  %2009 = vmatpush1.msra.mxu0 %v1894
  %2010 = vmatprep.subr.mxu0 %v1899
  %2011 = vmatpush1.msra.mxu0 %v1898
  %2012 = vmatprep.subr.mxu0 %v1903
  %2013 = vmatpush1.msra.mxu0 %v1902
  %2014 = vmatprep.subr.mxu0 %v1907
  %2015 = vmatpush1.msra.mxu0 %v1906
  %2016 = vmatprep.subr.mxu0 %v1911
  %2017 = vmatpush1.msra.mxu0 %v1910
  %2018 = vmatprep.subr.mxu0 %v1915
  %2019 = vmatpush1.msra.mxu0 %v1914
  %2020 = vmatprep.subr.mxu0 %v1919
  %2021 = vmatpush1.msra.mxu0 %v1918
  %2022 = vmatprep.subr.mxu0 %v1923
  %2023 = vmatpush1.msra.mxu0 %v1922
  %2024 = vmatprep.subr.mxu0 %v1927
  %2025 = vmatpush1.msra.mxu0 %v1926
  %2026 = vmatprep.subr.mxu0 0.0
  %2027 = vmatpush1.msra.mxu0 0.0
  %2028 = vmatprep.subr.mxu0 0.0
  %2029 = vmatpush1.msra.mxu0 0.0
  %2030 = vmatprep.subr.mxu0 0.0
  %2031 = vmatpush1.msra.mxu0 0.0
  %2032 = vmatprep.subr.mxu0 0.0
  %2033 = vmatpush1.msra.mxu0 0.0
  %2034 = vmatprep.subr.mxu0 0.0
  %2035 = vmatpush1.msra.mxu0 0.0
  %2036 = vmatprep.subr.mxu0 0.0
  %2037 = vmatpush1.msra.mxu0 0.0
  %2038 = vmatprep.subr.mxu0 0.0
  %2039 = vmatpush1.msra.mxu0 0.0
  %2040 = vmatprep.subr.mxu0 0.0
  %2041 = vmatpush1.msra.mxu0 0.0
  %2042 = vmatprep.subr.mxu0 0.0
  %2043 = vmatpush1.msra.mxu0 0.0
  %2044 = vmatprep.subr.mxu0 0.0
  %2045 = vmatpush1.msra.mxu0 0.0
  %2046 = vmatprep.subr.mxu0 0.0
  %2047 = vmatpush1.msra.mxu0 0.0
  %2048 = vmatprep.subr.mxu0 0.0
  %2049 = vmatpush1.msra.mxu0 0.0
  %2050 = vmatprep.subr.mxu0 0.0
  %2051 = vmatpush1.msra.mxu0 0.0
  %2052 = vmatprep.subr.mxu0 0.0
  %2053 = vmatpush1.msra.mxu0 0.0
  %2054 = vmatprep.subr.mxu0 0.0
  %2055 = vmatpush1.msra.mxu0 0.0
  %2056 = vmatprep.subr.mxu0 0.0
  %2057 = vmatpush1.msra.mxu0 0.0
  %2058 = vmatprep.subr.mxu0 0.0
  %2059 = vmatpush1.msra.mxu0 0.0
  %2060 = vmatprep.subr.mxu0 0.0
  %2061 = vmatpush1.msra.mxu0 0.0
  %2062 = vmatprep.subr.mxu0 0.0
  %2063 = vmatpush1.msra.mxu0 0.0
  %2064 = vmatprep.subr.mxu0 0.0
  %2065 = vmatpush1.msra.mxu0 0.0
  %2066 = vmatprep.subr.mxu0 0.0
  %2067 = vmatpush1.msra.mxu0 0.0
  %2068 = vmatprep.subr.mxu0 0.0
  %2069 = vmatpush1.msra.mxu0 0.0
  %2070 = vmatprep.subr.mxu0 0.0
  %2071 = vmatpush1.msra.mxu0 0.0
  %2072 = vmatprep.mubr.f32.mxu0 0.0
  %2073 = vmatmul.mubr.f32.gmra.mrb[0].mxu0 %v1935
  %v2074 = vpop.f32.mrb[0].mxu0
  %v2075 = vadd.f32 %v1932, %v2074
  %v2076 = vpop.f32.mrb[0].mxu0
  %v2077 = vadd.f32 %v1932, %v2076
  %2078 = vdwg.mxu0
  %v2079 = vmax.f32 %v2004, 0.0
  %v2080 = vmax.f32 %v2006, 0.0
  %v2081 = vmax.f32 %v2075, 0.0
  %v2082 = vmax.f32 %v2077, 0.0
  %2083 = vst [vmem:[#allocation2 + $0x8] sm:$0xff] %v2079
  %2084 = vst [vmem:[#allocation2 + $0x10] sm:$0xff] %v2080
  %2085 = vst [vmem:[#allocation2 + $0x18] sm:$0xff] %v2081
  %2086 = vst [vmem:[#allocation2 + $0x20] sm:$0xff] %v2082
  %v2087 = vld [vmem:[#allocation2 + $0x8] sm:$0xff]
  %v2088 = vld [vmem:[#allocation2 + $0x10] sm:$0xff]
  %v2089 = vld [vmem:[#allocation2 + $0x18] sm:$0xff]
  %v2090 = vld [vmem:[#allocation2 + $0x20] sm:$0xff]
  %v2091 = vld [vmem:[#allocation2 + $0x8] sm:$0xff]
  %v2092 = vld [vmem:[#allocation2 + $0x10] sm:$0xff]
  %v2093 = vld [vmem:[#allocation2 + $0x18] sm:$0xff]
  %v2094 = vld [vmem:[#allocation2 + $0x20] sm:$0xff]
  %v2095 = vld [vmem:[#allocation2 + $0x28] sm:$0xff]
  %2101 = vrot.lane.b32.xlu0 %v2091, 124
  %v2102 = vpop.permute.xlu0 %2101
  %2103 = vrot.lane.b32.xlu0 %v2092, 124
  %v2104 = vpop.permute.xlu0 %2103
  %2105 = vrot.lane.b32.xlu0 %v2093, 124
  %v2106 = vpop.permute.xlu0 %2105
  %2107 = vrot.lane.b32.xlu0 %v2094, 124
  %v2108 = vpop.permute.xlu0 %2107
  %2109 = vrot.lane.b32.xlu0 %v2095, 124
  %v2110 = vpop.permute.xlu0 %2109
  %v2111 = vsel %vm1726, %v2102, %v2104
  %v2112 = vsel %vm1726, %v2104, %v2106
  %v2113 = vsel %vm1726, %v2106, %v2108
  %v2114 = vsel %vm1726, %v2108, %v2110
  %v2119 = vmax.f32 %v2087, %v2111
  %v2120 = vmax.f32 %v2088, %v2112
  %v2121 = vmax.f32 %v2089, %v2113
  %v2122 = vmax.f32 %v2090, %v2114
  %v2124 = vmax.f32 %v2091, %v2111
  %v2125 = vmax.f32 %v2092, %v2112
  %v2126 = vmax.f32 %v2093, %v2113
  %v2127 = vmax.f32 %v2094, %v2114
  %v2128 = vmax.f32 %v2095, %v2110
  %2134 = vrot.lane.b32.xlu0 %v2124, 64
  %v2135 = vpop.permute.xlu0 %2134
  %2136 = vrot.lane.b32.xlu0 %v2125, 64
  %v2137 = vpop.permute.xlu0 %2136
  %2138 = vrot.lane.b32.xlu0 %v2126, 64
  %v2139 = vpop.permute.xlu0 %2138
  %2140 = vrot.lane.b32.xlu0 %v2127, 64
  %v2141 = vpop.permute.xlu0 %2140
  %2142 = vrot.lane.b32.xlu0 %v2128, 64
  %v2143 = vpop.permute.xlu0 %2142
  %v2144 = vsel %vm1571, %v2135, %v2137
  %v2145 = vsel %vm1571, %v2137, %v2139
  %v2146 = vsel %vm1571, %v2139, %v2141
  %v2147 = vsel %vm1571, %v2141, %v2143
  %v2152 = vmax.f32 %v2119, %v2144
  %v2153 = vmax.f32 %v2120, %v2145
  %v2154 = vmax.f32 %v2121, %v2146
  %v2155 = vmax.f32 %v2122, %v2147
  %2156 = vst [vmem:[#allocation2 + $0x8] sm:$0xff] %v2152
  %2157 = vst [vmem:[#allocation2 + $0x10] sm:$0xff] %v2153
  %2158 = vst [vmem:[#allocation2 + $0x18] sm:$0xff] %v2154
  %2159 = vst [vmem:[#allocation2 + $0x20] sm:$0xff] %v2155
  %v2160 = vld [vmem:[#allocation2 + $0x8] sm:$0xff]
  %2161 = vst.msk [vmem:[#allocation4] sm:$0xff] %vm286, %v2160
  %v2162 = vld [vmem:[#allocation2 + $0x8] sm:$0xff]
  %2164 = vrot.lane.b32.xlu0 %v2162, 120
  %v2165 = vpop.permute.xlu0 %2164
  %2167 = vst.msk [vmem:[#allocation4 + $0x8] sm:$0xff] %vm286, %v2165
  %v2168 = vld [vmem:[#allocation2 + $0x10] sm:$0xff]
  %2169 = vst.msk [vmem:[#allocation4 + $0x10] sm:$0xff] %vm286, %v2168
  %v2170 = vld [vmem:[#allocation2 + $0x10] sm:$0xff]
  %2172 = vrot.lane.b32.xlu0 %v2170, 120
  %v2173 = vpop.permute.xlu0 %2172
  %2175 = vst.msk [vmem:[#allocation4 + $0x18] sm:$0xff] %vm286, %v2173
  %v2176 = vld [vmem:[#allocation2 + $0x18] sm:$0xff]
  %2178 = vrot.lane.b32.xlu0 %v2176, 1
  %v2179 = vpop.permute.xlu0 %2178
  %vm2181 = vcmask 15368
  %2182 = vst.msk [vmem:[#allocation4] sm:$0xff] %vm2181, %v2179
  %v2183 = vld [vmem:[#allocation2 + $0x18] sm:$0xff]
  %2185 = vrot.lane.b32.xlu0 %v2183, 121
  %v2186 = vpop.permute.xlu0 %2185
  %2188 = vst.msk [vmem:[#allocation4 + $0x8] sm:$0xff] %vm2181, %v2186
  %v2189 = vld [vmem:[#allocation2 + $0x20] sm:$0xff]
  %2191 = vrot.lane.b32.xlu0 %v2189, 1
  %v2192 = vpop.permute.xlu0 %2191
  %2194 = vst.msk [vmem:[#allocation4 + $0x10] sm:$0xff] %vm2181, %v2192
  %v2195 = vld [vmem:[#allocation2 + $0x20] sm:$0xff]
  %2197 = vrot.lane.b32.xlu0 %v2195, 121
  %v2198 = vpop.permute.xlu0 %2197
  %2200 = vst.msk [vmem:[#allocation4 + $0x18] sm:$0xff] %vm2181, %v2198
  %v2201 = vld [vmem:[%s5] sm:$0xff]
  %v2202 = vld [vmem:[#allocation4] sm:$0xff]
  %v2203 = vld [vmem:[#allocation4 + $0x8] sm:$0xff]
  %v2204 = vld [vmem:[#allocation4 + $0x10] sm:$0xff]
  %v2205 = vld [vmem:[#allocation4 + $0x18] sm:$0xff]
  %v2206 = vld [vmem:[%s6] sm:$0xff]
  %2208 = vset.pattern.permute.xlu0 0
  %2209 = vperm.xlu0 %2208, %v2206
  %v2210 = vpop.permute.xlu0 %2209
  %v2213 = vsel %vm878, %v2201, 0
  %2215 = vmatprep.subr.mxu0 0.0
  %2216 = vmatpush1.msra.mxu0 %v2202
  %2217 = vmatprep.subr.mxu0 0.0
  %2218 = vmatpush1.msra.mxu0 %v2203
  %2219 = vmatprep.subr.mxu0 0.0
  %2220 = vmatpush1.msra.mxu0 %v2204
  %2221 = vmatprep.subr.mxu0 0.0
  %2222 = vmatpush1.msra.mxu0 %v2205
  %2223 = vmatprep.subr.mxu0 0.0
  %2224 = vmatpush1.msra.mxu0 0.0
  %2225 = vmatprep.subr.mxu0 0.0
  %2226 = vmatpush1.msra.mxu0 0.0
  %2227 = vmatprep.subr.mxu0 0.0
  %2228 = vmatpush1.msra.mxu0 0.0
  %2229 = vmatprep.subr.mxu0 0.0
  %2230 = vmatpush1.msra.mxu0 0.0
  %2231 = vmatprep.subr.mxu0 0.0
  %2232 = vmatpush1.msra.mxu0 0.0
  %2233 = vmatprep.subr.mxu0 0.0
  %2234 = vmatpush1.msra.mxu0 0.0
  %2235 = vmatprep.subr.mxu0 0.0
  %2236 = vmatpush1.msra.mxu0 0.0
  %2237 = vmatprep.subr.mxu0 0.0
  %2238 = vmatpush1.msra.mxu0 0.0
  %2239 = vmatprep.subr.mxu0 0.0
  %2240 = vmatpush1.msra.mxu0 0.0
  %2241 = vmatprep.subr.mxu0 0.0
  %2242 = vmatpush1.msra.mxu0 0.0
  %2243 = vmatprep.subr.mxu0 0.0
  %2244 = vmatpush1.msra.mxu0 0.0
  %2245 = vmatprep.subr.mxu0 0.0
  %2246 = vmatpush1.msra.mxu0 0.0
  %2247 = vmatprep.subr.mxu0 0.0
  %2248 = vmatpush1.msra.mxu0 0.0
  %2249 = vmatprep.subr.mxu0 0.0
  %2250 = vmatpush1.msra.mxu0 0.0
  %2251 = vmatprep.subr.mxu0 0.0
  %2252 = vmatpush1.msra.mxu0 0.0
  %2253 = vmatprep.subr.mxu0 0.0
  %2254 = vmatpush1.msra.mxu0 0.0
  %2255 = vmatprep.subr.mxu0 0.0
  %2256 = vmatpush1.msra.mxu0 0.0
  %2257 = vmatprep.subr.mxu0 0.0
  %2258 = vmatpush1.msra.mxu0 0.0
  %2259 = vmatprep.subr.mxu0 0.0
  %2260 = vmatpush1.msra.mxu0 0.0
  %2261 = vmatprep.subr.mxu0 0.0
  %2262 = vmatpush1.msra.mxu0 0.0
  %2263 = vmatprep.subr.mxu0 0.0
  %2264 = vmatpush1.msra.mxu0 0.0
  %2265 = vmatprep.subr.mxu0 0.0
  %2266 = vmatpush1.msra.mxu0 0.0
  %2267 = vmatprep.subr.mxu0 0.0
  %2268 = vmatpush1.msra.mxu0 0.0
  %2269 = vmatprep.subr.mxu0 0.0
  %2270 = vmatpush1.msra.mxu0 0.0
  %2271 = vmatprep.subr.mxu0 0.0
  %2272 = vmatpush1.msra.mxu0 0.0
  %2273 = vmatprep.subr.mxu0 0.0
  %2274 = vmatpush1.msra.mxu0 0.0
  %2275 = vmatprep.subr.mxu0 0.0
  %2276 = vmatpush1.msra.mxu0 0.0
  %2277 = vmatprep.subr.mxu0 0.0
  %2278 = vmatpush1.msra.mxu0 0.0
  %2279 = vmatprep.mubr.f32.mxu0 0.0
  %2280 = vmatmul.mubr.f32.gmra.mrb[0].mxu0 %v2213
  %v2281 = vpop.f32.mrb[0].mxu0
  %v2282 = vadd.f32 %v2210, %v2281
  %v2283 = vpop.f32.mrb[0].mxu0
  %2284 = vdwg.mxu0
  %v2285 = vmax.f32 %v2282, 0.0
  %v2286 = vld [vmem:[%s7] sm:$0xff]
  %v2287 = vld [vmem:[%s7 + $0x8] sm:$0x3]
  %v2288 = vld [vmem:[%s8] sm:$0xff]
  %v2289 = vld [vmem:[%s8 + $0x8] sm:$0x3]
  %2291 = vset.pattern.permute.xlu0 0
  %2292 = vperm.xlu0 %2291, %v2288
  %v2293 = vpop.permute.xlu0 %2292
  %2296 = vset.pattern.permute.xlu0 0
  %2297 = vperm.xlu0 %2296, %v2289
  %v2298 = vpop.permute.xlu0 %2297
  %vm2300 = vcmask 64512
  %v2302 = vsel %vm2300, %v2286, 0
  %v2305 = vsel %vm2300, %v2287, 0
  %2307 = vmatprep.subr.mxu0 0.0
  %2308 = vmatpush1.msra.mxu0 %v2285
  %2309 = vmatprep.subr.mxu0 0.0
  %2310 = vmatpush1.msra.mxu0 0.0
  %2311 = vmatprep.subr.mxu0 0.0
  %2312 = vmatpush1.msra.mxu0 0.0
  %2313 = vmatprep.subr.mxu0 0.0
  %2314 = vmatpush1.msra.mxu0 0.0
  %2315 = vmatprep.subr.mxu0 0.0
  %2316 = vmatpush1.msra.mxu0 0.0
  %2317 = vmatprep.subr.mxu0 0.0
  %2318 = vmatpush1.msra.mxu0 0.0
  %2319 = vmatprep.subr.mxu0 0.0
  %2320 = vmatpush1.msra.mxu0 0.0
  %2321 = vmatprep.subr.mxu0 0.0
  %2322 = vmatpush1.msra.mxu0 0.0
  %2323 = vmatprep.subr.mxu0 0.0
  %2324 = vmatpush1.msra.mxu0 0.0
  %2325 = vmatprep.subr.mxu0 0.0
  %2326 = vmatpush1.msra.mxu0 0.0
  %2327 = vmatprep.subr.mxu0 0.0
  %2328 = vmatpush1.msra.mxu0 0.0
  %2329 = vmatprep.subr.mxu0 0.0
  %2330 = vmatpush1.msra.mxu0 0.0
  %2331 = vmatprep.subr.mxu0 0.0
  %2332 = vmatpush1.msra.mxu0 0.0
  %2333 = vmatprep.subr.mxu0 0.0
  %2334 = vmatpush1.msra.mxu0 0.0
  %2335 = vmatprep.subr.mxu0 0.0
  %2336 = vmatpush1.msra.mxu0 0.0
  %2337 = vmatprep.subr.mxu0 0.0
  %2338 = vmatpush1.msra.mxu0 0.0
  %2339 = vmatprep.subr.mxu0 0.0
  %2340 = vmatpush1.msra.mxu0 0.0
  %2341 = vmatprep.subr.mxu0 0.0
  %2342 = vmatpush1.msra.mxu0 0.0
  %2343 = vmatprep.subr.mxu0 0.0
  %2344 = vmatpush1.msra.mxu0 0.0
  %2345 = vmatprep.subr.mxu0 0.0
  %2346 = vmatpush1.msra.mxu0 0.0
  %2347 = vmatprep.subr.mxu0 0.0
  %2348 = vmatpush1.msra.mxu0 0.0
  %2349 = vmatprep.subr.mxu0 0.0
  %2350 = vmatpush1.msra.mxu0 0.0
  %2351 = vmatprep.subr.mxu0 0.0
  %2352 = vmatpush1.msra.mxu0 0.0
  %2353 = vmatprep.subr.mxu0 0.0
  %2354 = vmatpush1.msra.mxu0 0.0
  %2355 = vmatprep.subr.mxu0 0.0
  %2356 = vmatpush1.msra.mxu0 0.0
  %2357 = vmatprep.subr.mxu0 0.0
  %2358 = vmatpush1.msra.mxu0 0.0
  %2359 = vmatprep.subr.mxu0 0.0
  %2360 = vmatpush1.msra.mxu0 0.0
  %2361 = vmatprep.subr.mxu0 0.0
  %2362 = vmatpush1.msra.mxu0 0.0
  %2363 = vmatprep.subr.mxu0 0.0
  %2364 = vmatpush1.msra.mxu0 0.0
  %2365 = vmatprep.subr.mxu0 0.0
  %2366 = vmatpush1.msra.mxu0 0.0
  %2367 = vmatprep.subr.mxu0 0.0
  %2368 = vmatpush1.msra.mxu0 0.0
  %2369 = vmatprep.subr.mxu0 0.0
  %2370 = vmatpush1.msra.mxu0 0.0
  %2371 = vmatprep.mubr.f32.mxu0 0.0
  %2372 = vmatmul.mubr.f32.gmra.mrb[0].mxu0 %v2302
  %v2373 = vpop.f32.mrb[0].mxu0
  %v2374 = vadd.f32 %v2293, %v2373
  %v2375 = vpop.f32.mrb[0].mxu0
  %2376 = vmatprep.mubr.f32.mxu0 0.0
  %2377 = vmatmul.mubr.f32.gmra.mrb[0].mxu0 %v2305
  %v2378 = vpop.f32.mrb[0].mxu0
  %v2379 = vadd.f32 %v2298, %v2378
  %v2380 = vpop.f32.mrb[0].mxu0
  %2381 = vdwg.mxu0
  %2382 = vst.msk [vmem:[%s9] sm:$0xff] %vm980, %v2374
  %vm2383 = vcmask 9216
  %2384 = vst.msk [vmem:[%s9 + $0x8] sm:$0x3] %vm2383, %v2379
  // Predicated region
  $region38: #{tpu_custom_call.1} parent=0 // pred_check
    _
  $region39: #{tpu_custom_call.1} parent=0 // pred_check_branch
    %2386 = sbr.rel (0) target = $region41
  $region40: #{tpu_custom_call.1} parent=0 // pred_region
    _
  $region41: #{tpu_custom_call.1} parent=0 // pred_fallthru
    _
  // Predicated region
  $region42: #{tpu_custom_call.1} parent=0 // pred_check
    _
  $region43: #{tpu_custom_call.1} parent=0 // pred_check_branch
    %2388 = sbr.rel (0) target = $region45
  $region44: #{tpu_custom_call.1} parent=0 // pred_region
    _
  $region45: #{tpu_custom_call.1} parent=0 // pred_fallthru
    _

</llo_original>
